<compile_context>
chip_gen: v6e
topology: v6e:2x2x1
jax: 0.10.0
libtpu: 0.0.40
codegen_flags: <defaults>
</compile_context>

<pallas_src>
import functools
import math

import jax
import jax.numpy as jnp
from jax.experimental import pallas as pl
from jax.experimental.pallas import tpu as pltpu


# ----------------------------- in-kernel helpers --------------------------- #

def _layer_norm(z, g, b):
    mean = jnp.mean(z, axis=-1, keepdims=True)
    var = jnp.mean(jnp.square(z - mean), axis=-1, keepdims=True)
    return (z - mean) * jax.lax.rsqrt(var + 1e-5) * g + b


def _softmax_rows(s):
    m = jnp.max(s, axis=-1, keepdims=True)
    e = jnp.exp(s - m)
    return e * pl.reciprocal(jnp.sum(e, axis=-1, keepdims=True), approx=True)


def _attention(q, k, v, wo, bo, o_scratch, *, H, hd):
    """q: (T, D) f32 (already scaled), k/v: (Lk, D) f32, wo: (D, D) bf16 stored
    (in, out), bo: (1, D) f32, o_scratch: (T, D) f32 VMEM scratch.

    Per-head softmax(q_h k_h^T) v_h is written into column slice h of
    o_scratch; the output projection is then ONE full-depth matmul."""
    qb = q.astype(jnp.bfloat16)
    kb = k.astype(jnp.bfloat16)
    vb = v.astype(jnp.bfloat16)
    for h in range(H):
        lo, hi = h * hd, (h + 1) * hd
        # scores = q_h @ k_h^T without materializing a transpose
        s = jax.lax.dot_general(
            qb[:, lo:hi], kb[:, lo:hi],
            (((1,), (1,)), ((), ())),
            preferred_element_type=jnp.float32)               # (T, Lk) f32
        p = _softmax_rows(s)
        o_scratch[:, lo:hi] = jnp.dot(
            p.astype(jnp.bfloat16), vb[:, lo:hi],
            preferred_element_type=jnp.float32)               # (T, hd)
    # single (T, D) @ (D, D) projection — full MXU contraction depth
    return jnp.dot(o_scratch[...].astype(jnp.bfloat16), wo,
                   preferred_element_type=jnp.float32) + bo


# ----------------------------- fused decoder kernel ------------------------ #
# Packed per-layer tensors:
#   wdd  (L, 6, D, D) bf16 : [sa_wv, sa_wo, ca_wq(*scale), ca_wk, ca_wv, ca_wo]
#   vecs (L, 16, D)   f32  : [sa_bq(*scale), sa_bk, sa_bv, sa_bo,
#                             ca_bq(*scale), ca_bk, ca_bv, ca_bo,
#                             b2, n1g, n1b, n2g, n2b, n3g, n3b, pad]

def _decoder_kernel(
    # batch-resident activations / constants (block index = batch)
    tgt_ref, memk_ref, memv_ref, qpos_ref,
    # per-layer weights (leading layer axis selected by the inner grid axis)
    sa_wqk_ref, wdd_ref, w1_ref, w2_ref, vec_ref, b1_ref,
    # final norm
    fg_ref, fb_ref,
    # output
    out_ref,
    # scratch
    x_scratch, attn_scratch,
    *, H, hd,
):
    D = H * hd
    l = pl.program_id(1)

    @pl.when(l == 0)
    def _():
        x_scratch[...] = tgt_ref[0]

    x = x_scratch[...]                       # (T, D) f32, VMEM-resident
    qpos = qpos_ref[0]                       # (T, D) f32

    vecs = vec_ref[0]                        # (16, D) f32
    sa_bq, sa_bk, sa_bv, sa_bo = vecs[0:1], vecs[1:2], vecs[2:3], vecs[3:4]
    ca_bq, ca_bk, ca_bv, ca_bo = vecs[4:5], vecs[5:6], vecs[6:7], vecs[7:8]
    b2 = vecs[8:9]
    n1g, n1b = vecs[9:10], vecs[10:11]
    n2g, n2b = vecs[11:12], vecs[12:13]
    n3g, n3b = vecs[13:14], vecs[14:15]

    # ---- self-attention: q = k = x + query_pos (packed Q|K matmul), v = x ----
    xq = (x + qpos).astype(jnp.bfloat16)
    qk = jnp.dot(xq, sa_wqk_ref[0], preferred_element_type=jnp.float32)  # (T, 2D)
    q = qk[:, :D] + sa_bq
    k = qk[:, D:] + sa_bk
    v = jnp.dot(x.astype(jnp.bfloat16), wdd_ref[0, 0],
                preferred_element_type=jnp.float32) + sa_bv
    sa = _attention(q, k, v, wdd_ref[0, 1], sa_bo, attn_scratch, H=H, hd=hd)
    x = _layer_norm(x + sa, n1g, n1b)        # fused add + LN

    # ---- cross-attention: q = x + query_pos, k = memory + pos, v = memory ----
    xq = (x + qpos).astype(jnp.bfloat16)
    q = jnp.dot(xq, wdd_ref[0, 2], preferred_element_type=jnp.float32) + ca_bq
    k = jnp.dot(memk_ref[0], wdd_ref[0, 3],
                preferred_element_type=jnp.float32) + ca_bk
    v = jnp.dot(memv_ref[0], wdd_ref[0, 4],
                preferred_element_type=jnp.float32) + ca_bv
    ca = _attention(q, k, v, wdd_ref[0, 5], ca_bo, attn_scratch, H=H, hd=hd)
    x = _layer_norm(x + ca, n2g, n2b)

    # ---- feed-forward (ReLU), dropout = identity at eval ----
    h1 = jnp.maximum(
        jnp.dot(x.astype(jnp.bfloat16), w1_ref[0],
                preferred_element_type=jnp.float32) + b1_ref[0], 0.0)
    ff = jnp.dot(h1.astype(jnp.bfloat16), w2_ref[0],
                 preferred_element_type=jnp.float32) + b2
    x = _layer_norm(x + ff, n3g, n3b)

    x_scratch[...] = x

    # final LayerNorm + single HBM writeback on the last layer of this batch
    @pl.when(l == pl.num_programs(1) - 1)
    def _():
        out_ref[0] = _layer_norm(x, fg_ref[...], fb_ref[...])


# ----------------------------- wrapper -------------------------------------- #

def _vmem_budget_bytes(B, T, S, D, F, H):
    """Rough scoped-VMEM budget: double-buffered bf16 weights + resident
    activations + live intermediates, clamped to [32 MiB, 64 MiB] so it is
    valid on every generation (v7x physical VMEM is 64 MiB)."""
    bf2, f4 = 2, 4
    per_layer = (D * 2 * D + 6 * D * D + D * F + F * D) * bf2 + (16 * D + F) * f4
    resident = 2 * (3 * T * D * f4)            # tgt / qpos / out blocks (dbl-buf)
    resident += 2 * (2 * S * D * bf2)          # memk / memv blocks (dbl-buf)
    resident += 2 * T * D * f4                 # scratches
    work = (H * T * max(T, S) + 6 * T * D + 2 * S * D + T * F) * f4
    need = 2 * per_layer + resident + work + (4 << 20)
    return int(min(max(need, 32 << 20), 64 << 20))


def transformer_decoder_forward(tgt, memory, prepped, pos, query_pos, *, nhead):
    """TransformerDecoder.forward (return_intermediate=False) -> (1, T, B, D)."""
    T, B, D = tgt.shape
    S = memory.shape[0]
    hd = D // nhead
    F = prepped["w1"].shape[-1]
    num_layers = prepped["w1"].shape[0]

    # seq-first (L, B, D) -> batch-first (B, L, D), done once on the host side.
    x0 = tgt.transpose(1, 0, 2)                                   # (B, T, D) f32
    qpos = query_pos.transpose(1, 0, 2)                           # (B, T, D) f32
    memv = memory.transpose(1, 0, 2).astype(jnp.bfloat16)         # (B, S, D)
    memk = (memory + pos).transpose(1, 0, 2).astype(jnp.bfloat16)  # (B, S, D)

    def batch_block(r, c):      # resident per-batch block, constant across layers
        return pl.BlockSpec((1, r, c), lambda b, l: (b, 0, 0))

    def layer_block(r, c):      # streamed per grid step (layer l)
        return pl.BlockSpec((1, r, c), lambda b, l: (l, 0, 0))

    in_specs = [
        batch_block(T, D),                                   # tgt
        batch_block(S, D),                                   # memory + pos (keys)
        batch_block(S, D),                                   # memory (values)
        batch_block(T, D),                                   # query_pos
        layer_block(D, 2 * D),                               # sa_wqk (bf16)
        pl.BlockSpec((1, 6, D, D), lambda b, l: (l, 0, 0, 0)),  # packed (D,D) mats
        layer_block(D, F),                                   # w1 (bf16)
        layer_block(F, D),                                   # w2 (bf16)
        layer_block(16, D),                                  # packed biases / LN
        layer_block(1, F),                                   # b1
        pl.BlockSpec((1, D), lambda b, l: (0, 0)),           # final norm gamma
        pl.BlockSpec((1, D), lambda b, l: (0, 0)),           # final norm beta
    ]

    kernel = functools.partial(_decoder_kernel, H=nhead, hd=hd)

    out = pl.pallas_call(
        kernel,
        out_shape=jax.ShapeDtypeStruct((B, T, D), jnp.float32),
        grid_spec=pltpu.PrefetchScalarGridSpec(
            num_scalar_prefetch=0,
            grid=(B, num_layers),
            in_specs=in_specs,
            out_specs=pl.BlockSpec((1, T, D), lambda b, l: (b, 0, 0)),
            scratch_shapes=[pltpu.VMEM((T, D), jnp.float32),   # carried activation
                            pltpu.VMEM((T, D), jnp.float32)],  # head-concat buffer
        ),
        compiler_params=pltpu.CompilerParams(
            # batch sharded across TensorCores; layer axis carries activation
            dimension_semantics=("parallel", "arbitrary"),
            vmem_limit_bytes=_vmem_budget_bytes(B, T, S, D, F, nhead)),
    )(x0, memk, memv, qpos,
      prepped["sa_wqk"], prepped["wdd"], prepped["w1"], prepped["w2"],
      prepped["vecs"], prepped["b1"], prepped["fg"], prepped["fb"])

    return out.transpose(1, 0, 2)[None]                       # (1, T, B, D)


# ----------------------------- params --------------------------------------- #

def _init_mha(key, D):
    k1, k2 = jax.random.split(key)
    return {
        "in_w": jax.random.normal(k1, (3 * D, D), jnp.float32) * 0.1,
        "in_b": jnp.zeros((3 * D,), jnp.float32),
        "out_w": jax.random.normal(k2, (D, D), jnp.float32) * 0.1,
        "out_b": jnp.zeros((D,), jnp.float32),
    }


def init_params(key, num_layers, D, F):
    """PyTorch-convention parameters (nn.Linear weights are (out, in))."""
    layers = []
    for _ in range(num_layers):
        key, ksa, kca, k1, k2 = jax.random.split(key, 5)
        layers.append({
            "self_attn": _init_mha(ksa, D),
            "cross_attn": _init_mha(kca, D),
            "lin1_w": jax.random.normal(k1, (F, D), jnp.float32) * 0.1,
            "lin1_b": jnp.zeros((F,), jnp.float32),
            "lin2_w": jax.random.normal(k2, (D, F), jnp.float32) * 0.1,
            "lin2_b": jnp.zeros((D,), jnp.float32),
            "norm1_g": jnp.ones((D,), jnp.float32),
            "norm1_b": jnp.zeros((D,), jnp.float32),
            "norm2_g": jnp.ones((D,), jnp.float32),
            "norm2_b": jnp.zeros((D,), jnp.float32),
            "norm3_g": jnp.ones((D,), jnp.float32),
            "norm3_b": jnp.zeros((D,), jnp.float32),
        })
    return {
        "layers": layers,
        "norm_g": jnp.ones((D,), jnp.float32),
        "norm_b": jnp.zeros((D,), jnp.float32),
    }


def prep_params(params, nhead):
    """One-time host-side prep: transpose weights to (in, out), fold the
    1/sqrt(head_dim) scale into Q weights/bias, pack self-attn Q|K, pack the
    six (D, D) matrices and all small vectors per layer, cast weights to bf16,
    and stack along a leading layer axis."""
    D = params["norm_g"].shape[0]
    hd = D // nhead
    scale = 1.0 / math.sqrt(hd)

    wqk_l, wdd_l, w1_l, w2_l, vec_l, b1_l = [], [], [], [], [], []
    for p in params["layers"]:
        sw, sb = p["self_attn"]["in_w"], p["self_attn"]["in_b"]
        cw, cb = p["cross_attn"]["in_w"], p["cross_attn"]["in_b"]

        wqk_l.append(jnp.concatenate(
            [sw[:D].T * scale, sw[D:2 * D].T], axis=1).astype(jnp.bfloat16))
        wdd_l.append(jnp.stack([
            sw[2 * D:].T,                     # 0 sa_wv
            p["self_attn"]["out_w"].T,        # 1 sa_wo
            cw[:D].T * scale,                 # 2 ca_wq (scale folded)
            cw[D:2 * D].T,                    # 3 ca_wk
            cw[2 * D:].T,                     # 4 ca_wv
            p["cross_attn"]["out_w"].T,       # 5 ca_wo
        ], axis=0).astype(jnp.bfloat16))
        w1_l.append(p["lin1_w"].T.astype(jnp.bfloat16))
        w2_l.append(p["lin2_w"].T.astype(jnp.bfloat16))
        vec_l.append(jnp.stack([
            sb[:D] * scale,                   # 0 sa_bq (scale folded)
            sb[D:2 * D],                      # 1 sa_bk
            sb[2 * D:],                       # 2 sa_bv
            p["self_attn"]["out_b"],          # 3 sa_bo
            cb[:D] * scale,                   # 4 ca_bq (scale folded)
            cb[D:2 * D],                      # 5 ca_bk
            cb[2 * D:],                       # 6 ca_bv
            p["cross_attn"]["out_b"],         # 7 ca_bo
            p["lin2_b"],                      # 8 b2
            p["norm1_g"], p["norm1_b"],       # 9, 10
            p["norm2_g"], p["norm2_b"],       # 11, 12
            p["norm3_g"], p["norm3_b"],       # 13, 14
            jnp.zeros((D,), jnp.float32),     # 15 pad
        ], axis=0))
        b1_l.append(p["lin1_b"].reshape(1, -1))

    return {
        "sa_wqk": jnp.stack(wqk_l),           # (L, D, 2D)   bf16
        "wdd": jnp.stack(wdd_l),              # (L, 6, D, D) bf16
        "w1": jnp.stack(w1_l),                # (L, D, F)    bf16
        "w2": jnp.stack(w2_l),                # (L, F, D)    bf16
        "vecs": jnp.stack(vec_l),             # (L, 16, D)   f32
        "b1": jnp.stack(b1_l),                # (L, 1, F)    f32
        "fg": params["norm_g"].reshape(1, D),
        "fb": params["norm_b"].reshape(1, D),
    }


# ----------------------------- main ------------------------------------------ #

if __name__ == "__main__":
    D = 32          # d_model
    NHEAD = 4
    FF = 64         # dim_feedforward
    NUM_LAYERS = 2
    T = 8           # number of object queries (tgt length)
    S = 16          # memory length (flattened HxW)
    B = 2           # batch

    key = jax.random.PRNGKey(0)
    key, kt, km, kp, kq, kparams = jax.random.split(key, 6)

    tgt = jax.random.normal(kt, (T, B, D), jnp.float32)
    memory = jax.random.normal(km, (S, B, D), jnp.float32)
    pos = jax.random.normal(kp, (S, B, D), jnp.float32)
    query_pos = jax.random.normal(kq, (T, B, D), jnp.float32)

    params = init_params(kparams, NUM_LAYERS, D, FF)
    prepped = prep_params(params, NHEAD)

    fwd = jax.jit(functools.partial(transformer_decoder_forward, nhead=NHEAD))
    out = jax.block_until_ready(fwd(tgt, memory, prepped, pos, query_pos))

    assert out.shape == (1, T, B, D), out.shape
    assert bool(jnp.all(jnp.isfinite(out)))
    print("KERNEL_OK")
</pallas_src>

<mosaic_0001>
module attributes {stable_mosaic.version = 11 : i64} {
  func.func @_decoder_kernel(%arg0: i32, %arg1: i32, %arg2: memref<1x8x32xf32, #tpu.memory_space<vmem>>, %arg3: memref<1x16x32xbf16, #tpu.memory_space<vmem>>, %arg4: memref<1x16x32xbf16, #tpu.memory_space<vmem>>, %arg5: memref<1x8x32xf32, #tpu.memory_space<vmem>>, %arg6: memref<1x32x64xbf16, #tpu.memory_space<vmem>>, %arg7: memref<1x6x32x32xbf16, #tpu.memory_space<vmem>>, %arg8: memref<1x32x64xbf16, #tpu.memory_space<vmem>>, %arg9: memref<1x64x32xbf16, #tpu.memory_space<vmem>>, %arg10: memref<1x16x32xf32, #tpu.memory_space<vmem>>, %arg11: memref<1x1x64xf32, #tpu.memory_space<vmem>>, %arg12: memref<1x32xf32, #tpu.memory_space<vmem>>, %arg13: memref<1x32xf32, #tpu.memory_space<vmem>>, %arg14: memref<1x8x32xf32, #tpu.memory_space<vmem>>, %arg15: memref<8x32xf32, #tpu.memory_space<vmem>>, %arg16: memref<8x32xf32, #tpu.memory_space<vmem>>) attributes {dimension_semantics = [#tpu.dimension_semantics<parallel>, #tpu.dimension_semantics<arbitrary>], iteration_bounds = array<i64: 2, 2>, scalar_prefetch = 0 : i64, scratch_operands = 2 : i64, tpu.core_type = #tpu.core_type<tc>, window_params = [{transform_indices = @transform_0, window_bounds = array<i64: 1, 8, 32>}, {transform_indices = @transform_1, window_bounds = array<i64: 1, 16, 32>}, {transform_indices = @transform_2, window_bounds = array<i64: 1, 16, 32>}, {transform_indices = @transform_3, window_bounds = array<i64: 1, 8, 32>}, {transform_indices = @transform_4, window_bounds = array<i64: 1, 32, 64>}, {transform_indices = @transform_5, window_bounds = array<i64: 1, 6, 32, 32>}, {transform_indices = @transform_6, window_bounds = array<i64: 1, 32, 64>}, {transform_indices = @transform_7, window_bounds = array<i64: 1, 64, 32>}, {transform_indices = @transform_8, window_bounds = array<i64: 1, 16, 32>}, {transform_indices = @transform_9, window_bounds = array<i64: 1, 1, 64>}, {pipeline_mode = #tpu.pipeline_mode<synchronous>, transform_indices = @transform_10, window_bounds = array<i64: 1, 32>}, {pipeline_mode = #tpu.pipeline_mode<synchronous>, transform_indices = @transform_11, window_bounds = array<i64: 1, 32>}, {transform_indices = @transform_12, window_bounds = array<i64: 1, 8, 32>}]} {
    %c0_i32 = arith.constant 0 : i32
    %0 = arith.cmpi eq, %arg1, %c0_i32 : i32
    %1 = arith.extui %0 : i1 to i32
    %c0_i32_0 = arith.constant 0 : i32
    %2 = arith.cmpi ne, %1, %c0_i32_0 : i32
    scf.if %2 {
      %c0_121 = arith.constant 0 : index
      %c0_122 = arith.constant 0 : index
      %c0_123 = arith.constant 0 : index
      %306 = vector.load %arg2[%c0_121, %c0_122, %c0_123] : memref<1x8x32xf32, #tpu.memory_space<vmem>>, vector<1x8x32xf32>
      %307 = vector.shape_cast %306 : vector<1x8x32xf32> to vector<8x32xf32>
      %c0_124 = arith.constant 0 : index
      %c0_125 = arith.constant 0 : index
      %308 = vector.load %arg15[%c0_124, %c0_125] : memref<8x32xf32, #tpu.memory_space<vmem>>, vector<8x32xf32>
      tpu.vector_store %arg15[%c0_124, %c0_125], %307 {strides = array<i32>} : memref<8x32xf32, #tpu.memory_space<vmem>>, vector<8x32xf32>,
    } else {
    }
    %c0 = arith.constant 0 : index
    %c0_1 = arith.constant 0 : index
    %3 = vector.load %arg15[%c0, %c0_1] : memref<8x32xf32, #tpu.memory_space<vmem>>, vector<8x32xf32>
    %c0_2 = arith.constant 0 : index
    %c0_3 = arith.constant 0 : index
    %c0_4 = arith.constant 0 : index
    %4 = vector.load %arg5[%c0_2, %c0_3, %c0_4] : memref<1x8x32xf32, #tpu.memory_space<vmem>>, vector<1x8x32xf32>
    %5 = vector.shape_cast %4 : vector<1x8x32xf32> to vector<8x32xf32>
    %c0_5 = arith.constant 0 : index
    %c0_6 = arith.constant 0 : index
    %c0_7 = arith.constant 0 : index
    %6 = vector.load %arg10[%c0_5, %c0_6, %c0_7] : memref<1x16x32xf32, #tpu.memory_space<vmem>>, vector<1x16x32xf32>
    %7 = vector.shape_cast %6 : vector<1x16x32xf32> to vector<16x32xf32>
    %8 = vector.extract_strided_slice %7 {offsets = [0, 0], sizes = [1, 32], strides = [1, 1]} : vector<16x32xf32> to vector<1x32xf32>
    %9 = vector.extract_strided_slice %7 {offsets = [1, 0], sizes = [1, 32], strides = [1, 1]} : vector<16x32xf32> to vector<1x32xf32>
    %10 = vector.extract_strided_slice %7 {offsets = [2, 0], sizes = [1, 32], strides = [1, 1]} : vector<16x32xf32> to vector<1x32xf32>
    %11 = vector.extract_strided_slice %7 {offsets = [3, 0], sizes = [1, 32], strides = [1, 1]} : vector<16x32xf32> to vector<1x32xf32>
    %12 = vector.extract_strided_slice %7 {offsets = [4, 0], sizes = [1, 32], strides = [1, 1]} : vector<16x32xf32> to vector<1x32xf32>
    %13 = vector.extract_strided_slice %7 {offsets = [5, 0], sizes = [1, 32], strides = [1, 1]} : vector<16x32xf32> to vector<1x32xf32>
    %14 = vector.extract_strided_slice %7 {offsets = [6, 0], sizes = [1, 32], strides = [1, 1]} : vector<16x32xf32> to vector<1x32xf32>
    %15 = vector.extract_strided_slice %7 {offsets = [7, 0], sizes = [1, 32], strides = [1, 1]} : vector<16x32xf32> to vector<1x32xf32>
    %16 = vector.extract_strided_slice %7 {offsets = [8, 0], sizes = [1, 32], strides = [1, 1]} : vector<16x32xf32> to vector<1x32xf32>
    %17 = vector.extract_strided_slice %7 {offsets = [9, 0], sizes = [1, 32], strides = [1, 1]} : vector<16x32xf32> to vector<1x32xf32>
    %18 = vector.extract_strided_slice %7 {offsets = [10, 0], sizes = [1, 32], strides = [1, 1]} : vector<16x32xf32> to vector<1x32xf32>
    %19 = vector.extract_strided_slice %7 {offsets = [11, 0], sizes = [1, 32], strides = [1, 1]} : vector<16x32xf32> to vector<1x32xf32>
    %20 = vector.extract_strided_slice %7 {offsets = [12, 0], sizes = [1, 32], strides = [1, 1]} : vector<16x32xf32> to vector<1x32xf32>
    %21 = vector.extract_strided_slice %7 {offsets = [13, 0], sizes = [1, 32], strides = [1, 1]} : vector<16x32xf32> to vector<1x32xf32>
    %22 = vector.extract_strided_slice %7 {offsets = [14, 0], sizes = [1, 32], strides = [1, 1]} : vector<16x32xf32> to vector<1x32xf32>
    %23 = arith.addf %3, %5 : vector<8x32xf32>
    %24 = arith.truncf %23 : vector<8x32xf32> to vector<8x32xbf16>
    %c0_8 = arith.constant 0 : index
    %c0_9 = arith.constant 0 : index
    %c0_10 = arith.constant 0 : index
    %25 = vector.load %arg6[%c0_8, %c0_9, %c0_10] : memref<1x32x64xbf16, #tpu.memory_space<vmem>>, vector<1x32x64xbf16>
    %26 = vector.shape_cast %25 : vector<1x32x64xbf16> to vector<32x64xbf16>
    %cst = arith.constant dense<0.000000e+00> : vector<8x64xf32>
    %27 = tpu.matmul %24, %26, %cst {dimension_numbers = #tpu.dot_dimension_numbers<[1], [0], [0], [1], [0, 0, 1, 1], [], []>} : vector<8x32xbf16>, vector<32x64xbf16>, vector<8x64xf32> -> vector<8x64xf32>
    %28 = vector.extract_strided_slice %27 {offsets = [0, 0], sizes = [8, 32], strides = [1, 1]} : vector<8x64xf32> to vector<8x32xf32>
    %29 = vector.broadcast %8 : vector<1x32xf32> to vector<8x32xf32>
    %30 = arith.addf %28, %29 : vector<8x32xf32>
    %31 = vector.extract_strided_slice %27 {offsets = [0, 32], sizes = [8, 32], strides = [1, 1]} : vector<8x64xf32> to vector<8x32xf32>
    %32 = vector.broadcast %9 : vector<1x32xf32> to vector<8x32xf32>
    %33 = arith.addf %31, %32 : vector<8x32xf32>
    %34 = arith.truncf %3 : vector<8x32xf32> to vector<8x32xbf16>
    %c0_11 = arith.constant 0 : index
    %c0_12 = arith.constant 0 : index
    %c0_13 = arith.constant 0 : index
    %c0_14 = arith.constant 0 : index
    %35 = vector.load %arg7[%c0_11, %c0_12, %c0_13, %c0_14] : memref<1x6x32x32xbf16, #tpu.memory_space<vmem>>, vector<1x1x32x32xbf16>
    %36 = vector.shape_cast %35 : vector<1x1x32x32xbf16> to vector<32x32xbf16>
    %cst_15 = arith.constant dense<0.000000e+00> : vector<8x32xf32>
    %37 = tpu.matmul %34, %36, %cst_15 {dimension_numbers = #tpu.dot_dimension_numbers<[1], [0], [0], [1], [0, 0, 1, 1], [], []>} : vector<8x32xbf16>, vector<32x32xbf16>, vector<8x32xf32> -> vector<8x32xf32>
    %38 = vector.broadcast %10 : vector<1x32xf32> to vector<8x32xf32>
    %39 = arith.addf %37, %38 : vector<8x32xf32>
    %c0_16 = arith.constant 0 : index
    %c1 = arith.constant 1 : index
    %c0_17 = arith.constant 0 : index
    %c0_18 = arith.constant 0 : index
    %40 = vector.load %arg7[%c0_16, %c1, %c0_17, %c0_18] : memref<1x6x32x32xbf16, #tpu.memory_space<vmem>>, vector<1x1x32x32xbf16>
    %41 = vector.shape_cast %40 : vector<1x1x32x32xbf16> to vector<32x32xbf16>
    %42 = arith.truncf %30 : vector<8x32xf32> to vector<8x32xbf16>
    %43 = arith.truncf %33 : vector<8x32xf32> to vector<8x32xbf16>
    %44 = arith.truncf %39 : vector<8x32xf32> to vector<8x32xbf16>
    %45 = vector.extract_strided_slice %42 {offsets = [0, 0], sizes = [8, 8], strides = [1, 1]} : vector<8x32xbf16> to vector<8x8xbf16>
    %46 = vector.extract_strided_slice %43 {offsets = [0, 0], sizes = [8, 8], strides = [1, 1]} : vector<8x32xbf16> to vector<8x8xbf16>
    %cst_19 = arith.constant dense<0.000000e+00> : vector<8x8xf32>
    %47 = tpu.matmul %45, %46, %cst_19 {dimension_numbers = #tpu.dot_dimension_numbers<[1], [1], [0], [0], [0, 0, 1, 0], [], []>} : vector<8x8xbf16>, vector<8x8xbf16>, vector<8x8xf32> -> vector<8x8xf32>
    %cst_20 = arith.constant dense<0xFF800000> : vector<8xf32>
    %48 = vector.multi_reduction <maximumf>, %47, %cst_20 [1] : vector<8x8xf32> to vector<8xf32>
    %49 = vector.shape_cast %48 : vector<8xf32> to vector<8x1xf32>
    %50 = vector.broadcast %49 : vector<8x1xf32> to vector<8x8xf32>
    %51 = arith.subf %47, %50 : vector<8x8xf32>
    %52 = math.exp %51 : vector<8x8xf32>
    %cst_21 = arith.constant dense<0.000000e+00> : vector<8xf32>
    %53 = vector.multi_reduction <add>, %52, %cst_21 [1] : vector<8x8xf32> to vector<8xf32>
    %54 = vector.shape_cast %53 : vector<8xf32> to vector<8x1xf32>
    %55 = tpu.reciprocal %54 {approx = true} : vector<8x1xf32> -> vector<8x1xf32>
    %56 = vector.broadcast %55 : vector<8x1xf32> to vector<8x8xf32>
    %57 = arith.mulf %52, %56 : vector<8x8xf32>
    %58 = arith.truncf %57 : vector<8x8xf32> to vector<8x8xbf16>
    %59 = vector.extract_strided_slice %44 {offsets = [0, 0], sizes = [8, 8], strides = [1, 1]} : vector<8x32xbf16> to vector<8x8xbf16>
    %cst_22 = arith.constant dense<0.000000e+00> : vector<8x8xf32>
    %60 = tpu.matmul %58, %59, %cst_22 {dimension_numbers = #tpu.dot_dimension_numbers<[1], [0], [0], [1], [0, 0, 1, 1], [], []>} : vector<8x8xbf16>, vector<8x8xbf16>, vector<8x8xf32> -> vector<8x8xf32>
    %c0_23 = arith.constant 0 : index
    %c0_24 = arith.constant 0 : index
    %61 = vector.load %arg16[%c0_23, %c0_24] : memref<8x32xf32, #tpu.memory_space<vmem>>, vector<8x8xf32>
    tpu.vector_store %arg16[%c0_23, %c0_24], %60 {strides = array<i32>} : memref<8x32xf32, #tpu.memory_space<vmem>>, vector<8x8xf32>,
    %62 = vector.extract_strided_slice %42 {offsets = [0, 8], sizes = [8, 8], strides = [1, 1]} : vector<8x32xbf16> to vector<8x8xbf16>
    %63 = vector.extract_strided_slice %43 {offsets = [0, 8], sizes = [8, 8], strides = [1, 1]} : vector<8x32xbf16> to vector<8x8xbf16>
    %cst_25 = arith.constant dense<0.000000e+00> : vector<8x8xf32>
    %64 = tpu.matmul %62, %63, %cst_25 {dimension_numbers = #tpu.dot_dimension_numbers<[1], [1], [0], [0], [0, 0, 1, 0], [], []>} : vector<8x8xbf16>, vector<8x8xbf16>, vector<8x8xf32> -> vector<8x8xf32>
    %cst_26 = arith.constant dense<0xFF800000> : vector<8xf32>
    %65 = vector.multi_reduction <maximumf>, %64, %cst_26 [1] : vector<8x8xf32> to vector<8xf32>
    %66 = vector.shape_cast %65 : vector<8xf32> to vector<8x1xf32>
    %67 = vector.broadcast %66 : vector<8x1xf32> to vector<8x8xf32>
    %68 = arith.subf %64, %67 : vector<8x8xf32>
    %69 = math.exp %68 : vector<8x8xf32>
    %cst_27 = arith.constant dense<0.000000e+00> : vector<8xf32>
    %70 = vector.multi_reduction <add>, %69, %cst_27 [1] : vector<8x8xf32> to vector<8xf32>
    %71 = vector.shape_cast %70 : vector<8xf32> to vector<8x1xf32>
    %72 = tpu.reciprocal %71 {approx = true} : vector<8x1xf32> -> vector<8x1xf32>
    %73 = vector.broadcast %72 : vector<8x1xf32> to vector<8x8xf32>
    %74 = arith.mulf %69, %73 : vector<8x8xf32>
    %75 = arith.truncf %74 : vector<8x8xf32> to vector<8x8xbf16>
    %76 = vector.extract_strided_slice %44 {offsets = [0, 8], sizes = [8, 8], strides = [1, 1]} : vector<8x32xbf16> to vector<8x8xbf16>
    %cst_28 = arith.constant dense<0.000000e+00> : vector<8x8xf32>
    %77 = tpu.matmul %75, %76, %cst_28 {dimension_numbers = #tpu.dot_dimension_numbers<[1], [0], [0], [1], [0, 0, 1, 1], [], []>} : vector<8x8xbf16>, vector<8x8xbf16>, vector<8x8xf32> -> vector<8x8xf32>
    %c0_29 = arith.constant 0 : index
    %c8 = arith.constant 8 : index
    %78 = vector.load %arg16[%c0_29, %c8] : memref<8x32xf32, #tpu.memory_space<vmem>>, vector<8x8xf32>
    tpu.vector_store %arg16[%c0_29, %c8], %77 {strides = array<i32>} : memref<8x32xf32, #tpu.memory_space<vmem>>, vector<8x8xf32>,
    %79 = vector.extract_strided_slice %42 {offsets = [0, 16], sizes = [8, 8], strides = [1, 1]} : vector<8x32xbf16> to vector<8x8xbf16>
    %80 = vector.extract_strided_slice %43 {offsets = [0, 16], sizes = [8, 8], strides = [1, 1]} : vector<8x32xbf16> to vector<8x8xbf16>
    %cst_30 = arith.constant dense<0.000000e+00> : vector<8x8xf32>
    %81 = tpu.matmul %79, %80, %cst_30 {dimension_numbers = #tpu.dot_dimension_numbers<[1], [1], [0], [0], [0, 0, 1, 0], [], []>} : vector<8x8xbf16>, vector<8x8xbf16>, vector<8x8xf32> -> vector<8x8xf32>
    %cst_31 = arith.constant dense<0xFF800000> : vector<8xf32>
    %82 = vector.multi_reduction <maximumf>, %81, %cst_31 [1] : vector<8x8xf32> to vector<8xf32>
    %83 = vector.shape_cast %82 : vector<8xf32> to vector<8x1xf32>
    %84 = vector.broadcast %83 : vector<8x1xf32> to vector<8x8xf32>
    %85 = arith.subf %81, %84 : vector<8x8xf32>
    %86 = math.exp %85 : vector<8x8xf32>
    %cst_32 = arith.constant dense<0.000000e+00> : vector<8xf32>
    %87 = vector.multi_reduction <add>, %86, %cst_32 [1] : vector<8x8xf32> to vector<8xf32>
    %88 = vector.shape_cast %87 : vector<8xf32> to vector<8x1xf32>
    %89 = tpu.reciprocal %88 {approx = true} : vector<8x1xf32> -> vector<8x1xf32>
    %90 = vector.broadcast %89 : vector<8x1xf32> to vector<8x8xf32>
    %91 = arith.mulf %86, %90 : vector<8x8xf32>
    %92 = arith.truncf %91 : vector<8x8xf32> to vector<8x8xbf16>
    %93 = vector.extract_strided_slice %44 {offsets = [0, 16], sizes = [8, 8], strides = [1, 1]} : vector<8x32xbf16> to vector<8x8xbf16>
    %cst_33 = arith.constant dense<0.000000e+00> : vector<8x8xf32>
    %94 = tpu.matmul %92, %93, %cst_33 {dimension_numbers = #tpu.dot_dimension_numbers<[1], [0], [0], [1], [0, 0, 1, 1], [], []>} : vector<8x8xbf16>, vector<8x8xbf16>, vector<8x8xf32> -> vector<8x8xf32>
    %c0_34 = arith.constant 0 : index
    %c16 = arith.constant 16 : index
    %95 = vector.load %arg16[%c0_34, %c16] : memref<8x32xf32, #tpu.memory_space<vmem>>, vector<8x8xf32>
    tpu.vector_store %arg16[%c0_34, %c16], %94 {strides = array<i32>} : memref<8x32xf32, #tpu.memory_space<vmem>>, vector<8x8xf32>,
    %96 = vector.extract_strided_slice %42 {offsets = [0, 24], sizes = [8, 8], strides = [1, 1]} : vector<8x32xbf16> to vector<8x8xbf16>
    %97 = vector.extract_strided_slice %43 {offsets = [0, 24], sizes = [8, 8], strides = [1, 1]} : vector<8x32xbf16> to vector<8x8xbf16>
    %cst_35 = arith.constant dense<0.000000e+00> : vector<8x8xf32>
    %98 = tpu.matmul %96, %97, %cst_35 {dimension_numbers = #tpu.dot_dimension_numbers<[1], [1], [0], [0], [0, 0, 1, 0], [], []>} : vector<8x8xbf16>, vector<8x8xbf16>, vector<8x8xf32> -> vector<8x8xf32>
    %cst_36 = arith.constant dense<0xFF800000> : vector<8xf32>
    %99 = vector.multi_reduction <maximumf>, %98, %cst_36 [1] : vector<8x8xf32> to vector<8xf32>
    %100 = vector.shape_cast %99 : vector<8xf32> to vector<8x1xf32>
    %101 = vector.broadcast %100 : vector<8x1xf32> to vector<8x8xf32>
    %102 = arith.subf %98, %101 : vector<8x8xf32>
    %103 = math.exp %102 : vector<8x8xf32>
    %cst_37 = arith.constant dense<0.000000e+00> : vector<8xf32>
    %104 = vector.multi_reduction <add>, %103, %cst_37 [1] : vector<8x8xf32> to vector<8xf32>
    %105 = vector.shape_cast %104 : vector<8xf32> to vector<8x1xf32>
    %106 = tpu.reciprocal %105 {approx = true} : vector<8x1xf32> -> vector<8x1xf32>
    %107 = vector.broadcast %106 : vector<8x1xf32> to vector<8x8xf32>
    %108 = arith.mulf %103, %107 : vector<8x8xf32>
    %109 = arith.truncf %108 : vector<8x8xf32> to vector<8x8xbf16>
    %110 = vector.extract_strided_slice %44 {offsets = [0, 24], sizes = [8, 8], strides = [1, 1]} : vector<8x32xbf16> to vector<8x8xbf16>
    %cst_38 = arith.constant dense<0.000000e+00> : vector<8x8xf32>
    %111 = tpu.matmul %109, %110, %cst_38 {dimension_numbers = #tpu.dot_dimension_numbers<[1], [0], [0], [1], [0, 0, 1, 1], [], []>} : vector<8x8xbf16>, vector<8x8xbf16>, vector<8x8xf32> -> vector<8x8xf32>
    %c0_39 = arith.constant 0 : index
    %c24 = arith.constant 24 : index
    %112 = vector.load %arg16[%c0_39, %c24] : memref<8x32xf32, #tpu.memory_space<vmem>>, vector<8x8xf32>
    tpu.vector_store %arg16[%c0_39, %c24], %111 {strides = array<i32>} : memref<8x32xf32, #tpu.memory_space<vmem>>, vector<8x8xf32>,
    %c0_40 = arith.constant 0 : index
    %c0_41 = arith.constant 0 : index
    %113 = vector.load %arg16[%c0_40, %c0_41] : memref<8x32xf32, #tpu.memory_space<vmem>>, vector<8x32xf32>
    %114 = arith.truncf %113 : vector<8x32xf32> to vector<8x32xbf16>
    %cst_42 = arith.constant dense<0.000000e+00> : vector<8x32xf32>
    %115 = tpu.matmul %114, %41, %cst_42 {dimension_numbers = #tpu.dot_dimension_numbers<[1], [0], [0], [1], [0, 0, 1, 1], [], []>} : vector<8x32xbf16>, vector<32x32xbf16>, vector<8x32xf32> -> vector<8x32xf32>
    %116 = vector.broadcast %11 : vector<1x32xf32> to vector<8x32xf32>
    %117 = arith.addf %115, %116 : vector<8x32xf32>
    %118 = arith.addf %3, %117 : vector<8x32xf32>
    %cst_43 = arith.constant dense<0.000000e+00> : vector<8xf32>
    %119 = vector.multi_reduction <add>, %118, %cst_43 [1] : vector<8x32xf32> to vector<8xf32>
    %120 = vector.shape_cast %119 : vector<8xf32> to vector<8x1xf32>
    %cst_44 = arith.constant 3.200000e+01 : f32
    %121 = vector.broadcast %cst_44 : f32 to vector<8x1xf32>
    %122 = arith.divf %120, %121 : vector<8x1xf32>
    %123 = vector.broadcast %122 : vector<8x1xf32> to vector<8x32xf32>
    %124 = arith.subf %118, %123 : vector<8x32xf32>
    %125 = arith.mulf %124, %124 : vector<8x32xf32>
    %cst_45 = arith.constant dense<0.000000e+00> : vector<8xf32>
    %126 = vector.multi_reduction <add>, %125, %cst_45 [1] : vector<8x32xf32> to vector<8xf32>
    %127 = vector.shape_cast %126 : vector<8xf32> to vector<8x1xf32>
    %cst_46 = arith.constant 3.200000e+01 : f32
    %128 = vector.broadcast %cst_46 : f32 to vector<8x1xf32>
    %129 = arith.divf %127, %128 : vector<8x1xf32>
    %130 = vector.broadcast %122 : vector<8x1xf32> to vector<8x32xf32>
    %131 = arith.subf %118, %130 : vector<8x32xf32>
    %cst_47 = arith.constant 9.99999974E-6 : f32
    %132 = vector.broadcast %cst_47 : f32 to vector<8x1xf32>
    %133 = arith.addf %129, %132 : vector<8x1xf32>
    %134 = math.rsqrt %133 : vector<8x1xf32>
    %135 = vector.broadcast %134 : vector<8x1xf32> to vector<8x32xf32>
    %136 = arith.mulf %131, %135 : vector<8x32xf32>
    %137 = vector.broadcast %17 : vector<1x32xf32> to vector<8x32xf32>
    %138 = arith.mulf %136, %137 : vector<8x32xf32>
    %139 = vector.broadcast %18 : vector<1x32xf32> to vector<8x32xf32>
    %140 = arith.addf %138, %139 : vector<8x32xf32>
    %141 = arith.addf %140, %5 : vector<8x32xf32>
    %142 = arith.truncf %141 : vector<8x32xf32> to vector<8x32xbf16>
    %c0_48 = arith.constant 0 : index
    %c2 = arith.constant 2 : index
    %c0_49 = arith.constant 0 : index
    %c0_50 = arith.constant 0 : index
    %143 = vector.load %arg7[%c0_48, %c2, %c0_49, %c0_50] : memref<1x6x32x32xbf16, #tpu.memory_space<vmem>>, vector<1x1x32x32xbf16>
    %144 = vector.shape_cast %143 : vector<1x1x32x32xbf16> to vector<32x32xbf16>
    %cst_51 = arith.constant dense<0.000000e+00> : vector<8x32xf32>
    %145 = tpu.matmul %142, %144, %cst_51 {dimension_numbers = #tpu.dot_dimension_numbers<[1], [0], [0], [1], [0, 0, 1, 1], [], []>} : vector<8x32xbf16>, vector<32x32xbf16>, vector<8x32xf32> -> vector<8x32xf32>
    %146 = vector.broadcast %12 : vector<1x32xf32> to vector<8x32xf32>
    %147 = arith.addf %145, %146 : vector<8x32xf32>
    %c0_52 = arith.constant 0 : index
    %c0_53 = arith.constant 0 : index
    %c0_54 = arith.constant 0 : index
    %148 = vector.load %arg3[%c0_52, %c0_53, %c0_54] : memref<1x16x32xbf16, #tpu.memory_space<vmem>>, vector<1x16x32xbf16>
    %149 = vector.shape_cast %148 : vector<1x16x32xbf16> to vector<16x32xbf16>
    %c0_55 = arith.constant 0 : index
    %c3 = arith.constant 3 : index
    %c0_56 = arith.constant 0 : index
    %c0_57 = arith.constant 0 : index
    %150 = vector.load %arg7[%c0_55, %c3, %c0_56, %c0_57] : memref<1x6x32x32xbf16, #tpu.memory_space<vmem>>, vector<1x1x32x32xbf16>
    %151 = vector.shape_cast %150 : vector<1x1x32x32xbf16> to vector<32x32xbf16>
    %cst_58 = arith.constant dense<0.000000e+00> : vector<16x32xf32>
    %152 = tpu.matmul %149, %151, %cst_58 {dimension_numbers = #tpu.dot_dimension_numbers<[1], [0], [0], [1], [0, 0, 1, 1], [], []>} : vector<16x32xbf16>, vector<32x32xbf16>, vector<16x32xf32> -> vector<16x32xf32>
    %153 = vector.broadcast %13 : vector<1x32xf32> to vector<16x32xf32>
    %154 = arith.addf %152, %153 : vector<16x32xf32>
    %c0_59 = arith.constant 0 : index
    %c0_60 = arith.constant 0 : index
    %c0_61 = arith.constant 0 : index
    %155 = vector.load %arg4[%c0_59, %c0_60, %c0_61] : memref<1x16x32xbf16, #tpu.memory_space<vmem>>, vector<1x16x32xbf16>
    %156 = vector.shape_cast %155 : vector<1x16x32xbf16> to vector<16x32xbf16>
    %c0_62 = arith.constant 0 : index
    %c4 = arith.constant 4 : index
    %c0_63 = arith.constant 0 : index
    %c0_64 = arith.constant 0 : index
    %157 = vector.load %arg7[%c0_62, %c4, %c0_63, %c0_64] : memref<1x6x32x32xbf16, #tpu.memory_space<vmem>>, vector<1x1x32x32xbf16>
    %158 = vector.shape_cast %157 : vector<1x1x32x32xbf16> to vector<32x32xbf16>
    %cst_65 = arith.constant dense<0.000000e+00> : vector<16x32xf32>
    %159 = tpu.matmul %156, %158, %cst_65 {dimension_numbers = #tpu.dot_dimension_numbers<[1], [0], [0], [1], [0, 0, 1, 1], [], []>} : vector<16x32xbf16>, vector<32x32xbf16>, vector<16x32xf32> -> vector<16x32xf32>
    %160 = vector.broadcast %14 : vector<1x32xf32> to vector<16x32xf32>
    %161 = arith.addf %159, %160 : vector<16x32xf32>
    %c0_66 = arith.constant 0 : index
    %c5 = arith.constant 5 : index
    %c0_67 = arith.constant 0 : index
    %c0_68 = arith.constant 0 : index
    %162 = vector.load %arg7[%c0_66, %c5, %c0_67, %c0_68] : memref<1x6x32x32xbf16, #tpu.memory_space<vmem>>, vector<1x1x32x32xbf16>
    %163 = vector.shape_cast %162 : vector<1x1x32x32xbf16> to vector<32x32xbf16>
    %164 = arith.truncf %147 : vector<8x32xf32> to vector<8x32xbf16>
    %165 = arith.truncf %154 : vector<16x32xf32> to vector<16x32xbf16>
    %166 = arith.truncf %161 : vector<16x32xf32> to vector<16x32xbf16>
    %167 = vector.extract_strided_slice %164 {offsets = [0, 0], sizes = [8, 8], strides = [1, 1]} : vector<8x32xbf16> to vector<8x8xbf16>
    %168 = vector.extract_strided_slice %165 {offsets = [0, 0], sizes = [16, 8], strides = [1, 1]} : vector<16x32xbf16> to vector<16x8xbf16>
    %cst_69 = arith.constant dense<0.000000e+00> : vector<8x16xf32>
    %169 = tpu.matmul %167, %168, %cst_69 {dimension_numbers = #tpu.dot_dimension_numbers<[1], [1], [0], [0], [0, 0, 1, 0], [], []>} : vector<8x8xbf16>, vector<16x8xbf16>, vector<8x16xf32> -> vector<8x16xf32>
    %cst_70 = arith.constant dense<0xFF800000> : vector<8xf32>
    %170 = vector.multi_reduction <maximumf>, %169, %cst_70 [1] : vector<8x16xf32> to vector<8xf32>
    %171 = vector.shape_cast %170 : vector<8xf32> to vector<8x1xf32>
    %172 = vector.broadcast %171 : vector<8x1xf32> to vector<8x16xf32>
    %173 = arith.subf %169, %172 : vector<8x16xf32>
    %174 = math.exp %173 : vector<8x16xf32>
    %cst_71 = arith.constant dense<0.000000e+00> : vector<8xf32>
    %175 = vector.multi_reduction <add>, %174, %cst_71 [1] : vector<8x16xf32> to vector<8xf32>
    %176 = vector.shape_cast %175 : vector<8xf32> to vector<8x1xf32>
    %177 = tpu.reciprocal %176 {approx = true} : vector<8x1xf32> -> vector<8x1xf32>
    %178 = vector.broadcast %177 : vector<8x1xf32> to vector<8x16xf32>
    %179 = arith.mulf %174, %178 : vector<8x16xf32>
    %180 = arith.truncf %179 : vector<8x16xf32> to vector<8x16xbf16>
    %181 = vector.extract_strided_slice %166 {offsets = [0, 0], sizes = [16, 8], strides = [1, 1]} : vector<16x32xbf16> to vector<16x8xbf16>
    %cst_72 = arith.constant dense<0.000000e+00> : vector<8x8xf32>
    %182 = tpu.matmul %180, %181, %cst_72 {dimension_numbers = #tpu.dot_dimension_numbers<[1], [0], [0], [1], [0, 0, 1, 1], [], []>} : vector<8x16xbf16>, vector<16x8xbf16>, vector<8x8xf32> -> vector<8x8xf32>
    %c0_73 = arith.constant 0 : index
    %c0_74 = arith.constant 0 : index
    %183 = vector.load %arg16[%c0_73, %c0_74] : memref<8x32xf32, #tpu.memory_space<vmem>>, vector<8x8xf32>
    tpu.vector_store %arg16[%c0_73, %c0_74], %182 {strides = array<i32>} : memref<8x32xf32, #tpu.memory_space<vmem>>, vector<8x8xf32>,
    %184 = vector.extract_strided_slice %164 {offsets = [0, 8], sizes = [8, 8], strides = [1, 1]} : vector<8x32xbf16> to vector<8x8xbf16>
    %185 = vector.extract_strided_slice %165 {offsets = [0, 8], sizes = [16, 8], strides = [1, 1]} : vector<16x32xbf16> to vector<16x8xbf16>
    %cst_75 = arith.constant dense<0.000000e+00> : vector<8x16xf32>
    %186 = tpu.matmul %184, %185, %cst_75 {dimension_numbers = #tpu.dot_dimension_numbers<[1], [1], [0], [0], [0, 0, 1, 0], [], []>} : vector<8x8xbf16>, vector<16x8xbf16>, vector<8x16xf32> -> vector<8x16xf32>
    %cst_76 = arith.constant dense<0xFF800000> : vector<8xf32>
    %187 = vector.multi_reduction <maximumf>, %186, %cst_76 [1] : vector<8x16xf32> to vector<8xf32>
    %188 = vector.shape_cast %187 : vector<8xf32> to vector<8x1xf32>
    %189 = vector.broadcast %188 : vector<8x1xf32> to vector<8x16xf32>
    %190 = arith.subf %186, %189 : vector<8x16xf32>
    %191 = math.exp %190 : vector<8x16xf32>
    %cst_77 = arith.constant dense<0.000000e+00> : vector<8xf32>
    %192 = vector.multi_reduction <add>, %191, %cst_77 [1] : vector<8x16xf32> to vector<8xf32>
    %193 = vector.shape_cast %192 : vector<8xf32> to vector<8x1xf32>
    %194 = tpu.reciprocal %193 {approx = true} : vector<8x1xf32> -> vector<8x1xf32>
    %195 = vector.broadcast %194 : vector<8x1xf32> to vector<8x16xf32>
    %196 = arith.mulf %191, %195 : vector<8x16xf32>
    %197 = arith.truncf %196 : vector<8x16xf32> to vector<8x16xbf16>
    %198 = vector.extract_strided_slice %166 {offsets = [0, 8], sizes = [16, 8], strides = [1, 1]} : vector<16x32xbf16> to vector<16x8xbf16>
    %cst_78 = arith.constant dense<0.000000e+00> : vector<8x8xf32>
    %199 = tpu.matmul %197, %198, %cst_78 {dimension_numbers = #tpu.dot_dimension_numbers<[1], [0], [0], [1], [0, 0, 1, 1], [], []>} : vector<8x16xbf16>, vector<16x8xbf16>, vector<8x8xf32> -> vector<8x8xf32>
    %c0_79 = arith.constant 0 : index
    %c8_80 = arith.constant 8 : index
    %200 = vector.load %arg16[%c0_79, %c8_80] : memref<8x32xf32, #tpu.memory_space<vmem>>, vector<8x8xf32>
    tpu.vector_store %arg16[%c0_79, %c8_80], %199 {strides = array<i32>} : memref<8x32xf32, #tpu.memory_space<vmem>>, vector<8x8xf32>,
    %201 = vector.extract_strided_slice %164 {offsets = [0, 16], sizes = [8, 8], strides = [1, 1]} : vector<8x32xbf16> to vector<8x8xbf16>
    %202 = vector.extract_strided_slice %165 {offsets = [0, 16], sizes = [16, 8], strides = [1, 1]} : vector<16x32xbf16> to vector<16x8xbf16>
    %cst_81 = arith.constant dense<0.000000e+00> : vector<8x16xf32>
    %203 = tpu.matmul %201, %202, %cst_81 {dimension_numbers = #tpu.dot_dimension_numbers<[1], [1], [0], [0], [0, 0, 1, 0], [], []>} : vector<8x8xbf16>, vector<16x8xbf16>, vector<8x16xf32> -> vector<8x16xf32>
    %cst_82 = arith.constant dense<0xFF800000> : vector<8xf32>
    %204 = vector.multi_reduction <maximumf>, %203, %cst_82 [1] : vector<8x16xf32> to vector<8xf32>
    %205 = vector.shape_cast %204 : vector<8xf32> to vector<8x1xf32>
    %206 = vector.broadcast %205 : vector<8x1xf32> to vector<8x16xf32>
    %207 = arith.subf %203, %206 : vector<8x16xf32>
    %208 = math.exp %207 : vector<8x16xf32>
    %cst_83 = arith.constant dense<0.000000e+00> : vector<8xf32>
    %209 = vector.multi_reduction <add>, %208, %cst_83 [1] : vector<8x16xf32> to vector<8xf32>
    %210 = vector.shape_cast %209 : vector<8xf32> to vector<8x1xf32>
    %211 = tpu.reciprocal %210 {approx = true} : vector<8x1xf32> -> vector<8x1xf32>
    %212 = vector.broadcast %211 : vector<8x1xf32> to vector<8x16xf32>
    %213 = arith.mulf %208, %212 : vector<8x16xf32>
    %214 = arith.truncf %213 : vector<8x16xf32> to vector<8x16xbf16>
    %215 = vector.extract_strided_slice %166 {offsets = [0, 16], sizes = [16, 8], strides = [1, 1]} : vector<16x32xbf16> to vector<16x8xbf16>
    %cst_84 = arith.constant dense<0.000000e+00> : vector<8x8xf32>
    %216 = tpu.matmul %214, %215, %cst_84 {dimension_numbers = #tpu.dot_dimension_numbers<[1], [0], [0], [1], [0, 0, 1, 1], [], []>} : vector<8x16xbf16>, vector<16x8xbf16>, vector<8x8xf32> -> vector<8x8xf32>
    %c0_85 = arith.constant 0 : index
    %c16_86 = arith.constant 16 : index
    %217 = vector.load %arg16[%c0_85, %c16_86] : memref<8x32xf32, #tpu.memory_space<vmem>>, vector<8x8xf32>
    tpu.vector_store %arg16[%c0_85, %c16_86], %216 {strides = array<i32>} : memref<8x32xf32, #tpu.memory_space<vmem>>, vector<8x8xf32>,
    %218 = vector.extract_strided_slice %164 {offsets = [0, 24], sizes = [8, 8], strides = [1, 1]} : vector<8x32xbf16> to vector<8x8xbf16>
    %219 = vector.extract_strided_slice %165 {offsets = [0, 24], sizes = [16, 8], strides = [1, 1]} : vector<16x32xbf16> to vector<16x8xbf16>
    %cst_87 = arith.constant dense<0.000000e+00> : vector<8x16xf32>
    %220 = tpu.matmul %218, %219, %cst_87 {dimension_numbers = #tpu.dot_dimension_numbers<[1], [1], [0], [0], [0, 0, 1, 0], [], []>} : vector<8x8xbf16>, vector<16x8xbf16>, vector<8x16xf32> -> vector<8x16xf32>
    %cst_88 = arith.constant dense<0xFF800000> : vector<8xf32>
    %221 = vector.multi_reduction <maximumf>, %220, %cst_88 [1] : vector<8x16xf32> to vector<8xf32>
    %222 = vector.shape_cast %221 : vector<8xf32> to vector<8x1xf32>
    %223 = vector.broadcast %222 : vector<8x1xf32> to vector<8x16xf32>
    %224 = arith.subf %220, %223 : vector<8x16xf32>
    %225 = math.exp %224 : vector<8x16xf32>
    %cst_89 = arith.constant dense<0.000000e+00> : vector<8xf32>
    %226 = vector.multi_reduction <add>, %225, %cst_89 [1] : vector<8x16xf32> to vector<8xf32>
    %227 = vector.shape_cast %226 : vector<8xf32> to vector<8x1xf32>
    %228 = tpu.reciprocal %227 {approx = true} : vector<8x1xf32> -> vector<8x1xf32>
    %229 = vector.broadcast %228 : vector<8x1xf32> to vector<8x16xf32>
    %230 = arith.mulf %225, %229 : vector<8x16xf32>
    %231 = arith.truncf %230 : vector<8x16xf32> to vector<8x16xbf16>
    %232 = vector.extract_strided_slice %166 {offsets = [0, 24], sizes = [16, 8], strides = [1, 1]} : vector<16x32xbf16> to vector<16x8xbf16>
    %cst_90 = arith.constant dense<0.000000e+00> : vector<8x8xf32>
    %233 = tpu.matmul %231, %232, %cst_90 {dimension_numbers = #tpu.dot_dimension_numbers<[1], [0], [0], [1], [0, 0, 1, 1], [], []>} : vector<8x16xbf16>, vector<16x8xbf16>, vector<8x8xf32> -> vector<8x8xf32>
    %c0_91 = arith.constant 0 : index
    %c24_92 = arith.constant 24 : index
    %234 = vector.load %arg16[%c0_91, %c24_92] : memref<8x32xf32, #tpu.memory_space<vmem>>, vector<8x8xf32>
    tpu.vector_store %arg16[%c0_91, %c24_92], %233 {strides = array<i32>} : memref<8x32xf32, #tpu.memory_space<vmem>>, vector<8x8xf32>,
    %c0_93 = arith.constant 0 : index
    %c0_94 = arith.constant 0 : index
    %235 = vector.load %arg16[%c0_93, %c0_94] : memref<8x32xf32, #tpu.memory_space<vmem>>, vector<8x32xf32>
    %236 = arith.truncf %235 : vector<8x32xf32> to vector<8x32xbf16>
    %cst_95 = arith.constant dense<0.000000e+00> : vector<8x32xf32>
    %237 = tpu.matmul %236, %163, %cst_95 {dimension_numbers = #tpu.dot_dimension_numbers<[1], [0], [0], [1], [0, 0, 1, 1], [], []>} : vector<8x32xbf16>, vector<32x32xbf16>, vector<8x32xf32> -> vector<8x32xf32>
    %238 = vector.broadcast %15 : vector<1x32xf32> to vector<8x32xf32>
    %239 = arith.addf %237, %238 : vector<8x32xf32>
    %240 = arith.addf %140, %239 : vector<8x32xf32>
    %cst_96 = arith.constant dense<0.000000e+00> : vector<8xf32>
    %241 = vector.multi_reduction <add>, %240, %cst_96 [1] : vector<8x32xf32> to vector<8xf32>
    %242 = vector.shape_cast %241 : vector<8xf32> to vector<8x1xf32>
    %cst_97 = arith.constant 3.200000e+01 : f32
    %243 = vector.broadcast %cst_97 : f32 to vector<8x1xf32>
    %244 = arith.divf %242, %243 : vector<8x1xf32>
    %245 = vector.broadcast %244 : vector<8x1xf32> to vector<8x32xf32>
    %246 = arith.subf %240, %245 : vector<8x32xf32>
    %247 = arith.mulf %246, %246 : vector<8x32xf32>
    %cst_98 = arith.constant dense<0.000000e+00> : vector<8xf32>
    %248 = vector.multi_reduction <add>, %247, %cst_98 [1] : vector<8x32xf32> to vector<8xf32>
    %249 = vector.shape_cast %248 : vector<8xf32> to vector<8x1xf32>
    %cst_99 = arith.constant 3.200000e+01 : f32
    %250 = vector.broadcast %cst_99 : f32 to vector<8x1xf32>
    %251 = arith.divf %249, %250 : vector<8x1xf32>
    %252 = vector.broadcast %244 : vector<8x1xf32> to vector<8x32xf32>
    %253 = arith.subf %240, %252 : vector<8x32xf32>
    %cst_100 = arith.constant 9.99999974E-6 : f32
    %254 = vector.broadcast %cst_100 : f32 to vector<8x1xf32>
    %255 = arith.addf %251, %254 : vector<8x1xf32>
    %256 = math.rsqrt %255 : vector<8x1xf32>
    %257 = vector.broadcast %256 : vector<8x1xf32> to vector<8x32xf32>
    %258 = arith.mulf %253, %257 : vector<8x32xf32>
    %259 = vector.broadcast %19 : vector<1x32xf32> to vector<8x32xf32>
    %260 = arith.mulf %258, %259 : vector<8x32xf32>
    %261 = vector.broadcast %20 : vector<1x32xf32> to vector<8x32xf32>
    %262 = arith.addf %260, %261 : vector<8x32xf32>
    %263 = arith.truncf %262 : vector<8x32xf32> to vector<8x32xbf16>
    %c0_101 = arith.constant 0 : index
    %c0_102 = arith.constant 0 : index
    %c0_103 = arith.constant 0 : index
    %264 = vector.load %arg8[%c0_101, %c0_102, %c0_103] : memref<1x32x64xbf16, #tpu.memory_space<vmem>>, vector<1x32x64xbf16>
    %265 = vector.shape_cast %264 : vector<1x32x64xbf16> to vector<32x64xbf16>
    %cst_104 = arith.constant dense<0.000000e+00> : vector<8x64xf32>
    %266 = tpu.matmul %263, %265, %cst_104 {dimension_numbers = #tpu.dot_dimension_numbers<[1], [0], [0], [1], [0, 0, 1, 1], [], []>} : vector<8x32xbf16>, vector<32x64xbf16>, vector<8x64xf32> -> vector<8x64xf32>
    %c0_105 = arith.constant 0 : index
    %c0_106 = arith.constant 0 : index
    %c0_107 = arith.constant 0 : index
    %267 = vector.load %arg11[%c0_105, %c0_106, %c0_107] : memref<1x1x64xf32, #tpu.memory_space<vmem>>, vector<1x1x64xf32>
    %268 = vector.shape_cast %267 : vector<1x1x64xf32> to vector<1x64xf32>
    %269 = vector.broadcast %268 : vector<1x64xf32> to vector<8x64xf32>
    %270 = arith.addf %266, %269 : vector<8x64xf32>
    %cst_108 = arith.constant 0.000000e+00 : f32
    %271 = vector.broadcast %cst_108 : f32 to vector<8x64xf32>
    %272 = arith.maximumf %270, %271 : vector<8x64xf32>
    %273 = arith.truncf %272 : vector<8x64xf32> to vector<8x64xbf16>
    %c0_109 = arith.constant 0 : index
    %c0_110 = arith.constant 0 : index
    %c0_111 = arith.constant 0 : index
    %274 = vector.load %arg9[%c0_109, %c0_110, %c0_111] : memref<1x64x32xbf16, #tpu.memory_space<vmem>>, vector<1x64x32xbf16>
    %275 = vector.shape_cast %274 : vector<1x64x32xbf16> to vector<64x32xbf16>
    %cst_112 = arith.constant dense<0.000000e+00> : vector<8x32xf32>
    %276 = tpu.matmul %273, %275, %cst_112 {dimension_numbers = #tpu.dot_dimension_numbers<[1], [0], [0], [1], [0, 0, 1, 1], [], []>} : vector<8x64xbf16>, vector<64x32xbf16>, vector<8x32xf32> -> vector<8x32xf32>
    %277 = vector.broadcast %16 : vector<1x32xf32> to vector<8x32xf32>
    %278 = arith.addf %276, %277 : vector<8x32xf32>
    %279 = arith.addf %262, %278 : vector<8x32xf32>
    %cst_113 = arith.constant dense<0.000000e+00> : vector<8xf32>
    %280 = vector.multi_reduction <add>, %279, %cst_113 [1] : vector<8x32xf32> to vector<8xf32>
    %281 = vector.shape_cast %280 : vector<8xf32> to vector<8x1xf32>
    %cst_114 = arith.constant 3.200000e+01 : f32
    %282 = vector.broadcast %cst_114 : f32 to vector<8x1xf32>
    %283 = arith.divf %281, %282 : vector<8x1xf32>
    %284 = vector.broadcast %283 : vector<8x1xf32> to vector<8x32xf32>
    %285 = arith.subf %279, %284 : vector<8x32xf32>
    %286 = arith.mulf %285, %285 : vector<8x32xf32>
    %cst_115 = arith.constant dense<0.000000e+00> : vector<8xf32>
    %287 = vector.multi_reduction <add>, %286, %cst_115 [1] : vector<8x32xf32> to vector<8xf32>
    %288 = vector.shape_cast %287 : vector<8xf32> to vector<8x1xf32>
    %cst_116 = arith.constant 3.200000e+01 : f32
    %289 = vector.broadcast %cst_116 : f32 to vector<8x1xf32>
    %290 = arith.divf %288, %289 : vector<8x1xf32>
    %291 = vector.broadcast %283 : vector<8x1xf32> to vector<8x32xf32>
    %292 = arith.subf %279, %291 : vector<8x32xf32>
    %cst_117 = arith.constant 9.99999974E-6 : f32
    %293 = vector.broadcast %cst_117 : f32 to vector<8x1xf32>
    %294 = arith.addf %290, %293 : vector<8x1xf32>
    %295 = math.rsqrt %294 : vector<8x1xf32>
    %296 = vector.broadcast %295 : vector<8x1xf32> to vector<8x32xf32>
    %297 = arith.mulf %292, %296 : vector<8x32xf32>
    %298 = vector.broadcast %21 : vector<1x32xf32> to vector<8x32xf32>
    %299 = arith.mulf %297, %298 : vector<8x32xf32>
    %300 = vector.broadcast %22 : vector<1x32xf32> to vector<8x32xf32>
    %301 = arith.addf %299, %300 : vector<8x32xf32>
    %c0_118 = arith.constant 0 : index
    %c0_119 = arith.constant 0 : index
    %302 = vector.load %arg15[%c0_118, %c0_119] : memref<8x32xf32, #tpu.memory_space<vmem>>, vector<8x32xf32>
    tpu.vector_store %arg15[%c0_118, %c0_119], %301 {strides = array<i32>} : memref<8x32xf32, #tpu.memory_space<vmem>>, vector<8x32xf32>,
    %c1_i32 = arith.constant 1 : i32
    %303 = arith.cmpi eq, %arg1, %c1_i32 : i32
    %304 = arith.extui %303 : i1 to i32
    %c0_i32_120 = arith.constant 0 : i32
    %305 = arith.cmpi ne, %304, %c0_i32_120 : i32
    scf.if %305 {
      %c0_121 = arith.constant 0 : index
      %c0_122 = arith.constant 0 : index
      %306 = vector.load %arg12[%c0_121, %c0_122] : memref<1x32xf32, #tpu.memory_space<vmem>>, vector<1x32xf32>
      %c0_123 = arith.constant 0 : index
      %c0_124 = arith.constant 0 : index
      %307 = vector.load %arg13[%c0_123, %c0_124] : memref<1x32xf32, #tpu.memory_space<vmem>>, vector<1x32xf32>
      %cst_125 = arith.constant dense<0.000000e+00> : vector<8xf32>
      %308 = vector.multi_reduction <add>, %301, %cst_125 [1] : vector<8x32xf32> to vector<8xf32>
      %309 = vector.shape_cast %308 : vector<8xf32> to vector<8x1xf32>
      %cst_126 = arith.constant 3.200000e+01 : f32
      %310 = vector.broadcast %cst_126 : f32 to vector<8x1xf32>
      %311 = arith.divf %309, %310 : vector<8x1xf32>
      %312 = vector.broadcast %311 : vector<8x1xf32> to vector<8x32xf32>
      %313 = arith.subf %301, %312 : vector<8x32xf32>
      %314 = arith.mulf %313, %313 : vector<8x32xf32>
      %cst_127 = arith.constant dense<0.000000e+00> : vector<8xf32>
      %315 = vector.multi_reduction <add>, %314, %cst_127 [1] : vector<8x32xf32> to vector<8xf32>
      %316 = vector.shape_cast %315 : vector<8xf32> to vector<8x1xf32>
      %cst_128 = arith.constant 3.200000e+01 : f32
      %317 = vector.broadcast %cst_128 : f32 to vector<8x1xf32>
      %318 = arith.divf %316, %317 : vector<8x1xf32>
      %319 = vector.broadcast %311 : vector<8x1xf32> to vector<8x32xf32>
      %320 = arith.subf %301, %319 : vector<8x32xf32>
      %cst_129 = arith.constant 9.99999974E-6 : f32
      %321 = vector.broadcast %cst_129 : f32 to vector<8x1xf32>
      %322 = arith.addf %318, %321 : vector<8x1xf32>
      %323 = math.rsqrt %322 : vector<8x1xf32>
      %324 = vector.broadcast %323 : vector<8x1xf32> to vector<8x32xf32>
      %325 = arith.mulf %320, %324 : vector<8x32xf32>
      %326 = vector.broadcast %306 : vector<1x32xf32> to vector<8x32xf32>
      %327 = arith.mulf %325, %326 : vector<8x32xf32>
      %328 = vector.broadcast %307 : vector<1x32xf32> to vector<8x32xf32>
      %329 = arith.addf %327, %328 : vector<8x32xf32>
      %c0_130 = arith.constant 0 : index
      %c0_131 = arith.constant 0 : index
      %c0_132 = arith.constant 0 : index
      %330 = vector.load %arg14[%c0_130, %c0_131, %c0_132] : memref<1x8x32xf32, #tpu.memory_space<vmem>>, vector<1x8x32xf32>
      %331 = vector.shape_cast %330 : vector<1x8x32xf32> to vector<8x32xf32>
      %332 = vector.shape_cast %329 : vector<8x32xf32> to vector<1x8x32xf32>
      tpu.vector_store %arg14[%c0_130, %c0_131, %c0_132], %332 {strides = array<i32>} : memref<1x8x32xf32, #tpu.memory_space<vmem>>, vector<1x8x32xf32>,
    } else {
    }
    return
  }
  func.func @transform_0(%arg0: i32, %arg1: i32) -> (i32, i32, i32) {
    %c0_i32 = arith.constant 0 : i32
    %c0_i32_0 = arith.constant 0 : i32
    %c0_i32_1 = arith.constant 0 : i32
    return %arg0, %c0_i32, %c0_i32_0 : i32, i32, i32
  }
  func.func @transform_1(%arg0: i32, %arg1: i32) -> (i32, i32, i32) {
    %c0_i32 = arith.constant 0 : i32
    %c0_i32_0 = arith.constant 0 : i32
    %c0_i32_1 = arith.constant 0 : i32
    return %arg0, %c0_i32, %c0_i32_0 : i32, i32, i32
  }
  func.func @transform_2(%arg0: i32, %arg1: i32) -> (i32, i32, i32) {
    %c0_i32 = arith.constant 0 : i32
    %c0_i32_0 = arith.constant 0 : i32
    %c0_i32_1 = arith.constant 0 : i32
    return %arg0, %c0_i32, %c0_i32_0 : i32, i32, i32
  }
  func.func @transform_3(%arg0: i32, %arg1: i32) -> (i32, i32, i32) {
    %c0_i32 = arith.constant 0 : i32
    %c0_i32_0 = arith.constant 0 : i32
    %c0_i32_1 = arith.constant 0 : i32
    return %arg0, %c0_i32, %c0_i32_0 : i32, i32, i32
  }
  func.func @transform_4(%arg0: i32, %arg1: i32) -> (i32, i32, i32) {
    %c0_i32 = arith.constant 0 : i32
    %c0_i32_0 = arith.constant 0 : i32
    %c0_i32_1 = arith.constant 0 : i32
    return %arg1, %c0_i32, %c0_i32_0 : i32, i32, i32
  }
  func.func @transform_5(%arg0: i32, %arg1: i32) -> (i32, i32, i32, i32) {
    %c0_i32 = arith.constant 0 : i32
    %c0_i32_0 = arith.constant 0 : i32
    %c0_i32_1 = arith.constant 0 : i32
    %c0_i32_2 = arith.constant 0 : i32
    return %arg1, %c0_i32, %c0_i32_0, %c0_i32_1 : i32, i32, i32, i32
  }
  func.func @transform_6(%arg0: i32, %arg1: i32) -> (i32, i32, i32) {
    %c0_i32 = arith.constant 0 : i32
    %c0_i32_0 = arith.constant 0 : i32
    %c0_i32_1 = arith.constant 0 : i32
    return %arg1, %c0_i32, %c0_i32_0 : i32, i32, i32
  }
  func.func @transform_7(%arg0: i32, %arg1: i32) -> (i32, i32, i32) {
    %c0_i32 = arith.constant 0 : i32
    %c0_i32_0 = arith.constant 0 : i32
    %c0_i32_1 = arith.constant 0 : i32
    return %arg1, %c0_i32, %c0_i32_0 : i32, i32, i32
  }
  func.func @transform_8(%arg0: i32, %arg1: i32) -> (i32, i32, i32) {
    %c0_i32 = arith.constant 0 : i32
    %c0_i32_0 = arith.constant 0 : i32
    %c0_i32_1 = arith.constant 0 : i32
    return %arg1, %c0_i32, %c0_i32_0 : i32, i32, i32
  }
  func.func @transform_9(%arg0: i32, %arg1: i32) -> (i32, i32, i32) {
    %c0_i32 = arith.constant 0 : i32
    %c0_i32_0 = arith.constant 0 : i32
    %c0_i32_1 = arith.constant 0 : i32
    return %arg1, %c0_i32, %c0_i32_0 : i32, i32, i32
  }
  func.func @transform_10(%arg0: i32, %arg1: i32) -> (i32, i32) {
    %c0_i32 = arith.constant 0 : i32
    %c0_i32_0 = arith.constant 0 : i32
    %c0_i32_1 = arith.constant 0 : i32
    return %c0_i32, %c0_i32_0 : i32, i32
  }
  func.func @transform_11(%arg0: i32, %arg1: i32) -> (i32, i32) {
    %c0_i32 = arith.constant 0 : i32
    %c0_i32_0 = arith.constant 0 : i32
    %c0_i32_1 = arith.constant 0 : i32
    return %c0_i32, %c0_i32_0 : i32, i32
  }
  func.func @transform_12(%arg0: i32, %arg1: i32) -> (i32, i32, i32) {
    %c0_i32 = arith.constant 0 : i32
    %c0_i32_0 = arith.constant 0 : i32
    %c0_i32_1 = arith.constant 0 : i32
    return %arg0, %c0_i32, %c0_i32_0 : i32, i32, i32
  }
}

</mosaic_0001>

<llo_original>
// kernel: transformer_decoder_forward.1
$region0: #{transformer_decoder_forward.1}
  #allocation0 [shape = 'u32[]', space=smem, size = 0x4, offset = 0x4, fixed_abs, tag = 'smem constant byte address 0x4 - core index']
  #allocation1 [shape = 'u32[144,128]{1,0:T(1,128)}', space=vmem, size = 0x12000, scoped, tag = 'internal scratch']
  #allocation2 [shape = 'f32[8,32]{1,0:T(8,128)}', space=vmem, size = 0x1000, scoped, tag = 'scratch operand']
  #allocation3 [shape = 'f32[8,32]{1,0:T(8,128)}', space=vmem, size = 0x1000, scoped, tag = 'scratch operand']
  %s0 = inlined_call_operand.vmem [shape: f32[2,8,32], index: 0, kind: input, shape index: {}]
  %s1 = inlined_call_operand.vmem [shape: bf16[2,16,32], index: 1, kind: input, shape index: {}]
  %s2 = inlined_call_operand.vmem [shape: bf16[2,16,32], index: 2, kind: input, shape index: {}]
  %s3 = inlined_call_operand.vmem [shape: f32[2,8,32], index: 3, kind: input, shape index: {}]
  %s4 = inlined_call_operand.vmem [shape: bf16[2,32,64], index: 4, kind: input, shape index: {}]
  %s5 = inlined_call_operand.vmem [shape: bf16[2,6,32,32], index: 5, kind: input, shape index: {}]
  %s6 = inlined_call_operand.vmem [shape: bf16[2,32,64], index: 6, kind: input, shape index: {}]
  %s7 = inlined_call_operand.vmem [shape: bf16[2,64,32], index: 7, kind: input, shape index: {}]
  %s8 = inlined_call_operand.hbm [shape: f32[2,16,32], index: 8, kind: input, shape index: {}]
  %s9 = inlined_call_operand.vmem [shape: f32[2,1,64], index: 9, kind: input, shape index: {}]
  %s10 = inlined_call_operand.vmem [shape: f32[1,32], index: 10, kind: input, shape index: {}]
  %s11 = inlined_call_operand.vmem [shape: f32[1,32], index: 11, kind: input, shape index: {}]
  %s12 = inlined_call_operand.vmem [shape: f32[2,8,32], index: 12, kind: output, shape index: {}]
  %s13 = sld [smem:[#allocation0]]
  $region93: #{transformer_decoder_forward.1} parent=0
    _
  %s15 = ssub.s32 1, %s13
  %s16 = scalar_select 0, %s15, %s13
  $region1: #{transformer_decoder_forward.1} parent=0
    #allocation4 [shape = 'u8[16384]{0}', space=vmem, size = 0x4000, scoped, tag = 'input window, operand 8']
    #allocation5 [shape = 's32[2]{0}', space=sflag, size = 0x8, scoped, tag = 'scoped memory for transformer_decoder_forward.1']
    %17 = vsyncpa [#allocation5], 0
    %s18 = scalar_lea.sflag [#allocation5], 1
    %19 = vsyncpa %s18, 0
    loop: start=0, step=1, limit=6
    $region2: #{transformer_decoder_forward.1} parent=1 // loop_pre_header
      _
    $region3: #{transformer_decoder_forward.1} parent=1 // loop_header
      %s21 = sphi 0, %s25
      %p22 = scmp.ge.s32.totalorder %s21, 6
      %s28 = sphi 0, %s40
      %s29 = sphi 0, %s36
      %s30 = sphi 0, %s28
      %s31 = sphi 0, %s29
      %s32 = sphi 0, %s30
      %s33 = sphi 0, %s31
      %s43 = sphi 0, %s45
      %s46 = sphi 0, %s43
      %s47 = sphi 0, %s46
      %s63 = sphi 0, %s47
      %s69 = sphi 0, %s71
      %s72 = sphi 0, %s69
      %s73 = sphi 0, %s72
      %s89 = sphi 0, %s73
      %s95 = sphi 0, %s97
      %s98 = sphi 0, %s95
      %s99 = sphi 0, %s98
      %s115 = sphi 0, %s99
      %s121 = sphi 0, %s123
      %s124 = sphi 0, %s121
      %s125 = sphi 0, %s124
      %s141 = sphi 0, %s125
      %s147 = sphi 0, %s149
      %s150 = sphi 0, %s147
      %s151 = sphi 0, %s150
      %s167 = sphi 0, %s151
      %s173 = sphi 0, %s175
      %s176 = sphi 0, %s173
      %s177 = sphi 0, %s176
      %s193 = sphi 0, %s177
      %s199 = sphi 0, %s201
      %s202 = sphi 0, %s199
      %s203 = sphi 0, %s202
      %s219 = sphi 0, %s203
      %s225 = sphi 0, %s227
      %s228 = sphi 0, %s225
      %s229 = sphi 0, %s228
      %s245 = sphi 0, %s229
      %s251 = sphi 0, %s253
      %s254 = sphi 0, %s251
      %s255 = sphi 0, %s254
      %s271 = sphi 0, %s255
      %s277 = sphi 0, %s279
      %s280 = sphi 0, %s277
      %s281 = sphi 0, %s280
      %s297 = sphi 0, %s281
      %s301 = sphi 0, %s301
      %s303 = sphi 0, %s301
      %s304 = sphi 0, %s303
      %s318 = sphi 0, %s304
      %s322 = sphi 0, %s322
      %s324 = sphi 0, %s322
      %s325 = sphi 0, %s324
      %s339 = sphi 0, %s325
      %s345 = sphi 0, %s347
      %s348 = sphi 0, %s345
      %s349 = sphi 0, %s348
      %s365 = sphi 0, %s349
    $region4: #{transformer_decoder_forward.1} parent=1 // loop_header_branch
      %24 = sbr.rel (%p22) target = $region8
    $region5: #{transformer_decoder_forward.1} parent=1 // loop_body
      %s26 = ssub.s32 %s21, 1
      %s27 = ssub.s32 %s21, 2
      %s34 = sadd.s32 1, %s29
      %p35 = scmp.ge.s32.totalorder %s34, 2
      %s36 = scalar_select %p35, 0, %s34
      %s37 = sadd.s32 1, %s28
      %s38 = scalar_select %p35, %s37, %s28
      %p39 = scmp.ge.s32.totalorder %s38, 2
      %s40 = scalar_select %p39, 0, %s38
      %s41 = ssub.s32 %s28, %s40
      %p42 = scmp.eq.s32.totalorder %s41, 0
      %s44 = sadd.s32 %s43, 1
      %s45 = scalar_select %p42, %s43, %s44
      %p48 = pneg %p42
      %p49 = scmp.eq.s32.totalorder %s21, 3
      %p50 = por %p48, %p49
      %p51 = scmp.ne.s32.totalorder %s43, %s46
      %p52 = scmp.eq.s32.totalorder %s21, 0
      %p53 = por %p51, %p52
      %p54 = scmp.ne.s32.totalorder %s43, %s46
      %p55 = scmp.eq.s32.totalorder %s26, 3
      %p56 = por %p54, %p55
      %p57 = scmp.ne.s32.totalorder %s46, %s47
      %p58 = scmp.eq.s32.totalorder %s26, 0
      %p59 = por %p57, %p58
      %p60 = scmp.ne.s32.totalorder %s46, %s47
      %p61 = scmp.eq.s32.totalorder %s27, 3
      %p62 = por %p60, %p61
      %p64 = scmp.ne.s32.totalorder %s47, %s63
      %p65 = scmp.eq.s32.totalorder %s27, 0
      %p66 = por %p64, %p65
      %s67 = ssub.s32 %s28, %s40
      %p68 = scmp.eq.s32.totalorder %s67, 0
      %s70 = sadd.s32 %s69, 1
      %s71 = scalar_select %p68, %s69, %s70
      %p74 = pneg %p68
      %p75 = scmp.eq.s32.totalorder %s21, 3
      %p76 = por %p74, %p75
      %p77 = scmp.ne.s32.totalorder %s69, %s72
      %p78 = scmp.eq.s32.totalorder %s21, 0
      %p79 = por %p77, %p78
      %p80 = scmp.ne.s32.totalorder %s69, %s72
      %p81 = scmp.eq.s32.totalorder %s26, 3
      %p82 = por %p80, %p81
      %p83 = scmp.ne.s32.totalorder %s72, %s73
      %p84 = scmp.eq.s32.totalorder %s26, 0
      %p85 = por %p83, %p84
      %p86 = scmp.ne.s32.totalorder %s72, %s73
      %p87 = scmp.eq.s32.totalorder %s27, 3
      %p88 = por %p86, %p87
      %p90 = scmp.ne.s32.totalorder %s73, %s89
      %p91 = scmp.eq.s32.totalorder %s27, 0
      %p92 = por %p90, %p91
      %s93 = ssub.s32 %s28, %s40
      %p94 = scmp.eq.s32.totalorder %s93, 0
      %s96 = sadd.s32 %s95, 1
      %s97 = scalar_select %p94, %s95, %s96
      %p100 = pneg %p94
      %p101 = scmp.eq.s32.totalorder %s21, 3
      %p102 = por %p100, %p101
      %p103 = scmp.ne.s32.totalorder %s95, %s98
      %p104 = scmp.eq.s32.totalorder %s21, 0
      %p105 = por %p103, %p104
      %p106 = scmp.ne.s32.totalorder %s95, %s98
      %p107 = scmp.eq.s32.totalorder %s26, 3
      %p108 = por %p106, %p107
      %p109 = scmp.ne.s32.totalorder %s98, %s99
      %p110 = scmp.eq.s32.totalorder %s26, 0
      %p111 = por %p109, %p110
      %p112 = scmp.ne.s32.totalorder %s98, %s99
      %p113 = scmp.eq.s32.totalorder %s27, 3
      %p114 = por %p112, %p113
      %p116 = scmp.ne.s32.totalorder %s99, %s115
      %p117 = scmp.eq.s32.totalorder %s27, 0
      %p118 = por %p116, %p117
      %s119 = ssub.s32 %s28, %s40
      %p120 = scmp.eq.s32.totalorder %s119, 0
      %s122 = sadd.s32 %s121, 1
      %s123 = scalar_select %p120, %s121, %s122
      %p126 = pneg %p120
      %p127 = scmp.eq.s32.totalorder %s21, 3
      %p128 = por %p126, %p127
      %p129 = scmp.ne.s32.totalorder %s121, %s124
      %p130 = scmp.eq.s32.totalorder %s21, 0
      %p131 = por %p129, %p130
      %p132 = scmp.ne.s32.totalorder %s121, %s124
      %p133 = scmp.eq.s32.totalorder %s26, 3
      %p134 = por %p132, %p133
      %p135 = scmp.ne.s32.totalorder %s124, %s125
      %p136 = scmp.eq.s32.totalorder %s26, 0
      %p137 = por %p135, %p136
      %p138 = scmp.ne.s32.totalorder %s124, %s125
      %p139 = scmp.eq.s32.totalorder %s27, 3
      %p140 = por %p138, %p139
      %p142 = scmp.ne.s32.totalorder %s125, %s141
      %p143 = scmp.eq.s32.totalorder %s27, 0
      %p144 = por %p142, %p143
      %s145 = ssub.s32 %s29, %s36
      %p146 = scmp.eq.s32.totalorder %s145, 0
      %s148 = sadd.s32 %s147, 1
      %s149 = scalar_select %p146, %s147, %s148
      %p152 = pneg %p146
      %p153 = scmp.eq.s32.totalorder %s21, 3
      %p154 = por %p152, %p153
      %p155 = scmp.ne.s32.totalorder %s147, %s150
      %p156 = scmp.eq.s32.totalorder %s21, 0
      %p157 = por %p155, %p156
      %p158 = scmp.ne.s32.totalorder %s147, %s150
      %p159 = scmp.eq.s32.totalorder %s26, 3
      %p160 = por %p158, %p159
      %p161 = scmp.ne.s32.totalorder %s150, %s151
      %p162 = scmp.eq.s32.totalorder %s26, 0
      %p163 = por %p161, %p162
      %p164 = scmp.ne.s32.totalorder %s150, %s151
      %p165 = scmp.eq.s32.totalorder %s27, 3
      %p166 = por %p164, %p165
      %p168 = scmp.ne.s32.totalorder %s151, %s167
      %p169 = scmp.eq.s32.totalorder %s27, 0
      %p170 = por %p168, %p169
      %s171 = ssub.s32 %s29, %s36
      %p172 = scmp.eq.s32.totalorder %s171, 0
      %s174 = sadd.s32 %s173, 1
      %s175 = scalar_select %p172, %s173, %s174
      %p178 = pneg %p172
      %p179 = scmp.eq.s32.totalorder %s21, 3
      %p180 = por %p178, %p179
      %p181 = scmp.ne.s32.totalorder %s173, %s176
      %p182 = scmp.eq.s32.totalorder %s21, 0
      %p183 = por %p181, %p182
      %p184 = scmp.ne.s32.totalorder %s173, %s176
      %p185 = scmp.eq.s32.totalorder %s26, 3
      %p186 = por %p184, %p185
      %p187 = scmp.ne.s32.totalorder %s176, %s177
      %p188 = scmp.eq.s32.totalorder %s26, 0
      %p189 = por %p187, %p188
      %p190 = scmp.ne.s32.totalorder %s176, %s177
      %p191 = scmp.eq.s32.totalorder %s27, 3
      %p192 = por %p190, %p191
      %p194 = scmp.ne.s32.totalorder %s177, %s193
      %p195 = scmp.eq.s32.totalorder %s27, 0
      %p196 = por %p194, %p195
      %s197 = ssub.s32 %s29, %s36
      %p198 = scmp.eq.s32.totalorder %s197, 0
      %s200 = sadd.s32 %s199, 1
      %s201 = scalar_select %p198, %s199, %s200
      %p204 = pneg %p198
      %p205 = scmp.eq.s32.totalorder %s21, 3
      %p206 = por %p204, %p205
      %p207 = scmp.ne.s32.totalorder %s199, %s202
      %p208 = scmp.eq.s32.totalorder %s21, 0
      %p209 = por %p207, %p208
      %p210 = scmp.ne.s32.totalorder %s199, %s202
      %p211 = scmp.eq.s32.totalorder %s26, 3
      %p212 = por %p210, %p211
      %p213 = scmp.ne.s32.totalorder %s202, %s203
      %p214 = scmp.eq.s32.totalorder %s26, 0
      %p215 = por %p213, %p214
      %p216 = scmp.ne.s32.totalorder %s202, %s203
      %p217 = scmp.eq.s32.totalorder %s27, 3
      %p218 = por %p216, %p217
      %p220 = scmp.ne.s32.totalorder %s203, %s219
      %p221 = scmp.eq.s32.totalorder %s27, 0
      %p222 = por %p220, %p221
      %s223 = ssub.s32 %s29, %s36
      %p224 = scmp.eq.s32.totalorder %s223, 0
      %s226 = sadd.s32 %s225, 1
      %s227 = scalar_select %p224, %s225, %s226
      %p230 = pneg %p224
      %p231 = scmp.eq.s32.totalorder %s21, 3
      %p232 = por %p230, %p231
      %p233 = scmp.ne.s32.totalorder %s225, %s228
      %p234 = scmp.eq.s32.totalorder %s21, 0
      %p235 = por %p233, %p234
      %p236 = scmp.ne.s32.totalorder %s225, %s228
      %p237 = scmp.eq.s32.totalorder %s26, 3
      %p238 = por %p236, %p237
      %p239 = scmp.ne.s32.totalorder %s228, %s229
      %p240 = scmp.eq.s32.totalorder %s26, 0
      %p241 = por %p239, %p240
      %p242 = scmp.ne.s32.totalorder %s228, %s229
      %p243 = scmp.eq.s32.totalorder %s27, 3
      %p244 = por %p242, %p243
      %p246 = scmp.ne.s32.totalorder %s229, %s245
      %p247 = scmp.eq.s32.totalorder %s27, 0
      %p248 = por %p246, %p247
      %s249 = ssub.s32 %s29, %s36
      %p250 = scmp.eq.s32.totalorder %s249, 0
      %s252 = sadd.s32 %s251, 1
      %s253 = scalar_select %p250, %s251, %s252
      %p256 = pneg %p250
      %p257 = scmp.eq.s32.totalorder %s21, 3
      %p258 = por %p256, %p257
      %p259 = scmp.ne.s32.totalorder %s251, %s254
      %p260 = scmp.eq.s32.totalorder %s21, 0
      %p261 = por %p259, %p260
      %p262 = scmp.ne.s32.totalorder %s251, %s254
      %p263 = scmp.eq.s32.totalorder %s26, 3
      %p264 = por %p262, %p263
      %p265 = scmp.ne.s32.totalorder %s254, %s255
      %p266 = scmp.eq.s32.totalorder %s26, 0
      %p267 = por %p265, %p266
      %p268 = scmp.ne.s32.totalorder %s254, %s255
      %p269 = scmp.eq.s32.totalorder %s27, 3
      %p270 = por %p268, %p269
      %p272 = scmp.ne.s32.totalorder %s255, %s271
      %p273 = scmp.eq.s32.totalorder %s27, 0
      %p274 = por %p272, %p273
      %s275 = ssub.s32 %s29, %s36
      %p276 = scmp.eq.s32.totalorder %s275, 0
      %s278 = sadd.s32 %s277, 1
      %s279 = scalar_select %p276, %s277, %s278
      %p282 = pneg %p276
      %p283 = scmp.eq.s32.totalorder %s21, 3
      %p284 = por %p282, %p283
      %p285 = scmp.ne.s32.totalorder %s277, %s280
      %p286 = scmp.eq.s32.totalorder %s21, 0
      %p287 = por %p285, %p286
      %p288 = scmp.ne.s32.totalorder %s277, %s280
      %p289 = scmp.eq.s32.totalorder %s26, 3
      %p290 = por %p288, %p289
      %p291 = scmp.ne.s32.totalorder %s280, %s281
      %p292 = scmp.eq.s32.totalorder %s26, 0
      %p293 = por %p291, %p292
      %p294 = scmp.ne.s32.totalorder %s280, %s281
      %p295 = scmp.eq.s32.totalorder %s27, 3
      %p296 = por %p294, %p295
      %p298 = scmp.ne.s32.totalorder %s281, %s297
      %p299 = scmp.eq.s32.totalorder %s27, 0
      %p300 = por %p298, %p299
      %s302 = sadd.s32 %s301, 1
      %p305 = scmp.eq.s32.totalorder %s21, 3
      %p306 = scmp.ne.s32.totalorder %s301, %s303
      %p307 = scmp.eq.s32.totalorder %s21, 0
      %p308 = por %p306, %p307
      %p309 = scmp.ne.s32.totalorder %s301, %s303
      %p310 = scmp.eq.s32.totalorder %s26, 3
      %p311 = por %p309, %p310
      %p312 = scmp.ne.s32.totalorder %s303, %s304
      %p313 = scmp.eq.s32.totalorder %s26, 0
      %p314 = por %p312, %p313
      %p315 = scmp.ne.s32.totalorder %s303, %s304
      %p316 = scmp.eq.s32.totalorder %s27, 3
      %p317 = por %p315, %p316
      %p319 = scmp.ne.s32.totalorder %s304, %s318
      %p320 = scmp.eq.s32.totalorder %s27, 0
      %p321 = por %p319, %p320
      %s323 = sadd.s32 %s322, 1
      %p326 = scmp.eq.s32.totalorder %s21, 3
      %p327 = scmp.ne.s32.totalorder %s322, %s324
      %p328 = scmp.eq.s32.totalorder %s21, 0
      %p329 = por %p327, %p328
      %p330 = scmp.ne.s32.totalorder %s322, %s324
      %p331 = scmp.eq.s32.totalorder %s26, 3
      %p332 = por %p330, %p331
      %p333 = scmp.ne.s32.totalorder %s324, %s325
      %p334 = scmp.eq.s32.totalorder %s26, 0
      %p335 = por %p333, %p334
      %p336 = scmp.ne.s32.totalorder %s324, %s325
      %p337 = scmp.eq.s32.totalorder %s27, 3
      %p338 = por %p336, %p337
      %p340 = scmp.ne.s32.totalorder %s325, %s339
      %p341 = scmp.eq.s32.totalorder %s27, 0
      %p342 = por %p340, %p341
      %s343 = ssub.s32 %s28, %s40
      %p344 = scmp.eq.s32.totalorder %s343, 0
      %s346 = sadd.s32 %s345, 1
      %s347 = scalar_select %p344, %s345, %s346
      %p350 = pneg %p344
      %p351 = scmp.eq.s32.totalorder %s21, 3
      %p352 = por %p350, %p351
      %p353 = scmp.ne.s32.totalorder %s345, %s348
      %p354 = scmp.eq.s32.totalorder %s21, 0
      %p355 = por %p353, %p354
      %p356 = scmp.ne.s32.totalorder %s345, %s348
      %p357 = scmp.eq.s32.totalorder %s26, 3
      %p358 = por %p356, %p357
      %p359 = scmp.ne.s32.totalorder %s348, %s349
      %p360 = scmp.eq.s32.totalorder %s26, 0
      %p361 = por %p359, %p360
      %p362 = scmp.ne.s32.totalorder %s348, %s349
      %p363 = scmp.eq.s32.totalorder %s27, 3
      %p364 = por %p362, %p363
      %p366 = scmp.ne.s32.totalorder %s349, %s365
      %p367 = scmp.eq.s32.totalorder %s27, 0
      %p368 = por %p366, %p367
      %p369 = scmp.le.s32.totalorder 1, %s21
      %p370 = scmp.lt.s32.totalorder %s21, 5
      %p371 = pnand %p369, %p370
      %p372 = pneg %p371
      // Predicated region
      $region9: #{transformer_decoder_forward.1} parent=5 // pred_check
        _
      $region10: #{transformer_decoder_forward.1} parent=5 // pred_check_branch
        %374 = sbr.rel (%p371) target = $region12
      $region11: #{transformer_decoder_forward.1} parent=5 // pred_region
        %s375 = ssub.s32 %s21, 1
        // Predicated region
        $region13: #{transformer_decoder_forward.1} parent=11 // pred_check
          %p376 = pneg %p314
        $region14: #{transformer_decoder_forward.1} parent=11 // pred_check_branch
          %378 = sbr.rel (%p376) target = $region16
        $region15: #{transformer_decoder_forward.1} parent=11 // pred_region
          _
        $region16: #{transformer_decoder_forward.1} parent=11 // pred_fallthru
          _
        // Predicated region
        $region17: #{transformer_decoder_forward.1} parent=11 // pred_check
          %p379 = pneg %p335
        $region18: #{transformer_decoder_forward.1} parent=11 // pred_check_branch
          %381 = sbr.rel (%p379) target = $region20
        $region19: #{transformer_decoder_forward.1} parent=11 // pred_region
          _
        $region20: #{transformer_decoder_forward.1} parent=11 // pred_fallthru
          _
      $region12: #{transformer_decoder_forward.1} parent=5 // pred_fallthru
        _
      %p382 = scmp.lt.s32.totalorder %s21, 4
      // Predicated region
      $region21: #{transformer_decoder_forward.1} parent=5 // pred_check
        %p383 = pneg %p382
      $region22: #{transformer_decoder_forward.1} parent=5 // pred_check_branch
        %385 = sbr.rel (%p383) target = $region24
      $region23: #{transformer_decoder_forward.1} parent=5 // pred_region
        // Predicated region
        $region25: #{transformer_decoder_forward.1} parent=23 // pred_check
          %p386 = pneg %p53
        $region26: #{transformer_decoder_forward.1} parent=23 // pred_check_branch
          %388 = sbr.rel (%p386) target = $region28
        $region27: #{transformer_decoder_forward.1} parent=23 // pred_region
          %p389 = scmp.lt.s32.totalorder %s28, 1
          %s390 = scalar_select %p389, %s28, 1
          %s391 = smul.addr %s390, 8
          %s392 = scalar_lea.vmem %s0, %s391
        $region28: #{transformer_decoder_forward.1} parent=23 // pred_fallthru
          _
        // Predicated region
        $region29: #{transformer_decoder_forward.1} parent=23 // pred_check
          %p393 = pneg %p79
        $region30: #{transformer_decoder_forward.1} parent=23 // pred_check_branch
          %395 = sbr.rel (%p393) target = $region32
        $region31: #{transformer_decoder_forward.1} parent=23 // pred_region
          %p396 = scmp.lt.s32.totalorder %s28, 1
          %s397 = scalar_select %p396, %s28, 1
          %s398 = smul.addr %s397, 2
          %s399 = smul.addr %s398, 4
          %s400 = scalar_lea.vmem %s1, %s399
        $region32: #{transformer_decoder_forward.1} parent=23 // pred_fallthru
          _
        // Predicated region
        $region33: #{transformer_decoder_forward.1} parent=23 // pred_check
          %p401 = pneg %p105
        $region34: #{transformer_decoder_forward.1} parent=23 // pred_check_branch
          %403 = sbr.rel (%p401) target = $region36
        $region35: #{transformer_decoder_forward.1} parent=23 // pred_region
          %p404 = scmp.lt.s32.totalorder %s28, 1
          %s405 = scalar_select %p404, %s28, 1
          %s406 = smul.addr %s405, 2
          %s407 = smul.addr %s406, 4
          %s408 = scalar_lea.vmem %s2, %s407
        $region36: #{transformer_decoder_forward.1} parent=23 // pred_fallthru
          _
        // Predicated region
        $region37: #{transformer_decoder_forward.1} parent=23 // pred_check
          %p409 = pneg %p131
        $region38: #{transformer_decoder_forward.1} parent=23 // pred_check_branch
          %411 = sbr.rel (%p409) target = $region40
        $region39: #{transformer_decoder_forward.1} parent=23 // pred_region
          %p412 = scmp.lt.s32.totalorder %s28, 1
          %s413 = scalar_select %p412, %s28, 1
          %s414 = smul.addr %s413, 8
          %s415 = scalar_lea.vmem %s3, %s414
        $region40: #{transformer_decoder_forward.1} parent=23 // pred_fallthru
          _
        // Predicated region
        $region41: #{transformer_decoder_forward.1} parent=23 // pred_check
          %p416 = pneg %p157
        $region42: #{transformer_decoder_forward.1} parent=23 // pred_check_branch
          %418 = sbr.rel (%p416) target = $region44
        $region43: #{transformer_decoder_forward.1} parent=23 // pred_region
          %p419 = scmp.lt.s32.totalorder %s29, 1
          %s420 = scalar_select %p419, %s29, 1
          %s421 = smul.addr %s420, 4
          %s422 = smul.addr %s421, 4
          %s423 = scalar_lea.vmem %s4, %s422
        $region44: #{transformer_decoder_forward.1} parent=23 // pred_fallthru
          _
        // Predicated region
        $region45: #{transformer_decoder_forward.1} parent=23 // pred_check
          %p424 = pneg %p183
        $region46: #{transformer_decoder_forward.1} parent=23 // pred_check_branch
          %426 = sbr.rel (%p424) target = $region48
        $region47: #{transformer_decoder_forward.1} parent=23 // pred_region
          %p427 = scmp.lt.s32.totalorder %s29, 1
          %s428 = scalar_select %p427, %s29, 1
          %s429 = smul.addr %s428, 24
          %s430 = smul.addr %s429, 4
          %s431 = scalar_lea.vmem %s5, %s430
        $region48: #{transformer_decoder_forward.1} parent=23 // pred_fallthru
          _
        // Predicated region
        $region49: #{transformer_decoder_forward.1} parent=23 // pred_check
          %p432 = pneg %p209
        $region50: #{transformer_decoder_forward.1} parent=23 // pred_check_branch
          %434 = sbr.rel (%p432) target = $region52
        $region51: #{transformer_decoder_forward.1} parent=23 // pred_region
          %p435 = scmp.lt.s32.totalorder %s29, 1
          %s436 = scalar_select %p435, %s29, 1
          %s437 = smul.addr %s436, 4
          %s438 = smul.addr %s437, 4
          %s439 = scalar_lea.vmem %s6, %s438
        $region52: #{transformer_decoder_forward.1} parent=23 // pred_fallthru
          _
        // Predicated region
        $region53: #{transformer_decoder_forward.1} parent=23 // pred_check
          %p440 = pneg %p235
        $region54: #{transformer_decoder_forward.1} parent=23 // pred_check_branch
          %442 = sbr.rel (%p440) target = $region56
        $region55: #{transformer_decoder_forward.1} parent=23 // pred_region
          %p443 = scmp.lt.s32.totalorder %s29, 1
          %s444 = scalar_select %p443, %s29, 1
          %s445 = smul.addr %s444, 8
          %s446 = smul.addr %s445, 4
          %s447 = scalar_lea.vmem %s7, %s446
        $region56: #{transformer_decoder_forward.1} parent=23 // pred_fallthru
          _
        // Predicated region
        $region57: #{transformer_decoder_forward.1} parent=23 // pred_check
          %p448 = pneg %p261
        $region58: #{transformer_decoder_forward.1} parent=23 // pred_check_branch
          %450 = sbr.rel (%p448) target = $region60
        $region59: #{transformer_decoder_forward.1} parent=23 // pred_region
          %s451 = sand.u32 %s251, 1
          %s452 = scalar_lea.sflag [#allocation5], %s451
          %s453 = sand.u32 %s251, 1
          %s454 = smul.addr %s453, 16
          %s455 = scalar_lea.vmem [#allocation4], %s454
          %s457 = ssub.s32 256, 256
          %458 = vsyncadd %s452, %s457
          %s459 = smul.addr %s29, 2
          %s460 = smul.addr %s459, 128
          %s461 = scalar_lea.hbm %s8, %s460
          %s462 = sshll.u32 %s455, 4
          %s463 = int_to_ptr.vmem [resolvable:$true] %s462
          %468 = dma.hbm_to_vmem [thread:$0]  %s461, 256, %s463, %s452, 128, 128, 8
        $region60: #{transformer_decoder_forward.1} parent=23 // pred_fallthru
          _
        // Predicated region
        $region61: #{transformer_decoder_forward.1} parent=23 // pred_check
          %p469 = pneg %p287
        $region62: #{transformer_decoder_forward.1} parent=23 // pred_check_branch
          %471 = sbr.rel (%p469) target = $region64
        $region63: #{transformer_decoder_forward.1} parent=23 // pred_region
          %p472 = scmp.lt.s32.totalorder %s29, 1
          %s473 = scalar_select %p472, %s29, 1
          %s474 = scalar_lea.vmem %s9, %s473
        $region64: #{transformer_decoder_forward.1} parent=23 // pred_fallthru
          _
      $region24: #{transformer_decoder_forward.1} parent=5 // pred_fallthru
        _
      %p475 = scmp.le.s32.totalorder 1, %s21
      %p476 = scmp.lt.s32.totalorder %s21, 5
      %p477 = pnand %p475, %p476
      %p478 = pneg %p477
      // Predicated region
      $region65: #{transformer_decoder_forward.1} parent=5 // pred_check
        _
      $region66: #{transformer_decoder_forward.1} parent=5 // pred_check_branch
        %480 = sbr.rel (%p477) target = $region68
      $region67: #{transformer_decoder_forward.1} parent=5 // pred_region
        %s481 = ssub.s32 %s21, 1
        %s482 = sand.u32 %s254, 1
        %s483 = scalar_lea.sflag [#allocation5], %s482
        %s484 = sand.u32 %s254, 1
        %s485 = smul.addr %s484, 16
        %s486 = scalar_lea.vmem [#allocation4], %s485
        // Predicated region
        $region69: #{transformer_decoder_forward.1} parent=67 // pred_check
          %p487 = pneg %p267
        $region70: #{transformer_decoder_forward.1} parent=67 // pred_check_branch
          %489 = sbr.rel (%p487) target = $region72
        $region71: #{transformer_decoder_forward.1} parent=67 // pred_region
          %490 = dma.done %s483, 256
        $region72: #{transformer_decoder_forward.1} parent=67 // pred_fallthru
          _
        %p491 = scmp.lt.s32.totalorder %s30, 1
        %s492 = scalar_select %p491, %s30, 1
        %s493 = smul.addr %s492, 8
        %s494 = scalar_lea.vmem %s0, %s493
        %p495 = pneg %p59
        %p496 = pneg %p56
        %p497 = scmp.lt.s32.totalorder %s30, 1
        %s498 = scalar_select %p497, %s30, 1
        %s499 = smul.addr %s498, 2
        %s500 = smul.addr %s499, 4
        %s501 = scalar_lea.vmem %s1, %s500
        %p502 = pneg %p85
        %p503 = pneg %p82
        %p504 = scmp.lt.s32.totalorder %s30, 1
        %s505 = scalar_select %p504, %s30, 1
        %s506 = smul.addr %s505, 2
        %s507 = smul.addr %s506, 4
        %s508 = scalar_lea.vmem %s2, %s507
        %p509 = pneg %p111
        %p510 = pneg %p108
        %p511 = scmp.lt.s32.totalorder %s30, 1
        %s512 = scalar_select %p511, %s30, 1
        %s513 = smul.addr %s512, 8
        %s514 = scalar_lea.vmem %s3, %s513
        %p515 = pneg %p137
        %p516 = pneg %p134
        %p517 = scmp.lt.s32.totalorder %s31, 1
        %s518 = scalar_select %p517, %s31, 1
        %s519 = smul.addr %s518, 4
        %s520 = smul.addr %s519, 4
        %s521 = scalar_lea.vmem %s4, %s520
        %p522 = pneg %p163
        %p523 = pneg %p160
        %p524 = scmp.lt.s32.totalorder %s31, 1
        %s525 = scalar_select %p524, %s31, 1
        %s526 = smul.addr %s525, 24
        %s527 = smul.addr %s526, 4
        %s528 = scalar_lea.vmem %s5, %s527
        %p529 = pneg %p189
        %p530 = pneg %p186
        %p531 = scmp.lt.s32.totalorder %s31, 1
        %s532 = scalar_select %p531, %s31, 1
        %s533 = smul.addr %s532, 4
        %s534 = smul.addr %s533, 4
        %s535 = scalar_lea.vmem %s6, %s534
        %p536 = pneg %p215
        %p537 = pneg %p212
        %p538 = scmp.lt.s32.totalorder %s31, 1
        %s539 = scalar_select %p538, %s31, 1
        %s540 = smul.addr %s539, 8
        %s541 = smul.addr %s540, 4
        %s542 = scalar_lea.vmem %s7, %s541
        %p543 = pneg %p241
        %p544 = pneg %p238
        %s545 = sand.u32 %s254, 1
        %s546 = scalar_lea.sflag [#allocation5], %s545
        %s547 = sand.u32 %s254, 1
        %s548 = smul.addr %s547, 16
        %s549 = scalar_lea.vmem [#allocation4], %s548
        %p550 = pneg %p267
        %p551 = pneg %p264
        %p552 = scmp.lt.s32.totalorder %s31, 1
        %s553 = scalar_select %p552, %s31, 1
        %s554 = scalar_lea.vmem %s9, %s553
        %p555 = pneg %p293
        %p556 = pneg %p290
        %p557 = pneg %p314
        %p558 = pneg %p311
        %p559 = pneg %p335
        %p560 = pneg %p332
        %p561 = pneg %p361
        %p562 = pneg %p358
        %p563 = scmp.lt.s32.totalorder %s30, 1
        %s564 = scalar_select %p563, %s30, 1
        %s565 = smul.addr %s564, 8
        %s566 = scalar_lea.vmem %s12, %s565
        %p567 = scmp.lt.s32.totalorder %s30, 1
        %s568 = scalar_select %p567, %s30, 1
        %s569 = smul.addr %s568, 8
        %s570 = scalar_lea.vmem %s0, %s569
        %p571 = scmp.lt.s32.totalorder %s30, 1
        %s572 = scalar_select %p571, %s30, 1
        %s573 = smul.addr %s572, 2
        %s574 = smul.addr %s573, 4
        %s575 = scalar_lea.vmem %s1, %s574
        %p576 = scmp.lt.s32.totalorder %s30, 1
        %s577 = scalar_select %p576, %s30, 1
        %s578 = smul.addr %s577, 2
        %s579 = smul.addr %s578, 4
        %s580 = scalar_lea.vmem %s2, %s579
        %p581 = scmp.lt.s32.totalorder %s30, 1
        %s582 = scalar_select %p581, %s30, 1
        %s583 = smul.addr %s582, 8
        %s584 = scalar_lea.vmem %s3, %s583
        %p585 = scmp.lt.s32.totalorder %s31, 1
        %s586 = scalar_select %p585, %s31, 1
        %s587 = smul.addr %s586, 4
        %s588 = smul.addr %s587, 4
        %s589 = scalar_lea.vmem %s4, %s588
        %p590 = scmp.lt.s32.totalorder %s31, 1
        %s591 = scalar_select %p590, %s31, 1
        %s592 = smul.addr %s591, 24
        %s593 = smul.addr %s592, 4
        %s594 = scalar_lea.vmem %s5, %s593
        %p595 = scmp.lt.s32.totalorder %s31, 1
        %s596 = scalar_select %p595, %s31, 1
        %s597 = smul.addr %s596, 4
        %s598 = smul.addr %s597, 4
        %s599 = scalar_lea.vmem %s6, %s598
        %p600 = scmp.lt.s32.totalorder %s31, 1
        %s601 = scalar_select %p600, %s31, 1
        %s602 = smul.addr %s601, 8
        %s603 = smul.addr %s602, 4
        %s604 = scalar_lea.vmem %s7, %s603
        %p605 = scmp.lt.s32.totalorder %s31, 1
        %s606 = scalar_select %p605, %s31, 1
        %s607 = scalar_lea.vmem %s9, %s606
        %p608 = scmp.lt.s32.totalorder %s30, 1
        %s609 = scalar_select %p608, %s30, 1
        %s610 = smul.addr %s609, 8
        %s611 = scalar_lea.vmem %s12, %s610
        %p613 = scmp.eq.s32.totalorder %s31, 0
        // Predicated region
        $region73: #{transformer_decoder_forward.1} parent=67 // pred_check
          %p614 = pneg %p613
        $region74: #{transformer_decoder_forward.1} parent=67 // pred_check_branch
          %616 = sbr.rel (%p614) target = $region76
        $region75: #{transformer_decoder_forward.1} parent=67 // pred_region
          %v617 = vld [vmem:[%s570] sm:$0xff]
          %vm618 = vcmask 261120
          %619 = vst.msk [vmem:[#allocation2] sm:$0xff] %vm618, %v617
        $region76: #{transformer_decoder_forward.1} parent=67 // pred_fallthru
          _
        %v620 = vld [vmem:[#allocation2] sm:$0xff]
        %v621 = vld [vmem:[%s584] sm:$0xff]
        %v622 = vld [vmem:[%s486] sm:$0xff]
        %v623 = vld [vmem:[%s486 + $0x8] sm:$0xff]
        %v624 = vadd.f32 %v620, %v621
        %v625 = vpack.c.bf16 %v624, %v624
        %v626 = vld [vmem:[%s589] sm:$0xf]
        %v627 = vld [vmem:[%s589 + $0x4] sm:$0xf]
        %v628 = vld [vmem:[%s589 + $0x8] sm:$0xf]
        %v629 = vld [vmem:[%s589 + $0xc] sm:$0xf]
        %v634 = vunpack.c.l.b16 %v626
        %v635 = vunpack.c.l.b16 %v627
        %v636 = vunpack.c.l.b16 %v628
        %v637 = vunpack.c.l.b16 %v629
        %v638 = vpack.c.b16 %v635, %v634
        %v639 = vpack.c.b16 %v637, %v636
        %vm642 = vcmask 261120
        %v644 = vsel %vm642, %v625, 0
        %646 = vmatprep.subr.bf16.mxu0 0
        %647 = vmatpush1.bf16.msra.mxu0 0
        %648 = vmatprep.subr.bf16.mxu0 0
        %649 = vmatpush1.bf16.msra.mxu0 0
        %650 = vmatprep.subr.bf16.mxu0 0
        %651 = vmatpush1.bf16.msra.mxu0 0
        %652 = vmatprep.subr.bf16.mxu0 0
        %653 = vmatpush1.bf16.msra.mxu0 0
        %654 = vmatprep.subr.bf16.mxu0 0
        %655 = vmatpush1.bf16.msra.mxu0 0
        %656 = vmatprep.subr.bf16.mxu0 0
        %657 = vmatpush1.bf16.msra.mxu0 0
        %658 = vmatprep.subr.bf16.mxu0 0
        %659 = vmatpush1.bf16.msra.mxu0 %v639
        %660 = vmatprep.subr.bf16.mxu0 0
        %661 = vmatpush1.bf16.msra.mxu0 %v638
        %662 = vmatprep.subr.bf16.mxu0 0
        %663 = vmatpush2.bf16.msra.mxu0 0
        %664 = vmatprep.subr.bf16.mxu0 0
        %665 = vmatpush2.bf16.msra.mxu0 0
        %666 = vmatprep.subr.bf16.mxu0 0
        %667 = vmatpush2.bf16.msra.mxu0 0
        %668 = vmatprep.subr.bf16.mxu0 0
        %669 = vmatpush2.bf16.msra.mxu0 0
        %670 = vmatprep.subr.bf16.mxu0 0
        %671 = vmatpush2.bf16.msra.mxu0 0
        %672 = vmatprep.subr.bf16.mxu0 0
        %673 = vmatpush2.bf16.msra.mxu0 0
        %674 = vmatprep.subr.bf16.mxu0 0
        %675 = vmatpush2.bf16.msra.mxu0 0
        %676 = vmatprep.subr.bf16.mxu0 0
        %677 = vmatpush2.bf16.msra.mxu0 0
        %678 = vmatprep.mubr.bf16.mxu0 0
        %679 = vmatmul.mubr.bf16.gmra.mxu0 %v644
        %v680 = vpop.f32.mrf.mxu0
        %v681 = vadd.f32 0.0, %v680
        %v682 = vpop.f32.mrf.mxu0
        %v683 = vpop.f32.mrf.mxu0
        %v684 = vpop.f32.mrf.mxu0
        %685 = vdwg.mxu0
        %v686 = vlaneseq
        %v687 = vshrl.u32 %v686, 7
        %v688 = vsub.s32 0, %v687
        %v689 = vrot.slane %v622, %v688
        %v690 = vadd.f32 %v681, %v689
        %v691 = vlaneseq
        %v692 = vshrl.u32 %v691, 7
        %v693 = vsub.s32 1, %v692
        %v694 = vrot.slane %v622, %v693
        %696 = vrot.lane.b32.xlu0 %v694, 32
        %v697 = vpop.permute.xlu0 %696
        %v699 = vadd.f32 %v681, %v697
        %v700 = vpack.c.bf16 %v620, %v620
        %v701 = vld [vmem:[%s594] sm:$0xf]
        %v702 = vld [vmem:[%s594 + $0x4] sm:$0xf]
        %v703 = vld [vmem:[%s594 + $0x8] sm:$0xf]
        %v704 = vld [vmem:[%s594 + $0xc] sm:$0xf]
        %v705 = vlaneseq
        %v706 = vshrl.u32 %v705, 7
        %v707 = vsub.s32 2, %v706
        %v708 = vrot.slane %v622, %v707
        %v713 = vunpack.c.l.b16 %v701
        %v714 = vunpack.c.l.b16 %v702
        %v715 = vunpack.c.l.b16 %v703
        %v716 = vunpack.c.l.b16 %v704
        %v717 = vpack.c.b16 %v714, %v713
        %v718 = vpack.c.b16 %v716, %v715
        %v722 = vsel %vm642, %v700, 0
        %724 = vmatprep.subr.bf16.mxu0 0
        %725 = vmatpush1.bf16.msra.mxu0 0
        %726 = vmatprep.subr.bf16.mxu0 0
        %727 = vmatpush1.bf16.msra.mxu0 0
        %728 = vmatprep.subr.bf16.mxu0 0
        %729 = vmatpush1.bf16.msra.mxu0 0
        %730 = vmatprep.subr.bf16.mxu0 0
        %731 = vmatpush1.bf16.msra.mxu0 0
        %732 = vmatprep.subr.bf16.mxu0 0
        %733 = vmatpush1.bf16.msra.mxu0 0
        %734 = vmatprep.subr.bf16.mxu0 0
        %735 = vmatpush1.bf16.msra.mxu0 0
        %736 = vmatprep.subr.bf16.mxu0 0
        %737 = vmatpush1.bf16.msra.mxu0 %v718
        %738 = vmatprep.subr.bf16.mxu0 0
        %739 = vmatpush1.bf16.msra.mxu0 %v717
        %740 = vmatprep.subr.bf16.mxu0 0
        %741 = vmatpush2.bf16.msra.mxu0 0
        %742 = vmatprep.subr.bf16.mxu0 0
        %743 = vmatpush2.bf16.msra.mxu0 0
        %744 = vmatprep.subr.bf16.mxu0 0
        %745 = vmatpush2.bf16.msra.mxu0 0
        %746 = vmatprep.subr.bf16.mxu0 0
        %747 = vmatpush2.bf16.msra.mxu0 0
        %748 = vmatprep.subr.bf16.mxu0 0
        %749 = vmatpush2.bf16.msra.mxu0 0
        %750 = vmatprep.subr.bf16.mxu0 0
        %751 = vmatpush2.bf16.msra.mxu0 0
        %752 = vmatprep.subr.bf16.mxu0 0
        %753 = vmatpush2.bf16.msra.mxu0 0
        %754 = vmatprep.subr.bf16.mxu0 0
        %755 = vmatpush2.bf16.msra.mxu0 0
        %756 = vmatprep.mubr.bf16.mxu0 0
        %757 = vmatmul.mubr.bf16.gmra.mxu0 %v722
        %v758 = vpop.f32.mrf.mxu0
        %v759 = vadd.f32 %v708, %v758
        %v760 = vpop.f32.mrf.mxu0
        %v761 = vpop.f32.mrf.mxu0
        %v762 = vpop.f32.mrf.mxu0
        %763 = vdwg.mxu0
        %s764 = scalar_lea.vmem %s594, 16
        %v765 = vld [vmem:[%s764] sm:$0xf]
        %v766 = vld [vmem:[%s764 + $0x4] sm:$0xf]
        %v767 = vld [vmem:[%s764 + $0x8] sm:$0xf]
        %v768 = vld [vmem:[%s764 + $0xc] sm:$0xf]
        %v769 = vpack.c.bf16 %v690, %v690
        %v770 = vpack.c.bf16 %v699, %v699
        %v771 = vpack.c.bf16 %v759, %v759
        %773 = vrot.lane.b32.xlu0 %v770, 96
        %v774 = vpop.permute.xlu0 %773
        %vm775 = vcmask 64512
        %v777 = vsel %vm775, %v769, 0
        %v780 = vsel %vm775, %v774, 0
        %782 = vmatprep.subr.bf16.mxu0 0
        %783 = vmatpush1.bf16.xpose.msra.mxu0 0
        %784 = vmatprep.subr.bf16.mxu0 0
        %785 = vmatpush1.bf16.xpose.msra.mxu0 0
        %786 = vmatprep.subr.bf16.mxu0 0
        %787 = vmatpush1.bf16.xpose.msra.mxu0 0
        %788 = vmatprep.subr.bf16.mxu0 0
        %789 = vmatpush1.bf16.xpose.msra.mxu0 0
        %790 = vmatprep.subr.bf16.mxu0 0
        %791 = vmatpush1.bf16.xpose.msra.mxu0 0
        %792 = vmatprep.subr.bf16.mxu0 0
        %793 = vmatpush1.bf16.xpose.msra.mxu0 0
        %794 = vmatprep.subr.bf16.mxu0 0
        %795 = vmatpush1.bf16.xpose.msra.mxu0 0
        %796 = vmatprep.subr.bf16.mxu0 0
        %797 = vmatpush1.bf16.xpose.msra.mxu0 %v780
        %798 = vmatprep.subr.bf16.mxu0 0
        %799 = vmatpush2.bf16.xpose.msra.mxu0 0
        %800 = vmatprep.subr.bf16.mxu0 0
        %801 = vmatpush2.bf16.xpose.msra.mxu0 0
        %802 = vmatprep.subr.bf16.mxu0 0
        %803 = vmatpush2.bf16.xpose.msra.mxu0 0
        %804 = vmatprep.subr.bf16.mxu0 0
        %805 = vmatpush2.bf16.xpose.msra.mxu0 0
        %806 = vmatprep.subr.bf16.mxu0 0
        %807 = vmatpush2.bf16.xpose.msra.mxu0 0
        %808 = vmatprep.subr.bf16.mxu0 0
        %809 = vmatpush2.bf16.xpose.msra.mxu0 0
        %810 = vmatprep.subr.bf16.mxu0 0
        %811 = vmatpush2.bf16.xpose.msra.mxu0 0
        %812 = vmatprep.subr.bf16.mxu0 0
        %813 = vmatpush2.bf16.xpose.msra.mxu0 0
        %814 = vmatprep.mubr.bf16.mxu0 0
        %815 = vmatmul.mubr.bf16.gmra.mxu0 %v777
        %v816 = vpop.f32.mrf.mxu0
        %v817 = vadd.f32 0.0, %v816
        %v818 = vpop.f32.mrf.mxu0
        %v819 = vpop.f32.mrf.mxu0
        %v820 = vpop.f32.mrf.mxu0
        %821 = vdwg.mxu0
        %v822 = vsel %vm775, %v817, -inf
        %823 = vmax.xlane.f32.xlu0 %v822
        %v824 = vpop.xlane.xlu0 %823
        %v825 = vsub.f32 %v817, %v824
        %v826 = vmul.f32 %v825, 1.442695
        %v827 = vpow.pop %v826
        %v828 = vsel %vm775, %v827, 0.0
        %829 = vadd.xlane.f32.xlu0 %v828
        %v830 = vpop.xlane.xlu0 %829
        %v831 = vrcp.pop %v830
        %v832 = vmul.f32 %v827, %v831
        %v833 = vpack.c.bf16 %v832, %v832
        %v835 = vsel %vm775, %v833, 0
        %vm837 = vcmask 1043456
        %v839 = vsel %vm837, %v771, 0
        %841 = vmatprep.subr.bf16.mxu0 0
        %842 = vmatpush1.bf16.msra.mxu0 0
        %843 = vmatprep.subr.bf16.mxu0 0
        %844 = vmatpush1.bf16.msra.mxu0 0
        %845 = vmatprep.subr.bf16.mxu0 0
        %846 = vmatpush1.bf16.msra.mxu0 0
        %847 = vmatprep.subr.bf16.mxu0 0
        %848 = vmatpush1.bf16.msra.mxu0 0
        %849 = vmatprep.subr.bf16.mxu0 0
        %850 = vmatpush1.bf16.msra.mxu0 0
        %851 = vmatprep.subr.bf16.mxu0 0
        %852 = vmatpush1.bf16.msra.mxu0 0
        %853 = vmatprep.subr.bf16.mxu0 0
        %854 = vmatpush1.bf16.msra.mxu0 0
        %855 = vmatprep.subr.bf16.mxu0 0
        %856 = vmatpush1.bf16.msra.mxu0 %v839
        %857 = vmatprep.subr.bf16.mxu0 0
        %858 = vmatpush2.bf16.msra.mxu0 0
        %859 = vmatprep.subr.bf16.mxu0 0
        %860 = vmatpush2.bf16.msra.mxu0 0
        %861 = vmatprep.subr.bf16.mxu0 0
        %862 = vmatpush2.bf16.msra.mxu0 0
        %863 = vmatprep.subr.bf16.mxu0 0
        %864 = vmatpush2.bf16.msra.mxu0 0
        %865 = vmatprep.subr.bf16.mxu0 0
        %866 = vmatpush2.bf16.msra.mxu0 0
        %867 = vmatprep.subr.bf16.mxu0 0
        %868 = vmatpush2.bf16.msra.mxu0 0
        %869 = vmatprep.subr.bf16.mxu0 0
        %870 = vmatpush2.bf16.msra.mxu0 0
        %871 = vmatprep.subr.bf16.mxu0 0
        %872 = vmatpush2.bf16.msra.mxu0 0
        %873 = vmatprep.mubr.bf16.mxu0 0
        %874 = vmatmul.mubr.bf16.gmra.mxu0 %v835
        %v875 = vpop.f32.mrf.mxu0
        %v876 = vadd.f32 0.0, %v875
        %v877 = vpop.f32.mrf.mxu0
        %v878 = vpop.f32.mrf.mxu0
        %v879 = vpop.f32.mrf.mxu0
        %880 = vdwg.mxu0
        %881 = vst.msk [vmem:[#allocation3] sm:$0xff] %vm775, %v876
        %883 = vrot.lane.b32.xlu0 %v769, 120
        %v884 = vpop.permute.xlu0 %883
        %885 = vrot.lane.b32.xlu0 %v770, 88
        %v886 = vpop.permute.xlu0 %885
        %v888 = vsel %vm775, %v884, 0
        %v891 = vsel %vm775, %v886, 0
        %893 = vmatprep.subr.bf16.mxu0 0
        %894 = vmatpush1.bf16.xpose.msra.mxu0 0
        %895 = vmatprep.subr.bf16.mxu0 0
        %896 = vmatpush1.bf16.xpose.msra.mxu0 0
        %897 = vmatprep.subr.bf16.mxu0 0
        %898 = vmatpush1.bf16.xpose.msra.mxu0 0
        %899 = vmatprep.subr.bf16.mxu0 0
        %900 = vmatpush1.bf16.xpose.msra.mxu0 0
        %901 = vmatprep.subr.bf16.mxu0 0
        %902 = vmatpush1.bf16.xpose.msra.mxu0 0
        %903 = vmatprep.subr.bf16.mxu0 0
        %904 = vmatpush1.bf16.xpose.msra.mxu0 0
        %905 = vmatprep.subr.bf16.mxu0 0
        %906 = vmatpush1.bf16.xpose.msra.mxu0 0
        %907 = vmatprep.subr.bf16.mxu0 0
        %908 = vmatpush1.bf16.xpose.msra.mxu0 %v891
        %909 = vmatprep.subr.bf16.mxu0 0
        %910 = vmatpush2.bf16.xpose.msra.mxu0 0
        %911 = vmatprep.subr.bf16.mxu0 0
        %912 = vmatpush2.bf16.xpose.msra.mxu0 0
        %913 = vmatprep.subr.bf16.mxu0 0
        %914 = vmatpush2.bf16.xpose.msra.mxu0 0
        %915 = vmatprep.subr.bf16.mxu0 0
        %916 = vmatpush2.bf16.xpose.msra.mxu0 0
        %917 = vmatprep.subr.bf16.mxu0 0
        %918 = vmatpush2.bf16.xpose.msra.mxu0 0
        %919 = vmatprep.subr.bf16.mxu0 0
        %920 = vmatpush2.bf16.xpose.msra.mxu0 0
        %921 = vmatprep.subr.bf16.mxu0 0
        %922 = vmatpush2.bf16.xpose.msra.mxu0 0
        %923 = vmatprep.subr.bf16.mxu0 0
        %924 = vmatpush2.bf16.xpose.msra.mxu0 0
        %925 = vmatprep.mubr.bf16.mxu0 0
        %926 = vmatmul.mubr.bf16.gmra.mxu0 %v888
        %v927 = vpop.f32.mrf.mxu0
        %v928 = vadd.f32 0.0, %v927
        %v929 = vpop.f32.mrf.mxu0
        %v930 = vpop.f32.mrf.mxu0
        %v931 = vpop.f32.mrf.mxu0
        %932 = vdwg.mxu0
        %v933 = vsel %vm775, %v928, -inf
        %934 = vmax.xlane.f32.xlu0 %v933
        %v935 = vpop.xlane.xlu0 %934
        %v936 = vsub.f32 %v928, %v935
        %v937 = vmul.f32 %v936, 1.442695
        %v938 = vpow.pop %v937
        %v939 = vsel %vm775, %v938, 0.0
        %940 = vadd.xlane.f32.xlu0 %v939
        %v941 = vpop.xlane.xlu0 %940
        %v942 = vrcp.pop %v941
        %v943 = vmul.f32 %v938, %v942
        %v944 = vpack.c.bf16 %v943, %v943
        %946 = vrot.lane.b32.xlu0 %v771, 120
        %v947 = vpop.permute.xlu0 %946
        %v949 = vsel %vm775, %v944, 0
        %v952 = vsel %vm837, %v947, 0
        %954 = vmatprep.subr.bf16.mxu0 0
        %955 = vmatpush1.bf16.msra.mxu0 0
        %956 = vmatprep.subr.bf16.mxu0 0
        %957 = vmatpush1.bf16.msra.mxu0 0
        %958 = vmatprep.subr.bf16.mxu0 0
        %959 = vmatpush1.bf16.msra.mxu0 0
        %960 = vmatprep.subr.bf16.mxu0 0
        %961 = vmatpush1.bf16.msra.mxu0 0
        %962 = vmatprep.subr.bf16.mxu0 0
        %963 = vmatpush1.bf16.msra.mxu0 0
        %964 = vmatprep.subr.bf16.mxu0 0
        %965 = vmatpush1.bf16.msra.mxu0 0
        %966 = vmatprep.subr.bf16.mxu0 0
        %967 = vmatpush1.bf16.msra.mxu0 0
        %968 = vmatprep.subr.bf16.mxu0 0
        %969 = vmatpush1.bf16.msra.mxu0 %v952
        %970 = vmatprep.subr.bf16.mxu0 0
        %971 = vmatpush2.bf16.msra.mxu0 0
        %972 = vmatprep.subr.bf16.mxu0 0
        %973 = vmatpush2.bf16.msra.mxu0 0
        %974 = vmatprep.subr.bf16.mxu0 0
        %975 = vmatpush2.bf16.msra.mxu0 0
        %976 = vmatprep.subr.bf16.mxu0 0
        %977 = vmatpush2.bf16.msra.mxu0 0
        %978 = vmatprep.subr.bf16.mxu0 0
        %979 = vmatpush2.bf16.msra.mxu0 0
        %980 = vmatprep.subr.bf16.mxu0 0
        %981 = vmatpush2.bf16.msra.mxu0 0
        %982 = vmatprep.subr.bf16.mxu0 0
        %983 = vmatpush2.bf16.msra.mxu0 0
        %984 = vmatprep.subr.bf16.mxu0 0
        %985 = vmatpush2.bf16.msra.mxu0 0
        %986 = vmatprep.mubr.bf16.mxu0 0
        %987 = vmatmul.mubr.bf16.gmra.mxu0 %v949
        %v988 = vpop.f32.mrf.mxu0
        %v989 = vadd.f32 0.0, %v988
        %v990 = vpop.f32.mrf.mxu0
        %v991 = vpop.f32.mrf.mxu0
        %v992 = vpop.f32.mrf.mxu0
        %993 = vdwg.mxu0
        %995 = vrot.lane.b32.xlu0 %v989, 8
        %v996 = vpop.permute.xlu0 %995
        %vm998 = vcmask 130112
        %999 = vst.msk [vmem:[#allocation3] sm:$0xff] %vm998, %v996
        %1000 = vrot.lane.b32.xlu0 %v769, 112
        %v1001 = vpop.permute.xlu0 %1000
        %1002 = vrot.lane.b32.xlu0 %v770, 80
        %v1003 = vpop.permute.xlu0 %1002
        %v1005 = vsel %vm775, %v1001, 0
        %v1008 = vsel %vm775, %v1003, 0
        %1010 = vmatprep.subr.bf16.mxu0 0
        %1011 = vmatpush1.bf16.xpose.msra.mxu0 0
        %1012 = vmatprep.subr.bf16.mxu0 0
        %1013 = vmatpush1.bf16.xpose.msra.mxu0 0
        %1014 = vmatprep.subr.bf16.mxu0 0
        %1015 = vmatpush1.bf16.xpose.msra.mxu0 0
        %1016 = vmatprep.subr.bf16.mxu0 0
        %1017 = vmatpush1.bf16.xpose.msra.mxu0 0
        %1018 = vmatprep.subr.bf16.mxu0 0
        %1019 = vmatpush1.bf16.xpose.msra.mxu0 0
        %1020 = vmatprep.subr.bf16.mxu0 0
        %1021 = vmatpush1.bf16.xpose.msra.mxu0 0
        %1022 = vmatprep.subr.bf16.mxu0 0
        %1023 = vmatpush1.bf16.xpose.msra.mxu0 0
        %1024 = vmatprep.subr.bf16.mxu0 0
        %1025 = vmatpush1.bf16.xpose.msra.mxu0 %v1008
        %1026 = vmatprep.subr.bf16.mxu0 0
        %1027 = vmatpush2.bf16.xpose.msra.mxu0 0
        %1028 = vmatprep.subr.bf16.mxu0 0
        %1029 = vmatpush2.bf16.xpose.msra.mxu0 0
        %1030 = vmatprep.subr.bf16.mxu0 0
        %1031 = vmatpush2.bf16.xpose.msra.mxu0 0
        %1032 = vmatprep.subr.bf16.mxu0 0
        %1033 = vmatpush2.bf16.xpose.msra.mxu0 0
        %1034 = vmatprep.subr.bf16.mxu0 0
        %1035 = vmatpush2.bf16.xpose.msra.mxu0 0
        %1036 = vmatprep.subr.bf16.mxu0 0
        %1037 = vmatpush2.bf16.xpose.msra.mxu0 0
        %1038 = vmatprep.subr.bf16.mxu0 0
        %1039 = vmatpush2.bf16.xpose.msra.mxu0 0
        %1040 = vmatprep.subr.bf16.mxu0 0
        %1041 = vmatpush2.bf16.xpose.msra.mxu0 0
        %1042 = vmatprep.mubr.bf16.mxu0 0
        %1043 = vmatmul.mubr.bf16.gmra.mxu0 %v1005
        %v1044 = vpop.f32.mrf.mxu0
        %v1045 = vadd.f32 0.0, %v1044
        %v1046 = vpop.f32.mrf.mxu0
        %v1047 = vpop.f32.mrf.mxu0
        %v1048 = vpop.f32.mrf.mxu0
        %1049 = vdwg.mxu0
        %v1050 = vsel %vm775, %v1045, -inf
        %1051 = vmax.xlane.f32.xlu0 %v1050
        %v1052 = vpop.xlane.xlu0 %1051
        %v1053 = vsub.f32 %v1045, %v1052
        %v1054 = vmul.f32 %v1053, 1.442695
        %v1055 = vpow.pop %v1054
        %v1056 = vsel %vm775, %v1055, 0.0
        %1057 = vadd.xlane.f32.xlu0 %v1056
        %v1058 = vpop.xlane.xlu0 %1057
        %v1059 = vrcp.pop %v1058
        %v1060 = vmul.f32 %v1055, %v1059
        %v1061 = vpack.c.bf16 %v1060, %v1060
        %1062 = vrot.lane.b32.xlu0 %v771, 112
        %v1063 = vpop.permute.xlu0 %1062
        %v1065 = vsel %vm775, %v1061, 0
        %v1068 = vsel %vm837, %v1063, 0
        %1070 = vmatprep.subr.bf16.mxu0 0
        %1071 = vmatpush1.bf16.msra.mxu0 0
        %1072 = vmatprep.subr.bf16.mxu0 0
        %1073 = vmatpush1.bf16.msra.mxu0 0
        %1074 = vmatprep.subr.bf16.mxu0 0
        %1075 = vmatpush1.bf16.msra.mxu0 0
        %1076 = vmatprep.subr.bf16.mxu0 0
        %1077 = vmatpush1.bf16.msra.mxu0 0
        %1078 = vmatprep.subr.bf16.mxu0 0
        %1079 = vmatpush1.bf16.msra.mxu0 0
        %1080 = vmatprep.subr.bf16.mxu0 0
        %1081 = vmatpush1.bf16.msra.mxu0 0
        %1082 = vmatprep.subr.bf16.mxu0 0
        %1083 = vmatpush1.bf16.msra.mxu0 0
        %1084 = vmatprep.subr.bf16.mxu0 0
        %1085 = vmatpush1.bf16.msra.mxu0 %v1068
        %1086 = vmatprep.subr.bf16.mxu0 0
        %1087 = vmatpush2.bf16.msra.mxu0 0
        %1088 = vmatprep.subr.bf16.mxu0 0
        %1089 = vmatpush2.bf16.msra.mxu0 0
        %1090 = vmatprep.subr.bf16.mxu0 0
        %1091 = vmatpush2.bf16.msra.mxu0 0
        %1092 = vmatprep.subr.bf16.mxu0 0
        %1093 = vmatpush2.bf16.msra.mxu0 0
        %1094 = vmatprep.subr.bf16.mxu0 0
        %1095 = vmatpush2.bf16.msra.mxu0 0
        %1096 = vmatprep.subr.bf16.mxu0 0
        %1097 = vmatpush2.bf16.msra.mxu0 0
        %1098 = vmatprep.subr.bf16.mxu0 0
        %1099 = vmatpush2.bf16.msra.mxu0 0
        %1100 = vmatprep.subr.bf16.mxu0 0
        %1101 = vmatpush2.bf16.msra.mxu0 0
        %1102 = vmatprep.mubr.bf16.mxu0 0
        %1103 = vmatmul.mubr.bf16.gmra.mxu0 %v1065
        %v1104 = vpop.f32.mrf.mxu0
        %v1105 = vadd.f32 0.0, %v1104
        %v1106 = vpop.f32.mrf.mxu0
        %v1107 = vpop.f32.mrf.mxu0
        %v1108 = vpop.f32.mrf.mxu0
        %1109 = vdwg.mxu0
        %1111 = vrot.lane.b32.xlu0 %v1105, 16
        %v1112 = vpop.permute.xlu0 %1111
        %vm1114 = vcmask 195712
        %1115 = vst.msk [vmem:[#allocation3] sm:$0xff] %vm1114, %v1112
        %1116 = vrot.lane.b32.xlu0 %v769, 104
        %v1117 = vpop.permute.xlu0 %1116
        %1118 = vrot.lane.b32.xlu0 %v770, 72
        %v1119 = vpop.permute.xlu0 %1118
        %v1121 = vsel %vm775, %v1117, 0
        %v1124 = vsel %vm775, %v1119, 0
        %1126 = vmatprep.subr.bf16.mxu0 0
        %1127 = vmatpush1.bf16.xpose.msra.mxu0 0
        %1128 = vmatprep.subr.bf16.mxu0 0
        %1129 = vmatpush1.bf16.xpose.msra.mxu0 0
        %1130 = vmatprep.subr.bf16.mxu0 0
        %1131 = vmatpush1.bf16.xpose.msra.mxu0 0
        %1132 = vmatprep.subr.bf16.mxu0 0
        %1133 = vmatpush1.bf16.xpose.msra.mxu0 0
        %1134 = vmatprep.subr.bf16.mxu0 0
        %1135 = vmatpush1.bf16.xpose.msra.mxu0 0
        %1136 = vmatprep.subr.bf16.mxu0 0
        %1137 = vmatpush1.bf16.xpose.msra.mxu0 0
        %1138 = vmatprep.subr.bf16.mxu0 0
        %1139 = vmatpush1.bf16.xpose.msra.mxu0 0
        %1140 = vmatprep.subr.bf16.mxu0 0
        %1141 = vmatpush1.bf16.xpose.msra.mxu0 %v1124
        %1142 = vmatprep.subr.bf16.mxu0 0
        %1143 = vmatpush2.bf16.xpose.msra.mxu0 0
        %1144 = vmatprep.subr.bf16.mxu0 0
        %1145 = vmatpush2.bf16.xpose.msra.mxu0 0
        %1146 = vmatprep.subr.bf16.mxu0 0
        %1147 = vmatpush2.bf16.xpose.msra.mxu0 0
        %1148 = vmatprep.subr.bf16.mxu0 0
        %1149 = vmatpush2.bf16.xpose.msra.mxu0 0
        %1150 = vmatprep.subr.bf16.mxu0 0
        %1151 = vmatpush2.bf16.xpose.msra.mxu0 0
        %1152 = vmatprep.subr.bf16.mxu0 0
        %1153 = vmatpush2.bf16.xpose.msra.mxu0 0
        %1154 = vmatprep.subr.bf16.mxu0 0
        %1155 = vmatpush2.bf16.xpose.msra.mxu0 0
        %1156 = vmatprep.subr.bf16.mxu0 0
        %1157 = vmatpush2.bf16.xpose.msra.mxu0 0
        %1158 = vmatprep.mubr.bf16.mxu0 0
        %1159 = vmatmul.mubr.bf16.gmra.mxu0 %v1121
        %v1160 = vpop.f32.mrf.mxu0
        %v1161 = vadd.f32 0.0, %v1160
        %v1162 = vpop.f32.mrf.mxu0
        %v1163 = vpop.f32.mrf.mxu0
        %v1164 = vpop.f32.mrf.mxu0
        %1165 = vdwg.mxu0
        %v1166 = vsel %vm775, %v1161, -inf
        %1167 = vmax.xlane.f32.xlu0 %v1166
        %v1168 = vpop.xlane.xlu0 %1167
        %v1169 = vsub.f32 %v1161, %v1168
        %v1170 = vmul.f32 %v1169, 1.442695
        %v1171 = vpow.pop %v1170
        %v1172 = vsel %vm775, %v1171, 0.0
        %1173 = vadd.xlane.f32.xlu0 %v1172
        %v1174 = vpop.xlane.xlu0 %1173
        %v1175 = vrcp.pop %v1174
        %v1176 = vmul.f32 %v1171, %v1175
        %v1177 = vpack.c.bf16 %v1176, %v1176
        %1178 = vrot.lane.b32.xlu0 %v771, 104
        %v1179 = vpop.permute.xlu0 %1178
        %v1181 = vsel %vm775, %v1177, 0
        %v1184 = vsel %vm837, %v1179, 0
        %1186 = vmatprep.subr.bf16.mxu0 0
        %1187 = vmatpush1.bf16.msra.mxu0 0
        %1188 = vmatprep.subr.bf16.mxu0 0
        %1189 = vmatpush1.bf16.msra.mxu0 0
        %1190 = vmatprep.subr.bf16.mxu0 0
        %1191 = vmatpush1.bf16.msra.mxu0 0
        %1192 = vmatprep.subr.bf16.mxu0 0
        %1193 = vmatpush1.bf16.msra.mxu0 0
        %1194 = vmatprep.subr.bf16.mxu0 0
        %1195 = vmatpush1.bf16.msra.mxu0 0
        %1196 = vmatprep.subr.bf16.mxu0 0
        %1197 = vmatpush1.bf16.msra.mxu0 0
        %1198 = vmatprep.subr.bf16.mxu0 0
        %1199 = vmatpush1.bf16.msra.mxu0 0
        %1200 = vmatprep.subr.bf16.mxu0 0
        %1201 = vmatpush1.bf16.msra.mxu0 %v1184
        %1202 = vmatprep.subr.bf16.mxu0 0
        %1203 = vmatpush2.bf16.msra.mxu0 0
        %1204 = vmatprep.subr.bf16.mxu0 0
        %1205 = vmatpush2.bf16.msra.mxu0 0
        %1206 = vmatprep.subr.bf16.mxu0 0
        %1207 = vmatpush2.bf16.msra.mxu0 0
        %1208 = vmatprep.subr.bf16.mxu0 0
        %1209 = vmatpush2.bf16.msra.mxu0 0
        %1210 = vmatprep.subr.bf16.mxu0 0
        %1211 = vmatpush2.bf16.msra.mxu0 0
        %1212 = vmatprep.subr.bf16.mxu0 0
        %1213 = vmatpush2.bf16.msra.mxu0 0
        %1214 = vmatprep.subr.bf16.mxu0 0
        %1215 = vmatpush2.bf16.msra.mxu0 0
        %1216 = vmatprep.subr.bf16.mxu0 0
        %1217 = vmatpush2.bf16.msra.mxu0 0
        %1218 = vmatprep.mubr.bf16.mxu0 0
        %1219 = vmatmul.mubr.bf16.gmra.mxu0 %v1181
        %v1220 = vpop.f32.mrf.mxu0
        %v1221 = vadd.f32 0.0, %v1220
        %v1222 = vpop.f32.mrf.mxu0
        %v1223 = vpop.f32.mrf.mxu0
        %v1224 = vpop.f32.mrf.mxu0
        %1225 = vdwg.mxu0
        %1227 = vrot.lane.b32.xlu0 %v1221, 24
        %v1228 = vpop.permute.xlu0 %1227
        %vm1230 = vcmask 261312
        %1231 = vst.msk [vmem:[#allocation3] sm:$0xff] %vm1230, %v1228
        %v1232 = vld [vmem:[#allocation3] sm:$0xff]
        %v1233 = vpack.c.bf16 %v1232, %v1232
        %v1234 = vlaneseq
        %v1235 = vshrl.u32 %v1234, 7
        %v1236 = vsub.s32 3, %v1235
        %v1237 = vrot.slane %v622, %v1236
        %v1242 = vunpack.c.l.b16 %v765
        %v1243 = vunpack.c.l.b16 %v766
        %v1244 = vunpack.c.l.b16 %v767
        %v1245 = vunpack.c.l.b16 %v768
        %v1246 = vpack.c.b16 %v1243, %v1242
        %v1247 = vpack.c.b16 %v1245, %v1244
        %v1251 = vsel %vm642, %v1233, 0
        %1253 = vmatprep.subr.bf16.mxu0 0
        %1254 = vmatpush1.bf16.msra.mxu0 0
        %1255 = vmatprep.subr.bf16.mxu0 0
        %1256 = vmatpush1.bf16.msra.mxu0 0
        %1257 = vmatprep.subr.bf16.mxu0 0
        %1258 = vmatpush1.bf16.msra.mxu0 0
        %1259 = vmatprep.subr.bf16.mxu0 0
        %1260 = vmatpush1.bf16.msra.mxu0 0
        %1261 = vmatprep.subr.bf16.mxu0 0
        %1262 = vmatpush1.bf16.msra.mxu0 0
        %1263 = vmatprep.subr.bf16.mxu0 0
        %1264 = vmatpush1.bf16.msra.mxu0 0
        %1265 = vmatprep.subr.bf16.mxu0 0
        %1266 = vmatpush1.bf16.msra.mxu0 %v1247
        %1267 = vmatprep.subr.bf16.mxu0 0
        %1268 = vmatpush1.bf16.msra.mxu0 %v1246
        %1269 = vmatprep.subr.bf16.mxu0 0
        %1270 = vmatpush2.bf16.msra.mxu0 0
        %1271 = vmatprep.subr.bf16.mxu0 0
        %1272 = vmatpush2.bf16.msra.mxu0 0
        %1273 = vmatprep.subr.bf16.mxu0 0
        %1274 = vmatpush2.bf16.msra.mxu0 0
        %1275 = vmatprep.subr.bf16.mxu0 0
        %1276 = vmatpush2.bf16.msra.mxu0 0
        %1277 = vmatprep.subr.bf16.mxu0 0
        %1278 = vmatpush2.bf16.msra.mxu0 0
        %1279 = vmatprep.subr.bf16.mxu0 0
        %1280 = vmatpush2.bf16.msra.mxu0 0
        %1281 = vmatprep.subr.bf16.mxu0 0
        %1282 = vmatpush2.bf16.msra.mxu0 0
        %1283 = vmatprep.subr.bf16.mxu0 0
        %1284 = vmatpush2.bf16.msra.mxu0 0
        %1285 = vmatprep.mubr.bf16.mxu0 0
        %1286 = vmatmul.mubr.bf16.gmra.mxu0 %v1251
        %v1287 = vpop.f32.mrf.mxu0
        %v1288 = vadd.f32 %v1237, %v1287
        %v1289 = vpop.f32.mrf.mxu0
        %v1290 = vpop.f32.mrf.mxu0
        %v1291 = vpop.f32.mrf.mxu0
        %1292 = vdwg.mxu0
        %v1293 = vadd.f32 %v620, %v1288
        %v1294 = vsel %vm642, %v1293, 0.0
        %1295 = vadd.xlane.f32.xlu0 %v1294
        %v1296 = vpop.xlane.xlu0 %1295
        %v1297 = vrcp.pop 32.0
        %v1298 = vmul.f32 %v1296, %v1297
        %v1299 = vsub.f32 %v1293, %v1298
        %v1300 = vmul.f32 %v1299, %v1299
        %v1301 = vsel %vm642, %v1300, 0.0
        %1302 = vadd.xlane.f32.xlu0 %v1301
        %v1303 = vpop.xlane.xlu0 %1302
        %v1304 = vmul.f32 %v1303, %v1297
        %v1305 = vadd.f32 %v1304, 1e-05
        %v1306 = vrsqrt.pop %v1305
        %v1307 = vmul.f32 %v1299, %v1306
        %v1308 = vlaneseq
        %v1309 = vshrl.u32 %v1308, 7
        %v1310 = vsub.s32 1, %v1309
        %v1311 = vrot.slane %v623, %v1310
        %v1312 = vmul.f32 %v1307, %v1311
        %v1313 = vlaneseq
        %v1314 = vshrl.u32 %v1313, 7
        %v1315 = vsub.s32 2, %v1314
        %v1316 = vrot.slane %v623, %v1315
        %v1317 = vadd.f32 %v1312, %v1316
        %v1318 = vadd.f32 %v1317, %v621
        %v1319 = vpack.c.bf16 %v1318, %v1318
        %s1320 = scalar_lea.vmem %s594, 32
        %v1321 = vld [vmem:[%s1320] sm:$0xf]
        %v1322 = vld [vmem:[%s1320 + $0x4] sm:$0xf]
        %v1323 = vld [vmem:[%s1320 + $0x8] sm:$0xf]
        %v1324 = vld [vmem:[%s1320 + $0xc] sm:$0xf]
        %v1325 = vlaneseq
        %v1326 = vshrl.u32 %v1325, 7
        %v1327 = vsub.s32 4, %v1326
        %v1328 = vrot.slane %v622, %v1327
        %v1333 = vunpack.c.l.b16 %v1321
        %v1334 = vunpack.c.l.b16 %v1322
        %v1335 = vunpack.c.l.b16 %v1323
        %v1336 = vunpack.c.l.b16 %v1324
        %v1337 = vpack.c.b16 %v1334, %v1333
        %v1338 = vpack.c.b16 %v1336, %v1335
        %v1342 = vsel %vm642, %v1319, 0
        %1344 = vmatprep.subr.bf16.mxu0 0
        %1345 = vmatpush1.bf16.msra.mxu0 0
        %1346 = vmatprep.subr.bf16.mxu0 0
        %1347 = vmatpush1.bf16.msra.mxu0 0
        %1348 = vmatprep.subr.bf16.mxu0 0
        %1349 = vmatpush1.bf16.msra.mxu0 0
        %1350 = vmatprep.subr.bf16.mxu0 0
        %1351 = vmatpush1.bf16.msra.mxu0 0
        %1352 = vmatprep.subr.bf16.mxu0 0
        %1353 = vmatpush1.bf16.msra.mxu0 0
        %1354 = vmatprep.subr.bf16.mxu0 0
        %1355 = vmatpush1.bf16.msra.mxu0 0
        %1356 = vmatprep.subr.bf16.mxu0 0
        %1357 = vmatpush1.bf16.msra.mxu0 %v1338
        %1358 = vmatprep.subr.bf16.mxu0 0
        %1359 = vmatpush1.bf16.msra.mxu0 %v1337
        %1360 = vmatprep.subr.bf16.mxu0 0
        %1361 = vmatpush2.bf16.msra.mxu0 0
        %1362 = vmatprep.subr.bf16.mxu0 0
        %1363 = vmatpush2.bf16.msra.mxu0 0
        %1364 = vmatprep.subr.bf16.mxu0 0
        %1365 = vmatpush2.bf16.msra.mxu0 0
        %1366 = vmatprep.subr.bf16.mxu0 0
        %1367 = vmatpush2.bf16.msra.mxu0 0
        %1368 = vmatprep.subr.bf16.mxu0 0
        %1369 = vmatpush2.bf16.msra.mxu0 0
        %1370 = vmatprep.subr.bf16.mxu0 0
        %1371 = vmatpush2.bf16.msra.mxu0 0
        %1372 = vmatprep.subr.bf16.mxu0 0
        %1373 = vmatpush2.bf16.msra.mxu0 0
        %1374 = vmatprep.subr.bf16.mxu0 0
        %1375 = vmatpush2.bf16.msra.mxu0 0
        %1376 = vmatprep.mubr.bf16.mxu0 0
        %1377 = vmatmul.mubr.bf16.gmra.mxu0 %v1342
        %v1378 = vpop.f32.mrf.mxu0
        %v1379 = vadd.f32 %v1328, %v1378
        %v1380 = vpop.f32.mrf.mxu0
        %v1381 = vpop.f32.mrf.mxu0
        %v1382 = vpop.f32.mrf.mxu0
        %1383 = vdwg.mxu0
        %v1384 = vld [vmem:[%s575] sm:$0xf]
        %v1385 = vld [vmem:[%s575 + $0x4] sm:$0xf]
        %s1386 = scalar_lea.vmem %s594, 48
        %v1387 = vld [vmem:[%s1386] sm:$0xf]
        %v1388 = vld [vmem:[%s1386 + $0x4] sm:$0xf]
        %v1389 = vld [vmem:[%s1386 + $0x8] sm:$0xf]
        %v1390 = vld [vmem:[%s1386 + $0xc] sm:$0xf]
        %v1391 = vlaneseq
        %v1392 = vshrl.u32 %v1391, 7
        %v1393 = vsub.s32 5, %v1392
        %v1394 = vrot.slane %v622, %v1393
        %v1397 = vunpack.c.l.b16 %v1384
        %v1398 = vunpack.c.l.b16 %v1385
        %v1399 = vpack.c.b16 %v1398, %v1397
        %v1404 = vunpack.c.l.b16 %v1387
        %v1405 = vunpack.c.l.b16 %v1388
        %v1406 = vunpack.c.l.b16 %v1389
        %v1407 = vunpack.c.l.b16 %v1390
        %v1408 = vpack.c.b16 %v1405, %v1404
        %v1409 = vpack.c.b16 %v1407, %v1406
        %v1413 = vsel %vm642, %v1399, 0
        %1415 = vmatprep.subr.bf16.mxu0 0
        %1416 = vmatpush1.bf16.msra.mxu0 0
        %1417 = vmatprep.subr.bf16.mxu0 0
        %1418 = vmatpush1.bf16.msra.mxu0 0
        %1419 = vmatprep.subr.bf16.mxu0 0
        %1420 = vmatpush1.bf16.msra.mxu0 0
        %1421 = vmatprep.subr.bf16.mxu0 0
        %1422 = vmatpush1.bf16.msra.mxu0 0
        %1423 = vmatprep.subr.bf16.mxu0 0
        %1424 = vmatpush1.bf16.msra.mxu0 0
        %1425 = vmatprep.subr.bf16.mxu0 0
        %1426 = vmatpush1.bf16.msra.mxu0 0
        %1427 = vmatprep.subr.bf16.mxu0 0
        %1428 = vmatpush1.bf16.msra.mxu0 %v1409
        %1429 = vmatprep.subr.bf16.mxu0 0
        %1430 = vmatpush1.bf16.msra.mxu0 %v1408
        %1431 = vmatprep.subr.bf16.mxu0 0
        %1432 = vmatpush2.bf16.msra.mxu0 0
        %1433 = vmatprep.subr.bf16.mxu0 0
        %1434 = vmatpush2.bf16.msra.mxu0 0
        %1435 = vmatprep.subr.bf16.mxu0 0
        %1436 = vmatpush2.bf16.msra.mxu0 0
        %1437 = vmatprep.subr.bf16.mxu0 0
        %1438 = vmatpush2.bf16.msra.mxu0 0
        %1439 = vmatprep.subr.bf16.mxu0 0
        %1440 = vmatpush2.bf16.msra.mxu0 0
        %1441 = vmatprep.subr.bf16.mxu0 0
        %1442 = vmatpush2.bf16.msra.mxu0 0
        %1443 = vmatprep.subr.bf16.mxu0 0
        %1444 = vmatpush2.bf16.msra.mxu0 0
        %1445 = vmatprep.subr.bf16.mxu0 0
        %1446 = vmatpush2.bf16.msra.mxu0 0
        %1447 = vmatprep.mubr.bf16.mxu0 0
        %1448 = vmatmul.mubr.bf16.gmra.mxu0 %v1413
        %v1449 = vpop.f32.mrf.mxu0
        %v1450 = vadd.f32 %v1394, %v1449
        %v1451 = vpop.f32.mrf.mxu0
        %v1452 = vpop.f32.mrf.mxu0
        %v1453 = vadd.f32 %v1394, %v1452
        %v1454 = vpop.f32.mrf.mxu0
        %1455 = vdwg.mxu0
        %v1456 = vld [vmem:[%s580] sm:$0xf]
        %v1457 = vld [vmem:[%s580 + $0x4] sm:$0xf]
        %s1458 = scalar_lea.vmem %s594, 64
        %v1459 = vld [vmem:[%s1458] sm:$0xf]
        %v1460 = vld [vmem:[%s1458 + $0x4] sm:$0xf]
        %v1461 = vld [vmem:[%s1458 + $0x8] sm:$0xf]
        %v1462 = vld [vmem:[%s1458 + $0xc] sm:$0xf]
        %v1463 = vlaneseq
        %v1464 = vshrl.u32 %v1463, 7
        %v1465 = vsub.s32 6, %v1464
        %v1466 = vrot.slane %v622, %v1465
        %v1469 = vunpack.c.l.b16 %v1456
        %v1470 = vunpack.c.l.b16 %v1457
        %v1471 = vpack.c.b16 %v1470, %v1469
        %v1476 = vunpack.c.l.b16 %v1459
        %v1477 = vunpack.c.l.b16 %v1460
        %v1478 = vunpack.c.l.b16 %v1461
        %v1479 = vunpack.c.l.b16 %v1462
        %v1480 = vpack.c.b16 %v1477, %v1476
        %v1481 = vpack.c.b16 %v1479, %v1478
        %v1485 = vsel %vm642, %v1471, 0
        %1487 = vmatprep.subr.bf16.mxu0 0
        %1488 = vmatpush1.bf16.msra.mxu0 0
        %1489 = vmatprep.subr.bf16.mxu0 0
        %1490 = vmatpush1.bf16.msra.mxu0 0
        %1491 = vmatprep.subr.bf16.mxu0 0
        %1492 = vmatpush1.bf16.msra.mxu0 0
        %1493 = vmatprep.subr.bf16.mxu0 0
        %1494 = vmatpush1.bf16.msra.mxu0 0
        %1495 = vmatprep.subr.bf16.mxu0 0
        %1496 = vmatpush1.bf16.msra.mxu0 0
        %1497 = vmatprep.subr.bf16.mxu0 0
        %1498 = vmatpush1.bf16.msra.mxu0 0
        %1499 = vmatprep.subr.bf16.mxu0 0
        %1500 = vmatpush1.bf16.msra.mxu0 %v1481
        %1501 = vmatprep.subr.bf16.mxu0 0
        %1502 = vmatpush1.bf16.msra.mxu0 %v1480
        %1503 = vmatprep.subr.bf16.mxu0 0
        %1504 = vmatpush2.bf16.msra.mxu0 0
        %1505 = vmatprep.subr.bf16.mxu0 0
        %1506 = vmatpush2.bf16.msra.mxu0 0
        %1507 = vmatprep.subr.bf16.mxu0 0
        %1508 = vmatpush2.bf16.msra.mxu0 0
        %1509 = vmatprep.subr.bf16.mxu0 0
        %1510 = vmatpush2.bf16.msra.mxu0 0
        %1511 = vmatprep.subr.bf16.mxu0 0
        %1512 = vmatpush2.bf16.msra.mxu0 0
        %1513 = vmatprep.subr.bf16.mxu0 0
        %1514 = vmatpush2.bf16.msra.mxu0 0
        %1515 = vmatprep.subr.bf16.mxu0 0
        %1516 = vmatpush2.bf16.msra.mxu0 0
        %1517 = vmatprep.subr.bf16.mxu0 0
        %1518 = vmatpush2.bf16.msra.mxu0 0
        %1519 = vmatprep.mubr.bf16.mxu0 0
        %1520 = vmatmul.mubr.bf16.gmra.mxu0 %v1485
        %v1521 = vpop.f32.mrf.mxu0
        %v1522 = vadd.f32 %v1466, %v1521
        %v1523 = vpop.f32.mrf.mxu0
        %v1524 = vpop.f32.mrf.mxu0
        %v1525 = vadd.f32 %v1466, %v1524
        %v1526 = vpop.f32.mrf.mxu0
        %1527 = vdwg.mxu0
        %s1528 = scalar_lea.vmem %s594, 80
        %v1529 = vld [vmem:[%s1528] sm:$0xf]
        %v1530 = vld [vmem:[%s1528 + $0x4] sm:$0xf]
        %v1531 = vld [vmem:[%s1528 + $0x8] sm:$0xf]
        %v1532 = vld [vmem:[%s1528 + $0xc] sm:$0xf]
        %v1533 = vpack.c.bf16 %v1379, %v1379
        %v1534 = vpack.c.bf16 %v1453, %v1450
        %v1535 = vpack.c.bf16 %v1525, %v1522
        %v1537 = vsel %vm775, %v1533, 0
        %v1540 = vsel %vm775, %v1534, 0
        %1542 = vmatprep.subr.bf16.mxu0 0
        %1543 = vmatpush1.bf16.xpose.msra.mxu0 0
        %1544 = vmatprep.subr.bf16.mxu0 0
        %1545 = vmatpush1.bf16.xpose.msra.mxu0 0
        %1546 = vmatprep.subr.bf16.mxu0 0
        %1547 = vmatpush1.bf16.xpose.msra.mxu0 0
        %1548 = vmatprep.subr.bf16.mxu0 0
        %1549 = vmatpush1.bf16.xpose.msra.mxu0 0
        %1550 = vmatprep.subr.bf16.mxu0 0
        %1551 = vmatpush1.bf16.xpose.msra.mxu0 0
        %1552 = vmatprep.subr.bf16.mxu0 0
        %1553 = vmatpush1.bf16.xpose.msra.mxu0 0
        %1554 = vmatprep.subr.bf16.mxu0 0
        %1555 = vmatpush1.bf16.xpose.msra.mxu0 0
        %1556 = vmatprep.subr.bf16.mxu0 0
        %1557 = vmatpush1.bf16.xpose.msra.mxu0 %v1540
        %1558 = vmatprep.subr.bf16.mxu0 0
        %1559 = vmatpush2.bf16.xpose.msra.mxu0 0
        %1560 = vmatprep.subr.bf16.mxu0 0
        %1561 = vmatpush2.bf16.xpose.msra.mxu0 0
        %1562 = vmatprep.subr.bf16.mxu0 0
        %1563 = vmatpush2.bf16.xpose.msra.mxu0 0
        %1564 = vmatprep.subr.bf16.mxu0 0
        %1565 = vmatpush2.bf16.xpose.msra.mxu0 0
        %1566 = vmatprep.subr.bf16.mxu0 0
        %1567 = vmatpush2.bf16.xpose.msra.mxu0 0
        %1568 = vmatprep.subr.bf16.mxu0 0
        %1569 = vmatpush2.bf16.xpose.msra.mxu0 0
        %1570 = vmatprep.subr.bf16.mxu0 0
        %1571 = vmatpush2.bf16.xpose.msra.mxu0 0
        %1572 = vmatprep.subr.bf16.mxu0 0
        %1573 = vmatpush2.bf16.xpose.msra.mxu0 0
        %1574 = vmatprep.mubr.bf16.mxu0 0
        %1575 = vmatmul.mubr.bf16.gmra.mxu0 %v1537
        %v1576 = vpop.f32.mrf.mxu0
        %v1577 = vadd.f32 0.0, %v1576
        %v1578 = vpop.f32.mrf.mxu0
        %v1579 = vpop.f32.mrf.mxu0
        %v1580 = vpop.f32.mrf.mxu0
        %1581 = vdwg.mxu0
        %vm1582 = vcmask 130048
        %v1583 = vsel %vm1582, %v1577, -inf
        %1584 = vmax.xlane.f32.xlu0 %v1583
        %v1585 = vpop.xlane.xlu0 %1584
        %v1586 = vsub.f32 %v1577, %v1585
        %v1587 = vmul.f32 %v1586, 1.442695
        %v1588 = vpow.pop %v1587
        %v1589 = vsel %vm1582, %v1588, 0.0
        %1590 = vadd.xlane.f32.xlu0 %v1589
        %v1591 = vpop.xlane.xlu0 %1590
        %v1592 = vrcp.pop %v1591
        %v1593 = vmul.f32 %v1588, %v1592
        %v1594 = vpack.c.bf16 %v1593, %v1593
        %v1596 = vsel %vm1582, %v1594, 0
        %1598 = vmatprep.subr.bf16.mxu0 0
        %1599 = vmatpush1.bf16.msra.mxu0 0
        %1600 = vmatprep.subr.bf16.mxu0 0
        %1601 = vmatpush1.bf16.msra.mxu0 0
        %1602 = vmatprep.subr.bf16.mxu0 0
        %1603 = vmatpush1.bf16.msra.mxu0 0
        %1604 = vmatprep.subr.bf16.mxu0 0
        %1605 = vmatpush1.bf16.msra.mxu0 0
        %1606 = vmatprep.subr.bf16.mxu0 0
        %1607 = vmatpush1.bf16.msra.mxu0 0
        %1608 = vmatprep.subr.bf16.mxu0 0
        %1609 = vmatpush1.bf16.msra.mxu0 0
        %1610 = vmatprep.subr.bf16.mxu0 0
        %1611 = vmatpush1.bf16.msra.mxu0 0
        %1612 = vmatprep.subr.bf16.mxu0 0
        %1613 = vmatpush1.bf16.msra.mxu0 %v1535
        %1614 = vmatprep.subr.bf16.mxu0 0
        %1615 = vmatpush2.bf16.msra.mxu0 0
        %1616 = vmatprep.subr.bf16.mxu0 0
        %1617 = vmatpush2.bf16.msra.mxu0 0
        %1618 = vmatprep.subr.bf16.mxu0 0
        %1619 = vmatpush2.bf16.msra.mxu0 0
        %1620 = vmatprep.subr.bf16.mxu0 0
        %1621 = vmatpush2.bf16.msra.mxu0 0
        %1622 = vmatprep.subr.bf16.mxu0 0
        %1623 = vmatpush2.bf16.msra.mxu0 0
        %1624 = vmatprep.subr.bf16.mxu0 0
        %1625 = vmatpush2.bf16.msra.mxu0 0
        %1626 = vmatprep.subr.bf16.mxu0 0
        %1627 = vmatpush2.bf16.msra.mxu0 0
        %1628 = vmatprep.subr.bf16.mxu0 0
        %1629 = vmatpush2.bf16.msra.mxu0 0
        %1630 = vmatprep.mubr.bf16.mxu0 0
        %1631 = vmatmul.mubr.bf16.gmra.mxu0 %v1596
        %v1632 = vpop.f32.mrf.mxu0
        %v1633 = vadd.f32 0.0, %v1632
        %v1634 = vpop.f32.mrf.mxu0
        %v1635 = vpop.f32.mrf.mxu0
        %v1636 = vpop.f32.mrf.mxu0
        %1637 = vdwg.mxu0
        %1638 = vst.msk [vmem:[#allocation3] sm:$0xff] %vm775, %v1633
        %1640 = vrot.lane.b32.xlu0 %v1533, 120
        %v1641 = vpop.permute.xlu0 %1640
        %1643 = vrot.lane.b32.xlu0 %v1534, 120
        %v1644 = vpop.permute.xlu0 %1643
        %v1646 = vsel %vm775, %v1641, 0
        %v1649 = vsel %vm775, %v1644, 0
        %1651 = vmatprep.subr.bf16.mxu0 0
        %1652 = vmatpush1.bf16.xpose.msra.mxu0 0
        %1653 = vmatprep.subr.bf16.mxu0 0
        %1654 = vmatpush1.bf16.xpose.msra.mxu0 0
        %1655 = vmatprep.subr.bf16.mxu0 0
        %1656 = vmatpush1.bf16.xpose.msra.mxu0 0
        %1657 = vmatprep.subr.bf16.mxu0 0
        %1658 = vmatpush1.bf16.xpose.msra.mxu0 0
        %1659 = vmatprep.subr.bf16.mxu0 0
        %1660 = vmatpush1.bf16.xpose.msra.mxu0 0
        %1661 = vmatprep.subr.bf16.mxu0 0
        %1662 = vmatpush1.bf16.xpose.msra.mxu0 0
        %1663 = vmatprep.subr.bf16.mxu0 0
        %1664 = vmatpush1.bf16.xpose.msra.mxu0 0
        %1665 = vmatprep.subr.bf16.mxu0 0
        %1666 = vmatpush1.bf16.xpose.msra.mxu0 %v1649
        %1667 = vmatprep.subr.bf16.mxu0 0
        %1668 = vmatpush2.bf16.xpose.msra.mxu0 0
        %1669 = vmatprep.subr.bf16.mxu0 0
        %1670 = vmatpush2.bf16.xpose.msra.mxu0 0
        %1671 = vmatprep.subr.bf16.mxu0 0
        %1672 = vmatpush2.bf16.xpose.msra.mxu0 0
        %1673 = vmatprep.subr.bf16.mxu0 0
        %1674 = vmatpush2.bf16.xpose.msra.mxu0 0
        %1675 = vmatprep.subr.bf16.mxu0 0
        %1676 = vmatpush2.bf16.xpose.msra.mxu0 0
        %1677 = vmatprep.subr.bf16.mxu0 0
        %1678 = vmatpush2.bf16.xpose.msra.mxu0 0
        %1679 = vmatprep.subr.bf16.mxu0 0
        %1680 = vmatpush2.bf16.xpose.msra.mxu0 0
        %1681 = vmatprep.subr.bf16.mxu0 0
        %1682 = vmatpush2.bf16.xpose.msra.mxu0 0
        %1683 = vmatprep.mubr.bf16.mxu0 0
        %1684 = vmatmul.mubr.bf16.gmra.mxu0 %v1646
        %v1685 = vpop.f32.mrf.mxu0
        %v1686 = vadd.f32 0.0, %v1685
        %v1687 = vpop.f32.mrf.mxu0
        %v1688 = vpop.f32.mrf.mxu0
        %v1689 = vpop.f32.mrf.mxu0
        %1690 = vdwg.mxu0
        %v1691 = vsel %vm1582, %v1686, -inf
        %1692 = vmax.xlane.f32.xlu0 %v1691
        %v1693 = vpop.xlane.xlu0 %1692
        %v1694 = vsub.f32 %v1686, %v1693
        %v1695 = vmul.f32 %v1694, 1.442695
        %v1696 = vpow.pop %v1695
        %v1697 = vsel %vm1582, %v1696, 0.0
        %1698 = vadd.xlane.f32.xlu0 %v1697
        %v1699 = vpop.xlane.xlu0 %1698
        %v1700 = vrcp.pop %v1699
        %v1701 = vmul.f32 %v1696, %v1700
        %v1702 = vpack.c.bf16 %v1701, %v1701
        %1704 = vrot.lane.b32.xlu0 %v1535, 120
        %v1705 = vpop.permute.xlu0 %1704
        %v1708 = vsel %vm1582, %v1702, 0
        %1710 = vmatprep.subr.bf16.mxu0 0
        %1711 = vmatpush1.bf16.msra.mxu0 0
        %1712 = vmatprep.subr.bf16.mxu0 0
        %1713 = vmatpush1.bf16.msra.mxu0 0
        %1714 = vmatprep.subr.bf16.mxu0 0
        %1715 = vmatpush1.bf16.msra.mxu0 0
        %1716 = vmatprep.subr.bf16.mxu0 0
        %1717 = vmatpush1.bf16.msra.mxu0 0
        %1718 = vmatprep.subr.bf16.mxu0 0
        %1719 = vmatpush1.bf16.msra.mxu0 0
        %1720 = vmatprep.subr.bf16.mxu0 0
        %1721 = vmatpush1.bf16.msra.mxu0 0
        %1722 = vmatprep.subr.bf16.mxu0 0
        %1723 = vmatpush1.bf16.msra.mxu0 0
        %1724 = vmatprep.subr.bf16.mxu0 0
        %1725 = vmatpush1.bf16.msra.mxu0 %v1705
        %1726 = vmatprep.subr.bf16.mxu0 0
        %1727 = vmatpush2.bf16.msra.mxu0 0
        %1728 = vmatprep.subr.bf16.mxu0 0
        %1729 = vmatpush2.bf16.msra.mxu0 0
        %1730 = vmatprep.subr.bf16.mxu0 0
        %1731 = vmatpush2.bf16.msra.mxu0 0
        %1732 = vmatprep.subr.bf16.mxu0 0
        %1733 = vmatpush2.bf16.msra.mxu0 0
        %1734 = vmatprep.subr.bf16.mxu0 0
        %1735 = vmatpush2.bf16.msra.mxu0 0
        %1736 = vmatprep.subr.bf16.mxu0 0
        %1737 = vmatpush2.bf16.msra.mxu0 0
        %1738 = vmatprep.subr.bf16.mxu0 0
        %1739 = vmatpush2.bf16.msra.mxu0 0
        %1740 = vmatprep.subr.bf16.mxu0 0
        %1741 = vmatpush2.bf16.msra.mxu0 0
        %1742 = vmatprep.mubr.bf16.mxu0 0
        %1743 = vmatmul.mubr.bf16.gmra.mxu0 %v1708
        %v1744 = vpop.f32.mrf.mxu0
        %v1745 = vadd.f32 0.0, %v1744
        %v1746 = vpop.f32.mrf.mxu0
        %v1747 = vpop.f32.mrf.mxu0
        %v1748 = vpop.f32.mrf.mxu0
        %1749 = vdwg.mxu0
        %1751 = vrot.lane.b32.xlu0 %v1745, 8
        %v1752 = vpop.permute.xlu0 %1751
        %1754 = vst.msk [vmem:[#allocation3] sm:$0xff] %vm998, %v1752
        %1755 = vrot.lane.b32.xlu0 %v1533, 112
        %v1756 = vpop.permute.xlu0 %1755
        %1757 = vrot.lane.b32.xlu0 %v1534, 112
        %v1758 = vpop.permute.xlu0 %1757
        %v1760 = vsel %vm775, %v1756, 0
        %v1763 = vsel %vm775, %v1758, 0
        %1765 = vmatprep.subr.bf16.mxu0 0
        %1766 = vmatpush1.bf16.xpose.msra.mxu0 0
        %1767 = vmatprep.subr.bf16.mxu0 0
        %1768 = vmatpush1.bf16.xpose.msra.mxu0 0
        %1769 = vmatprep.subr.bf16.mxu0 0
        %1770 = vmatpush1.bf16.xpose.msra.mxu0 0
        %1771 = vmatprep.subr.bf16.mxu0 0
        %1772 = vmatpush1.bf16.xpose.msra.mxu0 0
        %1773 = vmatprep.subr.bf16.mxu0 0
        %1774 = vmatpush1.bf16.xpose.msra.mxu0 0
        %1775 = vmatprep.subr.bf16.mxu0 0
        %1776 = vmatpush1.bf16.xpose.msra.mxu0 0
        %1777 = vmatprep.subr.bf16.mxu0 0
        %1778 = vmatpush1.bf16.xpose.msra.mxu0 0
        %1779 = vmatprep.subr.bf16.mxu0 0
        %1780 = vmatpush1.bf16.xpose.msra.mxu0 %v1763
        %1781 = vmatprep.subr.bf16.mxu0 0
        %1782 = vmatpush2.bf16.xpose.msra.mxu0 0
        %1783 = vmatprep.subr.bf16.mxu0 0
        %1784 = vmatpush2.bf16.xpose.msra.mxu0 0
        %1785 = vmatprep.subr.bf16.mxu0 0
        %1786 = vmatpush2.bf16.xpose.msra.mxu0 0
        %1787 = vmatprep.subr.bf16.mxu0 0
        %1788 = vmatpush2.bf16.xpose.msra.mxu0 0
        %1789 = vmatprep.subr.bf16.mxu0 0
        %1790 = vmatpush2.bf16.xpose.msra.mxu0 0
        %1791 = vmatprep.subr.bf16.mxu0 0
        %1792 = vmatpush2.bf16.xpose.msra.mxu0 0
        %1793 = vmatprep.subr.bf16.mxu0 0
        %1794 = vmatpush2.bf16.xpose.msra.mxu0 0
        %1795 = vmatprep.subr.bf16.mxu0 0
        %1796 = vmatpush2.bf16.xpose.msra.mxu0 0
        %1797 = vmatprep.mubr.bf16.mxu0 0
        %1798 = vmatmul.mubr.bf16.gmra.mxu0 %v1760
        %v1799 = vpop.f32.mrf.mxu0
        %v1800 = vadd.f32 0.0, %v1799
        %v1801 = vpop.f32.mrf.mxu0
        %v1802 = vpop.f32.mrf.mxu0
        %v1803 = vpop.f32.mrf.mxu0
        %1804 = vdwg.mxu0
        %v1805 = vsel %vm1582, %v1800, -inf
        %1806 = vmax.xlane.f32.xlu0 %v1805
        %v1807 = vpop.xlane.xlu0 %1806
        %v1808 = vsub.f32 %v1800, %v1807
        %v1809 = vmul.f32 %v1808, 1.442695
        %v1810 = vpow.pop %v1809
        %v1811 = vsel %vm1582, %v1810, 0.0
        %1812 = vadd.xlane.f32.xlu0 %v1811
        %v1813 = vpop.xlane.xlu0 %1812
        %v1814 = vrcp.pop %v1813
        %v1815 = vmul.f32 %v1810, %v1814
        %v1816 = vpack.c.bf16 %v1815, %v1815
        %1817 = vrot.lane.b32.xlu0 %v1535, 112
        %v1818 = vpop.permute.xlu0 %1817
        %v1821 = vsel %vm1582, %v1816, 0
        %1823 = vmatprep.subr.bf16.mxu0 0
        %1824 = vmatpush1.bf16.msra.mxu0 0
        %1825 = vmatprep.subr.bf16.mxu0 0
        %1826 = vmatpush1.bf16.msra.mxu0 0
        %1827 = vmatprep.subr.bf16.mxu0 0
        %1828 = vmatpush1.bf16.msra.mxu0 0
        %1829 = vmatprep.subr.bf16.mxu0 0
        %1830 = vmatpush1.bf16.msra.mxu0 0
        %1831 = vmatprep.subr.bf16.mxu0 0
        %1832 = vmatpush1.bf16.msra.mxu0 0
        %1833 = vmatprep.subr.bf16.mxu0 0
        %1834 = vmatpush1.bf16.msra.mxu0 0
        %1835 = vmatprep.subr.bf16.mxu0 0
        %1836 = vmatpush1.bf16.msra.mxu0 0
        %1837 = vmatprep.subr.bf16.mxu0 0
        %1838 = vmatpush1.bf16.msra.mxu0 %v1818
        %1839 = vmatprep.subr.bf16.mxu0 0
        %1840 = vmatpush2.bf16.msra.mxu0 0
        %1841 = vmatprep.subr.bf16.mxu0 0
        %1842 = vmatpush2.bf16.msra.mxu0 0
        %1843 = vmatprep.subr.bf16.mxu0 0
        %1844 = vmatpush2.bf16.msra.mxu0 0
        %1845 = vmatprep.subr.bf16.mxu0 0
        %1846 = vmatpush2.bf16.msra.mxu0 0
        %1847 = vmatprep.subr.bf16.mxu0 0
        %1848 = vmatpush2.bf16.msra.mxu0 0
        %1849 = vmatprep.subr.bf16.mxu0 0
        %1850 = vmatpush2.bf16.msra.mxu0 0
        %1851 = vmatprep.subr.bf16.mxu0 0
        %1852 = vmatpush2.bf16.msra.mxu0 0
        %1853 = vmatprep.subr.bf16.mxu0 0
        %1854 = vmatpush2.bf16.msra.mxu0 0
        %1855 = vmatprep.mubr.bf16.mxu0 0
        %1856 = vmatmul.mubr.bf16.gmra.mxu0 %v1821
        %v1857 = vpop.f32.mrf.mxu0
        %v1858 = vadd.f32 0.0, %v1857
        %v1859 = vpop.f32.mrf.mxu0
        %v1860 = vpop.f32.mrf.mxu0
        %v1861 = vpop.f32.mrf.mxu0
        %1862 = vdwg.mxu0
        %1864 = vrot.lane.b32.xlu0 %v1858, 16
        %v1865 = vpop.permute.xlu0 %1864
        %1867 = vst.msk [vmem:[#allocation3] sm:$0xff] %vm1114, %v1865
        %1868 = vrot.lane.b32.xlu0 %v1533, 104
        %v1869 = vpop.permute.xlu0 %1868
        %1870 = vrot.lane.b32.xlu0 %v1534, 104
        %v1871 = vpop.permute.xlu0 %1870
        %v1873 = vsel %vm775, %v1869, 0
        %v1876 = vsel %vm775, %v1871, 0
        %1878 = vmatprep.subr.bf16.mxu0 0
        %1879 = vmatpush1.bf16.xpose.msra.mxu0 0
        %1880 = vmatprep.subr.bf16.mxu0 0
        %1881 = vmatpush1.bf16.xpose.msra.mxu0 0
        %1882 = vmatprep.subr.bf16.mxu0 0
        %1883 = vmatpush1.bf16.xpose.msra.mxu0 0
        %1884 = vmatprep.subr.bf16.mxu0 0
        %1885 = vmatpush1.bf16.xpose.msra.mxu0 0
        %1886 = vmatprep.subr.bf16.mxu0 0
        %1887 = vmatpush1.bf16.xpose.msra.mxu0 0
        %1888 = vmatprep.subr.bf16.mxu0 0
        %1889 = vmatpush1.bf16.xpose.msra.mxu0 0
        %1890 = vmatprep.subr.bf16.mxu0 0
        %1891 = vmatpush1.bf16.xpose.msra.mxu0 0
        %1892 = vmatprep.subr.bf16.mxu0 0
        %1893 = vmatpush1.bf16.xpose.msra.mxu0 %v1876
        %1894 = vmatprep.subr.bf16.mxu0 0
        %1895 = vmatpush2.bf16.xpose.msra.mxu0 0
        %1896 = vmatprep.subr.bf16.mxu0 0
        %1897 = vmatpush2.bf16.xpose.msra.mxu0 0
        %1898 = vmatprep.subr.bf16.mxu0 0
        %1899 = vmatpush2.bf16.xpose.msra.mxu0 0
        %1900 = vmatprep.subr.bf16.mxu0 0
        %1901 = vmatpush2.bf16.xpose.msra.mxu0 0
        %1902 = vmatprep.subr.bf16.mxu0 0
        %1903 = vmatpush2.bf16.xpose.msra.mxu0 0
        %1904 = vmatprep.subr.bf16.mxu0 0
        %1905 = vmatpush2.bf16.xpose.msra.mxu0 0
        %1906 = vmatprep.subr.bf16.mxu0 0
        %1907 = vmatpush2.bf16.xpose.msra.mxu0 0
        %1908 = vmatprep.subr.bf16.mxu0 0
        %1909 = vmatpush2.bf16.xpose.msra.mxu0 0
        %1910 = vmatprep.mubr.bf16.mxu0 0
        %1911 = vmatmul.mubr.bf16.gmra.mxu0 %v1873
        %v1912 = vpop.f32.mrf.mxu0
        %v1913 = vadd.f32 0.0, %v1912
        %v1914 = vpop.f32.mrf.mxu0
        %v1915 = vpop.f32.mrf.mxu0
        %v1916 = vpop.f32.mrf.mxu0
        %1917 = vdwg.mxu0
        %v1918 = vsel %vm1582, %v1913, -inf
        %1919 = vmax.xlane.f32.xlu0 %v1918
        %v1920 = vpop.xlane.xlu0 %1919
        %v1921 = vsub.f32 %v1913, %v1920
        %v1922 = vmul.f32 %v1921, 1.442695
        %v1923 = vpow.pop %v1922
        %v1924 = vsel %vm1582, %v1923, 0.0
        %1925 = vadd.xlane.f32.xlu0 %v1924
        %v1926 = vpop.xlane.xlu0 %1925
        %v1927 = vrcp.pop %v1926
        %v1928 = vmul.f32 %v1923, %v1927
        %v1929 = vpack.c.bf16 %v1928, %v1928
        %1930 = vrot.lane.b32.xlu0 %v1535, 104
        %v1931 = vpop.permute.xlu0 %1930
        %v1934 = vsel %vm1582, %v1929, 0
        %1936 = vmatprep.subr.bf16.mxu0 0
        %1937 = vmatpush1.bf16.msra.mxu0 0
        %1938 = vmatprep.subr.bf16.mxu0 0
        %1939 = vmatpush1.bf16.msra.mxu0 0
        %1940 = vmatprep.subr.bf16.mxu0 0
        %1941 = vmatpush1.bf16.msra.mxu0 0
        %1942 = vmatprep.subr.bf16.mxu0 0
        %1943 = vmatpush1.bf16.msra.mxu0 0
        %1944 = vmatprep.subr.bf16.mxu0 0
        %1945 = vmatpush1.bf16.msra.mxu0 0
        %1946 = vmatprep.subr.bf16.mxu0 0
        %1947 = vmatpush1.bf16.msra.mxu0 0
        %1948 = vmatprep.subr.bf16.mxu0 0
        %1949 = vmatpush1.bf16.msra.mxu0 0
        %1950 = vmatprep.subr.bf16.mxu0 0
        %1951 = vmatpush1.bf16.msra.mxu0 %v1931
        %1952 = vmatprep.subr.bf16.mxu0 0
        %1953 = vmatpush2.bf16.msra.mxu0 0
        %1954 = vmatprep.subr.bf16.mxu0 0
        %1955 = vmatpush2.bf16.msra.mxu0 0
        %1956 = vmatprep.subr.bf16.mxu0 0
        %1957 = vmatpush2.bf16.msra.mxu0 0
        %1958 = vmatprep.subr.bf16.mxu0 0
        %1959 = vmatpush2.bf16.msra.mxu0 0
        %1960 = vmatprep.subr.bf16.mxu0 0
        %1961 = vmatpush2.bf16.msra.mxu0 0
        %1962 = vmatprep.subr.bf16.mxu0 0
        %1963 = vmatpush2.bf16.msra.mxu0 0
        %1964 = vmatprep.subr.bf16.mxu0 0
        %1965 = vmatpush2.bf16.msra.mxu0 0
        %1966 = vmatprep.subr.bf16.mxu0 0
        %1967 = vmatpush2.bf16.msra.mxu0 0
        %1968 = vmatprep.mubr.bf16.mxu0 0
        %1969 = vmatmul.mubr.bf16.gmra.mxu0 %v1934
        %v1970 = vpop.f32.mrf.mxu0
        %v1971 = vadd.f32 0.0, %v1970
        %v1972 = vpop.f32.mrf.mxu0
        %v1973 = vpop.f32.mrf.mxu0
        %v1974 = vpop.f32.mrf.mxu0
        %1975 = vdwg.mxu0
        %1977 = vrot.lane.b32.xlu0 %v1971, 24
        %v1978 = vpop.permute.xlu0 %1977
        %1980 = vst.msk [vmem:[#allocation3] sm:$0xff] %vm1230, %v1978
        %v1981 = vld [vmem:[#allocation3] sm:$0xff]
        %v1982 = vpack.c.bf16 %v1981, %v1981
        %v1983 = vlaneseq
        %v1984 = vshrl.u32 %v1983, 7
        %v1985 = vsub.s32 7, %v1984
        %v1986 = vrot.slane %v622, %v1985
        %v1991 = vunpack.c.l.b16 %v1529
        %v1992 = vunpack.c.l.b16 %v1530
        %v1993 = vunpack.c.l.b16 %v1531
        %v1994 = vunpack.c.l.b16 %v1532
        %v1995 = vpack.c.b16 %v1992, %v1991
        %v1996 = vpack.c.b16 %v1994, %v1993
        %v2000 = vsel %vm642, %v1982, 0
        %2002 = vmatprep.subr.bf16.mxu0 0
        %2003 = vmatpush1.bf16.msra.mxu0 0
        %2004 = vmatprep.subr.bf16.mxu0 0
        %2005 = vmatpush1.bf16.msra.mxu0 0
        %2006 = vmatprep.subr.bf16.mxu0 0
        %2007 = vmatpush1.bf16.msra.mxu0 0
        %2008 = vmatprep.subr.bf16.mxu0 0
        %2009 = vmatpush1.bf16.msra.mxu0 0
        %2010 = vmatprep.subr.bf16.mxu0 0
        %2011 = vmatpush1.bf16.msra.mxu0 0
        %2012 = vmatprep.subr.bf16.mxu0 0
        %2013 = vmatpush1.bf16.msra.mxu0 0
        %2014 = vmatprep.subr.bf16.mxu0 0
        %2015 = vmatpush1.bf16.msra.mxu0 %v1996
        %2016 = vmatprep.subr.bf16.mxu0 0
        %2017 = vmatpush1.bf16.msra.mxu0 %v1995
        %2018 = vmatprep.subr.bf16.mxu0 0
        %2019 = vmatpush2.bf16.msra.mxu0 0
        %2020 = vmatprep.subr.bf16.mxu0 0
        %2021 = vmatpush2.bf16.msra.mxu0 0
        %2022 = vmatprep.subr.bf16.mxu0 0
        %2023 = vmatpush2.bf16.msra.mxu0 0
        %2024 = vmatprep.subr.bf16.mxu0 0
        %2025 = vmatpush2.bf16.msra.mxu0 0
        %2026 = vmatprep.subr.bf16.mxu0 0
        %2027 = vmatpush2.bf16.msra.mxu0 0
        %2028 = vmatprep.subr.bf16.mxu0 0
        %2029 = vmatpush2.bf16.msra.mxu0 0
        %2030 = vmatprep.subr.bf16.mxu0 0
        %2031 = vmatpush2.bf16.msra.mxu0 0
        %2032 = vmatprep.subr.bf16.mxu0 0
        %2033 = vmatpush2.bf16.msra.mxu0 0
        %2034 = vmatprep.mubr.bf16.mxu0 0
        %2035 = vmatmul.mubr.bf16.gmra.mxu0 %v2000
        %v2036 = vpop.f32.mrf.mxu0
        %v2037 = vadd.f32 %v1986, %v2036
        %v2038 = vpop.f32.mrf.mxu0
        %v2039 = vpop.f32.mrf.mxu0
        %v2040 = vpop.f32.mrf.mxu0
        %2041 = vdwg.mxu0
        %v2042 = vadd.f32 %v1317, %v2037
        %v2043 = vsel %vm642, %v2042, 0.0
        %2044 = vadd.xlane.f32.xlu0 %v2043
        %v2045 = vpop.xlane.xlu0 %2044
        %v2046 = vmul.f32 %v2045, %v1297
        %v2047 = vsub.f32 %v2042, %v2046
        %v2048 = vmul.f32 %v2047, %v2047
        %v2049 = vsel %vm642, %v2048, 0.0
        %2050 = vadd.xlane.f32.xlu0 %v2049
        %v2051 = vpop.xlane.xlu0 %2050
        %v2052 = vmul.f32 %v2051, %v1297
        %v2053 = vadd.f32 %v2052, 1e-05
        %v2054 = vrsqrt.pop %v2053
        %v2055 = vmul.f32 %v2047, %v2054
        %v2056 = vlaneseq
        %v2057 = vshrl.u32 %v2056, 7
        %v2058 = vsub.s32 3, %v2057
        %v2059 = vrot.slane %v623, %v2058
        %v2060 = vmul.f32 %v2055, %v2059
        %v2061 = vlaneseq
        %v2062 = vshrl.u32 %v2061, 7
        %v2063 = vsub.s32 4, %v2062
        %v2064 = vrot.slane %v623, %v2063
        %v2065 = vadd.f32 %v2060, %v2064
        %v2066 = vpack.c.bf16 %v2065, %v2065
        %v2067 = vld [vmem:[%s599] sm:$0xf]
        %v2068 = vld [vmem:[%s599 + $0x4] sm:$0xf]
        %v2069 = vld [vmem:[%s599 + $0x8] sm:$0xf]
        %v2070 = vld [vmem:[%s599 + $0xc] sm:$0xf]
        %v2071 = vld [vmem:[%s607] sm:$0x1]
        %v2073 = vlaneseq
        %v2074 = vshrl.u32 %v2073, 7
        %v2075 = vsub.s32 0, %v2074
        %v2076 = vrot.slane %v2071, %v2075
        %v2082 = vunpack.c.l.b16 %v2067
        %v2083 = vunpack.c.l.b16 %v2068
        %v2084 = vunpack.c.l.b16 %v2069
        %v2085 = vunpack.c.l.b16 %v2070
        %v2086 = vpack.c.b16 %v2083, %v2082
        %v2087 = vpack.c.b16 %v2085, %v2084
        %v2091 = vsel %vm642, %v2066, 0
        %2093 = vmatprep.subr.bf16.mxu0 0
        %2094 = vmatpush1.bf16.msra.mxu0 0
        %2095 = vmatprep.subr.bf16.mxu0 0
        %2096 = vmatpush1.bf16.msra.mxu0 0
        %2097 = vmatprep.subr.bf16.mxu0 0
        %2098 = vmatpush1.bf16.msra.mxu0 0
        %2099 = vmatprep.subr.bf16.mxu0 0
        %2100 = vmatpush1.bf16.msra.mxu0 0
        %2101 = vmatprep.subr.bf16.mxu0 0
        %2102 = vmatpush1.bf16.msra.mxu0 0
        %2103 = vmatprep.subr.bf16.mxu0 0
        %2104 = vmatpush1.bf16.msra.mxu0 0
        %2105 = vmatprep.subr.bf16.mxu0 0
        %2106 = vmatpush1.bf16.msra.mxu0 %v2087
        %2107 = vmatprep.subr.bf16.mxu0 0
        %2108 = vmatpush1.bf16.msra.mxu0 %v2086
        %2109 = vmatprep.subr.bf16.mxu0 0
        %2110 = vmatpush2.bf16.msra.mxu0 0
        %2111 = vmatprep.subr.bf16.mxu0 0
        %2112 = vmatpush2.bf16.msra.mxu0 0
        %2113 = vmatprep.subr.bf16.mxu0 0
        %2114 = vmatpush2.bf16.msra.mxu0 0
        %2115 = vmatprep.subr.bf16.mxu0 0
        %2116 = vmatpush2.bf16.msra.mxu0 0
        %2117 = vmatprep.subr.bf16.mxu0 0
        %2118 = vmatpush2.bf16.msra.mxu0 0
        %2119 = vmatprep.subr.bf16.mxu0 0
        %2120 = vmatpush2.bf16.msra.mxu0 0
        %2121 = vmatprep.subr.bf16.mxu0 0
        %2122 = vmatpush2.bf16.msra.mxu0 0
        %2123 = vmatprep.subr.bf16.mxu0 0
        %2124 = vmatpush2.bf16.msra.mxu0 0
        %2125 = vmatprep.mubr.bf16.mxu0 0
        %2126 = vmatmul.mubr.bf16.gmra.mxu0 %v2091
        %v2127 = vpop.f32.mrf.mxu0
        %v2128 = vadd.f32 %v2076, %v2127
        %v2129 = vpop.f32.mrf.mxu0
        %v2130 = vpop.f32.mrf.mxu0
        %v2131 = vpop.f32.mrf.mxu0
        %2132 = vdwg.mxu0
        %v2133 = vmax.f32 %v2128, 0.0
        %v2134 = vpack.c.bf16 %v2133, %v2133
        %v2135 = vld [vmem:[%s604] sm:$0xf]
        %v2136 = vld [vmem:[%s604 + $0x4] sm:$0xf]
        %v2137 = vld [vmem:[%s604 + $0x8] sm:$0xf]
        %v2138 = vld [vmem:[%s604 + $0xc] sm:$0xf]
        %v2139 = vld [vmem:[%s604 + $0x10] sm:$0xf]
        %v2140 = vld [vmem:[%s604 + $0x14] sm:$0xf]
        %v2141 = vld [vmem:[%s604 + $0x18] sm:$0xf]
        %v2142 = vld [vmem:[%s604 + $0x1c] sm:$0xf]
        %v2143 = vlaneseq
        %v2144 = vshrl.u32 %v2143, 7
        %v2145 = vsub.s32 0, %v2144
        %v2146 = vrot.slane %v623, %v2145
        %v2155 = vunpack.c.l.b16 %v2135
        %v2156 = vunpack.c.l.b16 %v2136
        %v2157 = vunpack.c.l.b16 %v2137
        %v2158 = vunpack.c.l.b16 %v2138
        %v2159 = vunpack.c.l.b16 %v2139
        %v2160 = vunpack.c.l.b16 %v2140
        %v2161 = vunpack.c.l.b16 %v2141
        %v2162 = vunpack.c.l.b16 %v2142
        %v2163 = vpack.c.b16 %v2156, %v2155
        %v2164 = vpack.c.b16 %v2158, %v2157
        %v2165 = vpack.c.b16 %v2160, %v2159
        %v2166 = vpack.c.b16 %v2162, %v2161
        %vm2171 = vcmask 523264
        %v2173 = vsel %vm2171, %v2134, 0
        %2175 = vmatprep.subr.bf16.mxu0 0
        %2176 = vmatpush1.bf16.msra.mxu0 0
        %2177 = vmatprep.subr.bf16.mxu0 0
        %2178 = vmatpush1.bf16.msra.mxu0 0
        %2179 = vmatprep.subr.bf16.mxu0 0
        %2180 = vmatpush1.bf16.msra.mxu0 0
        %2181 = vmatprep.subr.bf16.mxu0 0
        %2182 = vmatpush1.bf16.msra.mxu0 0
        %2183 = vmatprep.subr.bf16.mxu0 0
        %2184 = vmatpush1.bf16.msra.mxu0 %v2166
        %2185 = vmatprep.subr.bf16.mxu0 0
        %2186 = vmatpush1.bf16.msra.mxu0 %v2165
        %2187 = vmatprep.subr.bf16.mxu0 0
        %2188 = vmatpush1.bf16.msra.mxu0 %v2164
        %2189 = vmatprep.subr.bf16.mxu0 0
        %2190 = vmatpush1.bf16.msra.mxu0 %v2163
        %2191 = vmatprep.subr.bf16.mxu0 0
        %2192 = vmatpush2.bf16.msra.mxu0 0
        %2193 = vmatprep.subr.bf16.mxu0 0
        %2194 = vmatpush2.bf16.msra.mxu0 0
        %2195 = vmatprep.subr.bf16.mxu0 0
        %2196 = vmatpush2.bf16.msra.mxu0 0
        %2197 = vmatprep.subr.bf16.mxu0 0
        %2198 = vmatpush2.bf16.msra.mxu0 0
        %2199 = vmatprep.subr.bf16.mxu0 0
        %2200 = vmatpush2.bf16.msra.mxu0 0
        %2201 = vmatprep.subr.bf16.mxu0 0
        %2202 = vmatpush2.bf16.msra.mxu0 0
        %2203 = vmatprep.subr.bf16.mxu0 0
        %2204 = vmatpush2.bf16.msra.mxu0 0
        %2205 = vmatprep.subr.bf16.mxu0 0
        %2206 = vmatpush2.bf16.msra.mxu0 0
        %2207 = vmatprep.mubr.bf16.mxu0 0
        %2208 = vmatmul.mubr.bf16.gmra.mxu0 %v2173
        %v2209 = vpop.f32.mrf.mxu0
        %v2210 = vadd.f32 %v2146, %v2209
        %v2211 = vpop.f32.mrf.mxu0
        %v2212 = vpop.f32.mrf.mxu0
        %v2213 = vpop.f32.mrf.mxu0
        %2214 = vdwg.mxu0
        %v2215 = vadd.f32 %v2065, %v2210
        %v2216 = vsel %vm642, %v2215, 0.0
        %2217 = vadd.xlane.f32.xlu0 %v2216
        %v2218 = vpop.xlane.xlu0 %2217
        %v2219 = vmul.f32 %v2218, %v1297
        %v2220 = vsub.f32 %v2215, %v2219
        %v2221 = vmul.f32 %v2220, %v2220
        %v2222 = vsel %vm642, %v2221, 0.0
        %2223 = vadd.xlane.f32.xlu0 %v2222
        %v2224 = vpop.xlane.xlu0 %2223
        %v2225 = vmul.f32 %v2224, %v1297
        %v2226 = vadd.f32 %v2225, 1e-05
        %v2227 = vrsqrt.pop %v2226
        %v2228 = vmul.f32 %v2220, %v2227
        %v2229 = vlaneseq
        %v2230 = vshrl.u32 %v2229, 7
        %v2231 = vsub.s32 5, %v2230
        %v2232 = vrot.slane %v623, %v2231
        %v2233 = vmul.f32 %v2228, %v2232
        %v2234 = vlaneseq
        %v2235 = vshrl.u32 %v2234, 7
        %v2236 = vsub.s32 6, %v2235
        %v2237 = vrot.slane %v623, %v2236
        %v2238 = vadd.f32 %v2233, %v2237
        %2239 = vst.msk [vmem:[#allocation2] sm:$0xff] %vm642, %v2238
        %p2240 = scmp.eq.s32.totalorder %s31, 1
        // Predicated region
        $region77: #{transformer_decoder_forward.1} parent=67 // pred_check
          %p2241 = pneg %p2240
        $region78: #{transformer_decoder_forward.1} parent=67 // pred_check_branch
          %2243 = sbr.rel (%p2241) target = $region80
        $region79: #{transformer_decoder_forward.1} parent=67 // pred_region
          %v2244 = vld [vmem:[%s10] sm:$0x1]
          %v2245 = vld [vmem:[%s11] sm:$0x1]
          %v2246 = vsel %vm642, %v2238, 0.0
          %2247 = vadd.xlane.f32.xlu0 %v2246
          %v2248 = vpop.xlane.xlu0 %2247
          %v2249 = vmul.f32 %v2248, %v1297
          %v2250 = vsub.f32 %v2238, %v2249
          %v2251 = vmul.f32 %v2250, %v2250
          %v2252 = vsel %vm642, %v2251, 0.0
          %2253 = vadd.xlane.f32.xlu0 %v2252
          %v2254 = vpop.xlane.xlu0 %2253
          %v2255 = vmul.f32 %v2254, %v1297
          %v2256 = vadd.f32 %v2255, 1e-05
          %v2257 = vrsqrt.pop %v2256
          %v2258 = vmul.f32 %v2250, %v2257
          %v2260 = vlaneseq
          %v2261 = vshrl.u32 %v2260, 7
          %v2262 = vsub.s32 0, %v2261
          %v2263 = vrot.slane %v2244, %v2262
          %v2265 = vmul.f32 %v2258, %v2263
          %v2267 = vlaneseq
          %v2268 = vshrl.u32 %v2267, 7
          %v2269 = vsub.s32 0, %v2268
          %v2270 = vrot.slane %v2245, %v2269
          %v2272 = vadd.f32 %v2265, %v2270
          %2273 = vst.msk [vmem:[%s611] sm:$0xff] %vm642, %v2272
        $region80: #{transformer_decoder_forward.1} parent=67 // pred_fallthru
          _
        %p2274 = scmp.lt.s32.totalorder %s30, 1
        %s2275 = scalar_select %p2274, %s30, 1
        %s2276 = smul.addr %s2275, 8
        %s2277 = scalar_lea.vmem %s12, %s2276
        // Predicated region
        $region81: #{transformer_decoder_forward.1} parent=67 // pred_check
          %p2278 = pneg %p358
        $region82: #{transformer_decoder_forward.1} parent=67 // pred_check_branch
          %2280 = sbr.rel (%p2278) target = $region84
        $region83: #{transformer_decoder_forward.1} parent=67 // pred_region
          _
        $region84: #{transformer_decoder_forward.1} parent=67 // pred_fallthru
          _
      $region68: #{transformer_decoder_forward.1} parent=5 // pred_fallthru
        _
      %p2281 = scmp.le.s32.totalorder 2, %s21
      // Predicated region
      $region85: #{transformer_decoder_forward.1} parent=5 // pred_check
        %p2282 = pneg %p2281
      $region86: #{transformer_decoder_forward.1} parent=5 // pred_check_branch
        %2284 = sbr.rel (%p2282) target = $region88
      $region87: #{transformer_decoder_forward.1} parent=5 // pred_region
        %s2285 = ssub.s32 %s21, 2
        // Predicated region
        $region89: #{transformer_decoder_forward.1} parent=87 // pred_check
          %p2286 = pneg %p364
        $region90: #{transformer_decoder_forward.1} parent=87 // pred_check_branch
          %2288 = sbr.rel (%p2286) target = $region92
        $region91: #{transformer_decoder_forward.1} parent=87 // pred_region
          %p2289 = scmp.lt.s32.totalorder %s32, 1
          %s2290 = scalar_select %p2289, %s32, 1
          %s2291 = smul.addr %s2290, 8
          %s2292 = scalar_lea.vmem %s12, %s2291
        $region92: #{transformer_decoder_forward.1} parent=87 // pred_fallthru
          _
      $region88: #{transformer_decoder_forward.1} parent=5 // pred_fallthru
        _
    $region6: #{transformer_decoder_forward.1} parent=1 // loop_footer
      %s25 = sadd.s32 1, %s21
    $region7: #{transformer_decoder_forward.1} parent=1 // loop_footer_branch
      %20 = sbr.rel target = $region3
    $region8: #{transformer_decoder_forward.1} parent=1 // loop_exit
      _
    %2293 = vsyncpa [#allocation5], 1
    %s2294 = scalar_lea.sflag [#allocation5], 1
    %2295 = vsyncpa %s2294, 1

</llo_original>
